<compile_context>
chip_gen: v6e
topology: v6e:2x2x1
jax: 0.10.0
libtpu: 0.0.40
codegen_flags: <defaults>
</compile_context>

<pallas_src>
import functools

import jax
import jax.numpy as jnp
from jax.experimental import pallas as pl
from jax.experimental.pallas import tpu as pltpu


# ----------------------------------------------------------------------------
# "params" (synthetic, small, consistent with the module's forward)
# ----------------------------------------------------------------------------
class Params:
    max_vocab_cnt = 64
    embed_size = 16          # E
    encoding_cell_size = 32  # H
    num_layer = 1
    cell_type = "gru"
    batch_size = 2           # B
    max_dialog_len = 8       # L
    max_enc_steps = 10       # T
    max_dec_steps = 12
    n_state = 10
    dropout = 0
    use_struct_attention = True


params = Params()
ATTN_R = 200    # size of W_1/W_2/b/s in the original module
ATTN_RP = 256   # zero-padded feature dim (vreg-aligned lane slices; padding is exact)


# ----------------------------------------------------------------------------
# Fused Pallas kernel: per grid step b (one dialog of L utterances)
#   Stage 1: single-layer GRU over T steps, gate-major, h frozen at enc_lens.
#   Stage 2: pairwise structural-attention log potentials
#            pot[i,j] = tanh( s . tanh(W1 h_i + W2 h_j + b) ), zeroed by keep-mask.
# NOTE: in the PyTorch source the i==j "root" branch is always overwritten by
# the following if/elif/else, so the final semantics are exactly the above
# (self.root is dead code and is reproduced as such).
# ----------------------------------------------------------------------------
def _fused_kernel(x_ref, wih_ref, whh_ref, bih_ref, bhh_ref, lens_ref,
                  w12_ref, battn_ref, s_ref, keep_ref,
                  sent_out_ref, pot_out_ref,
                  gi_r_scr, gi_z_scr, gi_n_scr, *, T, L, E, H, RP):
    f32 = jnp.float32

    # ---------------- Stage 1: sentence GRU ----------------
    x2 = x_ref[0]                                        # [T*L, E] bf16 (rows = t*L + l)
    # Batched input projection for ALL timesteps, one MXU pass per gate,
    # written gate-major into [T, L, H] scratches (no per-step lane slicing).
    for g, scr in enumerate((gi_r_scr, gi_z_scr, gi_n_scr)):
        scr[...] = (jnp.dot(x2, wih_ref[g], preferred_element_type=f32)
                    + bih_ref[g]).reshape(T, L, H)

    whh_r, whh_z, whh_n = whh_ref[0], whh_ref[1], whh_ref[2]   # [H, H] bf16, hoisted
    bhh_r, bhh_z, bhh_n = bhh_ref[0], bhh_ref[1], bhh_ref[2]   # [1, H] f32
    lens = lens_ref[0]                                         # [L, 1] int32

    def step(t, h):
        hb = h.astype(jnp.bfloat16)                            # bf16 only for the MXU
        gh_r = jnp.dot(hb, whh_r, preferred_element_type=f32) + bhh_r
        gh_z = jnp.dot(hb, whh_z, preferred_element_type=f32) + bhh_z
        gh_n = jnp.dot(hb, whh_n, preferred_element_type=f32) + bhh_n
        # PyTorch GRU gate ordering: (reset, update, new); elementwise math in f32.
        r = jax.nn.sigmoid(gi_r_scr[t] + gh_r)
        z = jax.nn.sigmoid(gi_z_scr[t] + gh_z)
        n = jnp.tanh(gi_n_scr[t] + r * gh_n)
        h_new = (1.0 - z) * n + z * h
        # Freeze once t >= enc_lens[row] -> final h == state at step enc_lens-1
        # (rows with enc_lens == 0 stay zero), i.e. the PyTorch gather result.
        return jnp.where(t < lens, h_new, h)

    # T is small here; for production T use a small unroll factor (2-4).
    h_final = jax.lax.fori_loop(0, T, step, jnp.zeros((L, H), f32), unroll=True)
    sent_out_ref[...] = h_final[None]                          # [1, L, H]

    # ---------------- Stage 2: structural-attention potentials ----------------
    # Fused projection: h @ [W1 ; W2]^T in ONE MXU pass (feature dim padded to RP).
    proj = jnp.dot(h_final.astype(jnp.bfloat16), w12_ref[...],
                   preferred_element_type=f32)                 # [L, 2*RP]
    a = proj[:, :RP]                                           # W1 @ h_i (vreg-aligned slice)
    c = proj[:, RP:]                                           # W2 @ h_j (vreg-aligned slice)
    # Pair expansion via pure VPU broadcasting (no one-hot matmuls, no B^2*L^3 constants).
    pre = jnp.tanh(a[:, None, :] + c[None, :, :] + battn_ref[...])   # [L, L, RP]
    # s-contraction: VPU multiply + lane reduce (padded lanes contribute exactly 0).
    pot = jnp.tanh(jnp.sum(pre * s_ref[...], axis=-1))                # [L, L]
    # keep==0 -> potential forced to 0 (faithful to the PyTorch masking; note that
    # exp(0)=1 then enters the matrix-tree Laplacian exactly like the original).
    pot_out_ref[...] = (pot * keep_ref[0])[None]                      # [1, L, L]


def gru_and_potentials(x, w_ih, w_hh, b_ih, b_hh, lens, w12_t, b_row, s_row, keep,
                       *, B, L, T, E, H, RP):
    """x: [B, T*L, E] bf16. Returns (sent_embedding [B,L,H], log_potentials [B,L,L])."""
    kernel = functools.partial(_fused_kernel, T=T, L=L, E=E, H=H, RP=RP)
    rep2 = lambda b: (0, 0)
    rep3 = lambda b: (0, 0, 0)
    return pl.pallas_call(
        kernel,
        out_shape=(jax.ShapeDtypeStruct((B, L, H), jnp.float32),
                   jax.ShapeDtypeStruct((B, L, L), jnp.float32)),
        grid=(B,),
        in_specs=[
            pl.BlockSpec((1, T * L, E), lambda b: (b, 0, 0)),   # x (bf16)
            pl.BlockSpec((3, E, H), rep3),                      # W_ih^T gate-major (bf16)
            pl.BlockSpec((3, H, H), rep3),                      # W_hh^T gate-major (bf16)
            pl.BlockSpec((3, 1, H), rep3),                      # b_ih
            pl.BlockSpec((3, 1, H), rep3),                      # b_hh
            pl.BlockSpec((1, L, 1), lambda b: (b, 0, 0)),       # enc_lens (int32)
            pl.BlockSpec((H, 2 * RP), rep2),                    # [W1;W2]^T padded (bf16)
            pl.BlockSpec((1, RP), rep2),                        # b (padded, f32)
            pl.BlockSpec((1, RP), rep2),                        # s (padded, f32)
            pl.BlockSpec((1, L, L), lambda b: (b, 0, 0)),       # keep mask (f32)
        ],
        out_specs=(pl.BlockSpec((1, L, H), lambda b: (b, 0, 0)),
                   pl.BlockSpec((1, L, L), lambda b: (b, 0, 0))),
        scratch_shapes=[pltpu.VMEM((T, L, H), jnp.float32)] * 3,   # gate-major gi scratch
        compiler_params=pltpu.CompilerParams(
            dimension_semantics=("parallel",),          # both v7x TCs get a dialog
            vmem_limit_bytes=32 * 1024 * 1024),
    )(x, w_ih, w_hh, b_ih, b_hh, lens, w12_t, b_row, s_row, keep)


# ----------------------------------------------------------------------------
# Non-projective dependency CRF marginals (matrix-tree theorem), plain-JAX glue.
# Follows torch_struct's deptree_nonproj closed-form marginals.
# ----------------------------------------------------------------------------
def nonprojective_marginals(log_potentials, eps=1e-5):
    B, N, _ = log_potentials.shape
    eye = jnp.eye(N, dtype=log_potentials.dtype)
    expA = jnp.exp(log_potentials)
    lap = (expA + eps) * (1.0 - eye)                        # zero the diagonal
    lap = -lap + lap.sum(axis=1)[:, :, None] * eye[None]    # column sums on diagonal
    root = jnp.exp(jnp.diagonal(log_potentials, axis1=-2, axis2=-1))   # [B, N]
    lap = lap.at[:, 0, :].set(root)
    inv = jnp.linalg.inv(lap)
    inv_diag = jnp.diagonal(inv, axis1=-2, axis2=-1)         # [B, N]
    term1 = expA * inv_diag[:, None, :]
    term2 = expA * jnp.transpose(inv, (0, 2, 1))
    term1 = term1.at[:, :, 0].set(0.0)
    term2 = term2.at[:, 0, :].set(0.0)
    output = term1 - term2
    roots_out = root * jnp.transpose(inv, (0, 2, 1))[:, 0, :]
    return output + roots_out[:, :, None] * eye[None]


# ----------------------------------------------------------------------------
# Deterministic parameter init (shapes follow TreeVRNN.__init__ / nn.GRU),
# stored directly in the kernel-friendly layouts (no per-call transposes).
# ----------------------------------------------------------------------------
def init_weights(key, p):
    V, E, H = p.max_vocab_cnt, p.embed_size, p.encoding_cell_size
    R, RP = ATTN_R, ATTN_RP
    ks = jax.random.split(key, 8)
    scale = 1.0 / (H ** 0.5)

    w1 = jax.random.uniform(ks[5], (R, H), jnp.float32)     # torch.rand
    w2 = jax.random.uniform(ks[6], (R, H), jnp.float32)     # torch.rand
    s = jax.random.uniform(ks[7], (R,), jnp.float32)        # torch.rand
    b = jnp.zeros((R,), jnp.float32)
    # Zero-pad the feature dim R -> RP.  Exact: padded rows give tanh(0)=0 and
    # s_pad=0, so they contribute nothing to the s-contraction.
    w1p = jnp.zeros((RP, H), jnp.float32).at[:R].set(w1)
    w2p = jnp.zeros((RP, H), jnp.float32).at[:R].set(w2)
    w12_t = jnp.concatenate([w1p.T, w2p.T], axis=1)          # [H, 2*RP]
    s_row = jnp.zeros((1, RP), jnp.float32).at[0, :R].set(s)
    b_row = jnp.zeros((1, RP), jnp.float32).at[0, :R].set(b)

    return {
        "embedding": jax.random.normal(ks[0], (V, E), jnp.float32),
        # GRU weights, gate-major [gate(r,z,n), in, H], pre-transposed, bf16 MXU operands.
        "gru_w_ih_t": jax.random.uniform(ks[1], (3, E, H), jnp.float32,
                                         -scale, scale).astype(jnp.bfloat16),
        "gru_w_hh_t": jax.random.uniform(ks[2], (3, H, H), jnp.float32,
                                         -scale, scale).astype(jnp.bfloat16),
        "gru_b_ih": jax.random.uniform(ks[3], (3, 1, H), jnp.float32, -scale, scale),
        "gru_b_hh": jax.random.uniform(ks[4], (3, 1, H), jnp.float32, -scale, scale),
        "w12_t": w12_t.astype(jnp.bfloat16),
        "b_row": b_row,
        "s_row": s_row,
        "root": jnp.zeros((H,), jnp.float32),  # dead in final log_potentials (overwritten)
    }


# ----------------------------------------------------------------------------
# Forward
# ----------------------------------------------------------------------------
def tree_vrnn_forward(p, w, enc_batch, enc_lens, dec_batch, target_batch,
                      padding_mask, tgt_index, training=True):
    B, L, T = p.batch_size, p.max_dialog_len, p.max_enc_steps
    E, H = p.embed_size, p.encoding_cell_size

    # Embedding gathered directly in [B, T, L, E] order (only the tiny int index
    # array is transposed, never the embedded activation), flattened to the
    # kernel's [B, T*L, E] layout; bf16 halves HBM/DMA bytes for the MXU operand.
    idx = enc_batch.reshape(B, L, T).transpose(0, 2, 1)                 # [B, T, L]
    x = w["embedding"][idx].reshape(B, T * L, E).astype(jnp.bfloat16)   # [B, T*L, E]
    lens = enc_lens.astype(jnp.int32).reshape(B, L, 1)

    # Static part of the potentials mask hoisted out of the kernel:
    # keep[b,i,j] = not (i > j or j > tgt_index[b]).
    ii = jnp.arange(L)[:, None]
    jj = jnp.arange(L)[None, :]
    keep = ((ii <= jj)[None, :, :]
            & (jj[None, :, :] <= tgt_index.astype(jnp.int32)[:, None, None])
            ).astype(jnp.float32)                                       # [B, L, L]

    # Fused Pallas kernel: sentence GRU (state at enc_lens-1) + log potentials.
    sent_embedding, log_potentials = gru_and_potentials(
        x, w["gru_w_ih_t"], w["gru_w_hh_t"], w["gru_b_ih"], w["gru_b_hh"], lens,
        w["w12_t"], w["b_row"], w["s_row"], keep,
        B=B, L=L, T=T, E=E, H=H, RP=ATTN_RP)
    # params.dropout == 0 -> no dropout module, matching the PyTorch guard.

    dec_input_embedding = w["embedding"][dec_batch]                     # [B, Tdec, E]

    # TODO(synk): TreeVAECell per-utterance recurrence (z sampling, p_z/q_z,
    # straight-through one-hot, h_list / tgt_index gather into *_dec) is an
    # external undefined module.

    # NonProjectiveDependencyCRF marginals (matrix-tree theorem, plain-JAX glue).
    marginals = nonprojective_marginals(log_potentials)

    # context[b, j, :] = sum_i marginals[b, i, j] * sent_embedding[b, i, :]
    # (tiny [L,L]x[L,H] per-batch bmm -> plain XLA einsum, no extra kernel launch)
    context_embedding = jnp.einsum("bij,bih->bjh", marginals, sent_embedding)

    if p.use_struct_attention:
        sent_embedding_aug = jnp.concatenate([sent_embedding, context_embedding], axis=2)
    else:
        sent_embedding_aug = sent_embedding

    # TODO(synk): vae_cell.decode(...) and BPR_BOW_loss_single(...) are external
    # undefined modules; the elbo/rc/kl/bow loss averaging is not reproduced.
    mask_len = jnp.sum(padding_mask)

    return {
        "sent_embedding": sent_embedding,
        "dec_input_embedding": dec_input_embedding,
        "log_potentials": log_potentials,
        "marginals": marginals,
        "context_embedding": context_embedding,
        "sent_embedding_with_context": sent_embedding_aug,
        "mask_len": mask_len,
    }


# ----------------------------------------------------------------------------
# Main
# ----------------------------------------------------------------------------
if __name__ == "__main__":
    p = params
    key = jax.random.PRNGKey(0)
    k_w, k_enc, k_len, k_dec, k_tgt, k_mask = jax.random.split(key, 6)

    weights = init_weights(k_w, p)

    N = p.batch_size * p.max_dialog_len
    enc_batch = jax.random.randint(k_enc, (N, p.max_enc_steps), 0, p.max_vocab_cnt, jnp.int32)
    enc_lens = jax.random.randint(k_len, (N,), 0, p.max_enc_steps + 1, jnp.int32)
    dec_batch = jax.random.randint(k_dec, (p.batch_size, p.max_dec_steps), 0,
                                   p.max_vocab_cnt, jnp.int32)
    target_batch = dec_batch
    padding_mask = (jax.random.uniform(k_mask, (p.batch_size, p.max_dec_steps)) > 0.2
                    ).astype(jnp.float32)
    tgt_index = jax.random.randint(k_tgt, (p.batch_size,), 0, p.max_dialog_len, jnp.int32)

    fwd = jax.jit(functools.partial(tree_vrnn_forward, p))
    out = fwd(weights, enc_batch, enc_lens, dec_batch, target_batch, padding_mask, tgt_index)
    out = jax.block_until_ready(out)

    # light sanity checks
    assert out["sent_embedding"].shape == (p.batch_size, p.max_dialog_len, p.encoding_cell_size)
    assert out["log_potentials"].shape == (p.batch_size, p.max_dialog_len, p.max_dialog_len)
    assert out["marginals"].shape == (p.batch_size, p.max_dialog_len, p.max_dialog_len)
    assert out["sent_embedding_with_context"].shape == (
        p.batch_size, p.max_dialog_len, 2 * p.encoding_cell_size)
    for v in jax.tree_util.tree_leaves(out):
        assert bool(jnp.all(jnp.isfinite(v)))

    print("KERNEL_OK")
</pallas_src>

<mosaic_0001>
module attributes {stable_mosaic.version = 11 : i64} {
  func.func @_fused_kernel(%arg0: i32, %arg1: memref<1x80x16xbf16, #tpu.memory_space<vmem>>, %arg2: memref<3x16x32xbf16, #tpu.memory_space<vmem>>, %arg3: memref<3x32x32xbf16, #tpu.memory_space<vmem>>, %arg4: memref<3x1x32xf32, #tpu.memory_space<vmem>>, %arg5: memref<3x1x32xf32, #tpu.memory_space<vmem>>, %arg6: memref<1x8x1xi32, #tpu.memory_space<vmem>>, %arg7: memref<32x512xbf16, #tpu.memory_space<vmem>>, %arg8: memref<1x256xf32, #tpu.memory_space<vmem>>, %arg9: memref<1x256xf32, #tpu.memory_space<vmem>>, %arg10: memref<1x8x8xf32, #tpu.memory_space<vmem>>, %arg11: memref<1x8x32xf32, #tpu.memory_space<vmem>>, %arg12: memref<1x8x8xf32, #tpu.memory_space<vmem>>, %arg13: memref<10x8x32xf32, #tpu.memory_space<vmem>>, %arg14: memref<10x8x32xf32, #tpu.memory_space<vmem>>, %arg15: memref<10x8x32xf32, #tpu.memory_space<vmem>>) attributes {dimension_semantics = [#tpu.dimension_semantics<parallel>], iteration_bounds = array<i64: 2>, scalar_prefetch = 0 : i64, scratch_operands = 3 : i64, tpu.core_type = #tpu.core_type<tc>, window_params = [{transform_indices = @transform_0, window_bounds = array<i64: 1, 80, 16>}, {pipeline_mode = #tpu.pipeline_mode<synchronous>, transform_indices = @transform_1, window_bounds = array<i64: 3, 16, 32>}, {pipeline_mode = #tpu.pipeline_mode<synchronous>, transform_indices = @transform_2, window_bounds = array<i64: 3, 32, 32>}, {pipeline_mode = #tpu.pipeline_mode<synchronous>, transform_indices = @transform_3, window_bounds = array<i64: 3, 1, 32>}, {pipeline_mode = #tpu.pipeline_mode<synchronous>, transform_indices = @transform_4, window_bounds = array<i64: 3, 1, 32>}, {transform_indices = @transform_5, window_bounds = array<i64: 1, 8, 1>}, {pipeline_mode = #tpu.pipeline_mode<synchronous>, transform_indices = @transform_6, window_bounds = array<i64: 32, 512>}, {pipeline_mode = #tpu.pipeline_mode<synchronous>, transform_indices = @transform_7, window_bounds = array<i64: 1, 256>}, {pipeline_mode = #tpu.pipeline_mode<synchronous>, transform_indices = @transform_8, window_bounds = array<i64: 1, 256>}, {transform_indices = @transform_9, window_bounds = array<i64: 1, 8, 8>}, {transform_indices = @transform_10, window_bounds = array<i64: 1, 8, 32>}, {transform_indices = @transform_11, window_bounds = array<i64: 1, 8, 8>}]} {
    %c0 = arith.constant 0 : index
    %c0_0 = arith.constant 0 : index
    %c0_1 = arith.constant 0 : index
    %0 = vector.load %arg1[%c0, %c0_0, %c0_1] : memref<1x80x16xbf16, #tpu.memory_space<vmem>>, vector<1x80x16xbf16>
    %1 = vector.shape_cast %0 : vector<1x80x16xbf16> to vector<80x16xbf16>
    %c0_2 = arith.constant 0 : index
    %c0_3 = arith.constant 0 : index
    %c0_4 = arith.constant 0 : index
    %2 = vector.load %arg2[%c0_2, %c0_3, %c0_4] : memref<3x16x32xbf16, #tpu.memory_space<vmem>>, vector<1x16x32xbf16>
    %3 = vector.shape_cast %2 : vector<1x16x32xbf16> to vector<16x32xbf16>
    %cst = arith.constant dense<0.000000e+00> : vector<80x32xf32>
    %4 = tpu.matmul %1, %3, %cst {dimension_numbers = #tpu.dot_dimension_numbers<[1], [0], [0], [1], [0, 0, 1, 1], [], []>} : vector<80x16xbf16>, vector<16x32xbf16>, vector<80x32xf32> -> vector<80x32xf32>
    %c0_5 = arith.constant 0 : index
    %c0_6 = arith.constant 0 : index
    %c0_7 = arith.constant 0 : index
    %5 = vector.load %arg4[%c0_5, %c0_6, %c0_7] : memref<3x1x32xf32, #tpu.memory_space<vmem>>, vector<1x1x32xf32>
    %6 = vector.shape_cast %5 : vector<1x1x32xf32> to vector<1x32xf32>
    %7 = vector.broadcast %6 : vector<1x32xf32> to vector<80x32xf32>
    %8 = arith.addf %4, %7 : vector<80x32xf32>
    %9 = vector.shape_cast %8 : vector<80x32xf32> to vector<10x8x32xf32>
    %c0_8 = arith.constant 0 : index
    %c0_9 = arith.constant 0 : index
    %c0_10 = arith.constant 0 : index
    %10 = vector.load %arg13[%c0_8, %c0_9, %c0_10] : memref<10x8x32xf32, #tpu.memory_space<vmem>>, vector<10x8x32xf32>
    tpu.vector_store %arg13[%c0_8, %c0_9, %c0_10], %9 {strides = array<i32>} : memref<10x8x32xf32, #tpu.memory_space<vmem>>, vector<10x8x32xf32>,
    %c1 = arith.constant 1 : index
    %c0_11 = arith.constant 0 : index
    %c0_12 = arith.constant 0 : index
    %11 = vector.load %arg2[%c1, %c0_11, %c0_12] : memref<3x16x32xbf16, #tpu.memory_space<vmem>>, vector<1x16x32xbf16>
    %12 = vector.shape_cast %11 : vector<1x16x32xbf16> to vector<16x32xbf16>
    %cst_13 = arith.constant dense<0.000000e+00> : vector<80x32xf32>
    %13 = tpu.matmul %1, %12, %cst_13 {dimension_numbers = #tpu.dot_dimension_numbers<[1], [0], [0], [1], [0, 0, 1, 1], [], []>} : vector<80x16xbf16>, vector<16x32xbf16>, vector<80x32xf32> -> vector<80x32xf32>
    %c1_14 = arith.constant 1 : index
    %c0_15 = arith.constant 0 : index
    %c0_16 = arith.constant 0 : index
    %14 = vector.load %arg4[%c1_14, %c0_15, %c0_16] : memref<3x1x32xf32, #tpu.memory_space<vmem>>, vector<1x1x32xf32>
    %15 = vector.shape_cast %14 : vector<1x1x32xf32> to vector<1x32xf32>
    %16 = vector.broadcast %15 : vector<1x32xf32> to vector<80x32xf32>
    %17 = arith.addf %13, %16 : vector<80x32xf32>
    %18 = vector.shape_cast %17 : vector<80x32xf32> to vector<10x8x32xf32>
    %c0_17 = arith.constant 0 : index
    %c0_18 = arith.constant 0 : index
    %c0_19 = arith.constant 0 : index
    %19 = vector.load %arg14[%c0_17, %c0_18, %c0_19] : memref<10x8x32xf32, #tpu.memory_space<vmem>>, vector<10x8x32xf32>
    tpu.vector_store %arg14[%c0_17, %c0_18, %c0_19], %18 {strides = array<i32>} : memref<10x8x32xf32, #tpu.memory_space<vmem>>, vector<10x8x32xf32>,
    %c2 = arith.constant 2 : index
    %c0_20 = arith.constant 0 : index
    %c0_21 = arith.constant 0 : index
    %20 = vector.load %arg2[%c2, %c0_20, %c0_21] : memref<3x16x32xbf16, #tpu.memory_space<vmem>>, vector<1x16x32xbf16>
    %21 = vector.shape_cast %20 : vector<1x16x32xbf16> to vector<16x32xbf16>
    %cst_22 = arith.constant dense<0.000000e+00> : vector<80x32xf32>
    %22 = tpu.matmul %1, %21, %cst_22 {dimension_numbers = #tpu.dot_dimension_numbers<[1], [0], [0], [1], [0, 0, 1, 1], [], []>} : vector<80x16xbf16>, vector<16x32xbf16>, vector<80x32xf32> -> vector<80x32xf32>
    %c2_23 = arith.constant 2 : index
    %c0_24 = arith.constant 0 : index
    %c0_25 = arith.constant 0 : index
    %23 = vector.load %arg4[%c2_23, %c0_24, %c0_25] : memref<3x1x32xf32, #tpu.memory_space<vmem>>, vector<1x1x32xf32>
    %24 = vector.shape_cast %23 : vector<1x1x32xf32> to vector<1x32xf32>
    %25 = vector.broadcast %24 : vector<1x32xf32> to vector<80x32xf32>
    %26 = arith.addf %22, %25 : vector<80x32xf32>
    %27 = vector.shape_cast %26 : vector<80x32xf32> to vector<10x8x32xf32>
    %c0_26 = arith.constant 0 : index
    %c0_27 = arith.constant 0 : index
    %c0_28 = arith.constant 0 : index
    %28 = vector.load %arg15[%c0_26, %c0_27, %c0_28] : memref<10x8x32xf32, #tpu.memory_space<vmem>>, vector<10x8x32xf32>
    tpu.vector_store %arg15[%c0_26, %c0_27, %c0_28], %27 {strides = array<i32>} : memref<10x8x32xf32, #tpu.memory_space<vmem>>, vector<10x8x32xf32>,
    %c0_29 = arith.constant 0 : index
    %c0_30 = arith.constant 0 : index
    %c0_31 = arith.constant 0 : index
    %29 = vector.load %arg3[%c0_29, %c0_30, %c0_31] : memref<3x32x32xbf16, #tpu.memory_space<vmem>>, vector<1x32x32xbf16>
    %30 = vector.shape_cast %29 : vector<1x32x32xbf16> to vector<32x32xbf16>
    %c1_32 = arith.constant 1 : index
    %c0_33 = arith.constant 0 : index
    %c0_34 = arith.constant 0 : index
    %31 = vector.load %arg3[%c1_32, %c0_33, %c0_34] : memref<3x32x32xbf16, #tpu.memory_space<vmem>>, vector<1x32x32xbf16>
    %32 = vector.shape_cast %31 : vector<1x32x32xbf16> to vector<32x32xbf16>
    %c2_35 = arith.constant 2 : index
    %c0_36 = arith.constant 0 : index
    %c0_37 = arith.constant 0 : index
    %33 = vector.load %arg3[%c2_35, %c0_36, %c0_37] : memref<3x32x32xbf16, #tpu.memory_space<vmem>>, vector<1x32x32xbf16>
    %34 = vector.shape_cast %33 : vector<1x32x32xbf16> to vector<32x32xbf16>
    %c0_38 = arith.constant 0 : index
    %c0_39 = arith.constant 0 : index
    %c0_40 = arith.constant 0 : index
    %35 = vector.load %arg5[%c0_38, %c0_39, %c0_40] : memref<3x1x32xf32, #tpu.memory_space<vmem>>, vector<1x1x32xf32>
    %36 = vector.shape_cast %35 : vector<1x1x32xf32> to vector<1x32xf32>
    %c1_41 = arith.constant 1 : index
    %c0_42 = arith.constant 0 : index
    %c0_43 = arith.constant 0 : index
    %37 = vector.load %arg5[%c1_41, %c0_42, %c0_43] : memref<3x1x32xf32, #tpu.memory_space<vmem>>, vector<1x1x32xf32>
    %38 = vector.shape_cast %37 : vector<1x1x32xf32> to vector<1x32xf32>
    %c2_44 = arith.constant 2 : index
    %c0_45 = arith.constant 0 : index
    %c0_46 = arith.constant 0 : index
    %39 = vector.load %arg5[%c2_44, %c0_45, %c0_46] : memref<3x1x32xf32, #tpu.memory_space<vmem>>, vector<1x1x32xf32>
    %40 = vector.shape_cast %39 : vector<1x1x32xf32> to vector<1x32xf32>
    %c0_47 = arith.constant 0 : index
    %c0_48 = arith.constant 0 : index
    %c0_49 = arith.constant 0 : index
    %41 = vector.load %arg6[%c0_47, %c0_48, %c0_49] : memref<1x8x1xi32, #tpu.memory_space<vmem>>, vector<1x8x1xi32>
    %42 = vector.shape_cast %41 : vector<1x8x1xi32> to vector<8x1xi32>
    %cst_50 = arith.constant 0.000000e+00 : f32
    %43 = vector.broadcast %cst_50 : f32 to vector<8x32xf32>
    %c0_i32 = arith.constant 0 : i32
    %44 = arith.truncf %43 : vector<8x32xf32> to vector<8x32xbf16>
    %cst_51 = arith.constant dense<0.000000e+00> : vector<8x32xf32>
    %45 = tpu.matmul %44, %30, %cst_51 {dimension_numbers = #tpu.dot_dimension_numbers<[1], [0], [0], [1], [0, 0, 1, 1], [], []>} : vector<8x32xbf16>, vector<32x32xbf16>, vector<8x32xf32> -> vector<8x32xf32>
    %46 = vector.broadcast %36 : vector<1x32xf32> to vector<8x32xf32>
    %47 = arith.addf %45, %46 : vector<8x32xf32>
    %cst_52 = arith.constant dense<0.000000e+00> : vector<8x32xf32>
    %48 = tpu.matmul %44, %32, %cst_52 {dimension_numbers = #tpu.dot_dimension_numbers<[1], [0], [0], [1], [0, 0, 1, 1], [], []>} : vector<8x32xbf16>, vector<32x32xbf16>, vector<8x32xf32> -> vector<8x32xf32>
    %49 = vector.broadcast %38 : vector<1x32xf32> to vector<8x32xf32>
    %50 = arith.addf %48, %49 : vector<8x32xf32>
    %cst_53 = arith.constant dense<0.000000e+00> : vector<8x32xf32>
    %51 = tpu.matmul %44, %34, %cst_53 {dimension_numbers = #tpu.dot_dimension_numbers<[1], [0], [0], [1], [0, 0, 1, 1], [], []>} : vector<8x32xbf16>, vector<32x32xbf16>, vector<8x32xf32> -> vector<8x32xf32>
    %52 = vector.broadcast %40 : vector<1x32xf32> to vector<8x32xf32>
    %53 = arith.addf %51, %52 : vector<8x32xf32>
    %54 = arith.index_cast %c0_i32 : i32 to index
    %c0_54 = arith.constant 0 : index
    %c0_55 = arith.constant 0 : index
    %55 = vector.load %arg13[%54, %c0_54, %c0_55] : memref<10x8x32xf32, #tpu.memory_space<vmem>>, vector<1x8x32xf32>
    %56 = vector.shape_cast %55 : vector<1x8x32xf32> to vector<8x32xf32>
    %57 = arith.addf %56, %47 : vector<8x32xf32>
    %58 = arith.negf %57 : vector<8x32xf32>
    %59 = math.exp %58 : vector<8x32xf32>
    %cst_56 = arith.constant 1.000000e+00 : f32
    %60 = vector.broadcast %cst_56 : f32 to vector<8x32xf32>
    %61 = arith.addf %60, %59 : vector<8x32xf32>
    %62 = arith.divf %60, %61 : vector<8x32xf32>
    %63 = arith.index_cast %c0_i32 : i32 to index
    %c0_57 = arith.constant 0 : index
    %c0_58 = arith.constant 0 : index
    %64 = vector.load %arg14[%63, %c0_57, %c0_58] : memref<10x8x32xf32, #tpu.memory_space<vmem>>, vector<1x8x32xf32>
    %65 = vector.shape_cast %64 : vector<1x8x32xf32> to vector<8x32xf32>
    %66 = arith.addf %65, %50 : vector<8x32xf32>
    %67 = arith.negf %66 : vector<8x32xf32>
    %68 = math.exp %67 : vector<8x32xf32>
    %cst_59 = arith.constant 1.000000e+00 : f32
    %69 = vector.broadcast %cst_59 : f32 to vector<8x32xf32>
    %70 = arith.addf %69, %68 : vector<8x32xf32>
    %71 = arith.divf %69, %70 : vector<8x32xf32>
    %72 = arith.index_cast %c0_i32 : i32 to index
    %c0_60 = arith.constant 0 : index
    %c0_61 = arith.constant 0 : index
    %73 = vector.load %arg15[%72, %c0_60, %c0_61] : memref<10x8x32xf32, #tpu.memory_space<vmem>>, vector<1x8x32xf32>
    %74 = vector.shape_cast %73 : vector<1x8x32xf32> to vector<8x32xf32>
    %75 = arith.mulf %62, %53 : vector<8x32xf32>
    %76 = arith.addf %74, %75 : vector<8x32xf32>
    %77 = math.tanh %76 : vector<8x32xf32>
    %cst_62 = arith.constant 1.000000e+00 : f32
    %78 = vector.broadcast %cst_62 : f32 to vector<8x32xf32>
    %79 = arith.subf %78, %71 : vector<8x32xf32>
    %80 = arith.mulf %79, %77 : vector<8x32xf32>
    %81 = arith.mulf %71, %43 : vector<8x32xf32>
    %82 = arith.addf %80, %81 : vector<8x32xf32>
    %83 = vector.broadcast %c0_i32 : i32 to vector<8x1xi32>
    %84 = arith.cmpi slt, %83, %42 : vector<8x1xi32>
    %85 = vector.shape_cast %84 : vector<8x1xi1> to vector<8x1xi1>
    %86 = vector.broadcast %85 : vector<8x1xi1> to vector<8x32xi1>
    %87 = arith.select %86, %82, %43 : vector<8x32xi1>, vector<8x32xf32>
    %c1_i32 = arith.constant 1 : i32
    %88 = arith.truncf %87 : vector<8x32xf32> to vector<8x32xbf16>
    %cst_63 = arith.constant dense<0.000000e+00> : vector<8x32xf32>
    %89 = tpu.matmul %88, %30, %cst_63 {dimension_numbers = #tpu.dot_dimension_numbers<[1], [0], [0], [1], [0, 0, 1, 1], [], []>} : vector<8x32xbf16>, vector<32x32xbf16>, vector<8x32xf32> -> vector<8x32xf32>
    %90 = vector.broadcast %36 : vector<1x32xf32> to vector<8x32xf32>
    %91 = arith.addf %89, %90 : vector<8x32xf32>
    %cst_64 = arith.constant dense<0.000000e+00> : vector<8x32xf32>
    %92 = tpu.matmul %88, %32, %cst_64 {dimension_numbers = #tpu.dot_dimension_numbers<[1], [0], [0], [1], [0, 0, 1, 1], [], []>} : vector<8x32xbf16>, vector<32x32xbf16>, vector<8x32xf32> -> vector<8x32xf32>
    %93 = vector.broadcast %38 : vector<1x32xf32> to vector<8x32xf32>
    %94 = arith.addf %92, %93 : vector<8x32xf32>
    %cst_65 = arith.constant dense<0.000000e+00> : vector<8x32xf32>
    %95 = tpu.matmul %88, %34, %cst_65 {dimension_numbers = #tpu.dot_dimension_numbers<[1], [0], [0], [1], [0, 0, 1, 1], [], []>} : vector<8x32xbf16>, vector<32x32xbf16>, vector<8x32xf32> -> vector<8x32xf32>
    %96 = vector.broadcast %40 : vector<1x32xf32> to vector<8x32xf32>
    %97 = arith.addf %95, %96 : vector<8x32xf32>
    %98 = arith.index_cast %c1_i32 : i32 to index
    %c0_66 = arith.constant 0 : index
    %c0_67 = arith.constant 0 : index
    %99 = vector.load %arg13[%98, %c0_66, %c0_67] : memref<10x8x32xf32, #tpu.memory_space<vmem>>, vector<1x8x32xf32>
    %100 = vector.shape_cast %99 : vector<1x8x32xf32> to vector<8x32xf32>
    %101 = arith.addf %100, %91 : vector<8x32xf32>
    %102 = arith.negf %101 : vector<8x32xf32>
    %103 = math.exp %102 : vector<8x32xf32>
    %cst_68 = arith.constant 1.000000e+00 : f32
    %104 = vector.broadcast %cst_68 : f32 to vector<8x32xf32>
    %105 = arith.addf %104, %103 : vector<8x32xf32>
    %106 = arith.divf %104, %105 : vector<8x32xf32>
    %107 = arith.index_cast %c1_i32 : i32 to index
    %c0_69 = arith.constant 0 : index
    %c0_70 = arith.constant 0 : index
    %108 = vector.load %arg14[%107, %c0_69, %c0_70] : memref<10x8x32xf32, #tpu.memory_space<vmem>>, vector<1x8x32xf32>
    %109 = vector.shape_cast %108 : vector<1x8x32xf32> to vector<8x32xf32>
    %110 = arith.addf %109, %94 : vector<8x32xf32>
    %111 = arith.negf %110 : vector<8x32xf32>
    %112 = math.exp %111 : vector<8x32xf32>
    %cst_71 = arith.constant 1.000000e+00 : f32
    %113 = vector.broadcast %cst_71 : f32 to vector<8x32xf32>
    %114 = arith.addf %113, %112 : vector<8x32xf32>
    %115 = arith.divf %113, %114 : vector<8x32xf32>
    %116 = arith.index_cast %c1_i32 : i32 to index
    %c0_72 = arith.constant 0 : index
    %c0_73 = arith.constant 0 : index
    %117 = vector.load %arg15[%116, %c0_72, %c0_73] : memref<10x8x32xf32, #tpu.memory_space<vmem>>, vector<1x8x32xf32>
    %118 = vector.shape_cast %117 : vector<1x8x32xf32> to vector<8x32xf32>
    %119 = arith.mulf %106, %97 : vector<8x32xf32>
    %120 = arith.addf %118, %119 : vector<8x32xf32>
    %121 = math.tanh %120 : vector<8x32xf32>
    %cst_74 = arith.constant 1.000000e+00 : f32
    %122 = vector.broadcast %cst_74 : f32 to vector<8x32xf32>
    %123 = arith.subf %122, %115 : vector<8x32xf32>
    %124 = arith.mulf %123, %121 : vector<8x32xf32>
    %125 = arith.mulf %115, %87 : vector<8x32xf32>
    %126 = arith.addf %124, %125 : vector<8x32xf32>
    %127 = vector.broadcast %c1_i32 : i32 to vector<8x1xi32>
    %128 = arith.cmpi slt, %127, %42 : vector<8x1xi32>
    %129 = vector.shape_cast %128 : vector<8x1xi1> to vector<8x1xi1>
    %130 = vector.broadcast %129 : vector<8x1xi1> to vector<8x32xi1>
    %131 = arith.select %130, %126, %87 : vector<8x32xi1>, vector<8x32xf32>
    %c2_i32 = arith.constant 2 : i32
    %132 = arith.truncf %131 : vector<8x32xf32> to vector<8x32xbf16>
    %cst_75 = arith.constant dense<0.000000e+00> : vector<8x32xf32>
    %133 = tpu.matmul %132, %30, %cst_75 {dimension_numbers = #tpu.dot_dimension_numbers<[1], [0], [0], [1], [0, 0, 1, 1], [], []>} : vector<8x32xbf16>, vector<32x32xbf16>, vector<8x32xf32> -> vector<8x32xf32>
    %134 = vector.broadcast %36 : vector<1x32xf32> to vector<8x32xf32>
    %135 = arith.addf %133, %134 : vector<8x32xf32>
    %cst_76 = arith.constant dense<0.000000e+00> : vector<8x32xf32>
    %136 = tpu.matmul %132, %32, %cst_76 {dimension_numbers = #tpu.dot_dimension_numbers<[1], [0], [0], [1], [0, 0, 1, 1], [], []>} : vector<8x32xbf16>, vector<32x32xbf16>, vector<8x32xf32> -> vector<8x32xf32>
    %137 = vector.broadcast %38 : vector<1x32xf32> to vector<8x32xf32>
    %138 = arith.addf %136, %137 : vector<8x32xf32>
    %cst_77 = arith.constant dense<0.000000e+00> : vector<8x32xf32>
    %139 = tpu.matmul %132, %34, %cst_77 {dimension_numbers = #tpu.dot_dimension_numbers<[1], [0], [0], [1], [0, 0, 1, 1], [], []>} : vector<8x32xbf16>, vector<32x32xbf16>, vector<8x32xf32> -> vector<8x32xf32>
    %140 = vector.broadcast %40 : vector<1x32xf32> to vector<8x32xf32>
    %141 = arith.addf %139, %140 : vector<8x32xf32>
    %142 = arith.index_cast %c2_i32 : i32 to index
    %c0_78 = arith.constant 0 : index
    %c0_79 = arith.constant 0 : index
    %143 = vector.load %arg13[%142, %c0_78, %c0_79] : memref<10x8x32xf32, #tpu.memory_space<vmem>>, vector<1x8x32xf32>
    %144 = vector.shape_cast %143 : vector<1x8x32xf32> to vector<8x32xf32>
    %145 = arith.addf %144, %135 : vector<8x32xf32>
    %146 = arith.negf %145 : vector<8x32xf32>
    %147 = math.exp %146 : vector<8x32xf32>
    %cst_80 = arith.constant 1.000000e+00 : f32
    %148 = vector.broadcast %cst_80 : f32 to vector<8x32xf32>
    %149 = arith.addf %148, %147 : vector<8x32xf32>
    %150 = arith.divf %148, %149 : vector<8x32xf32>
    %151 = arith.index_cast %c2_i32 : i32 to index
    %c0_81 = arith.constant 0 : index
    %c0_82 = arith.constant 0 : index
    %152 = vector.load %arg14[%151, %c0_81, %c0_82] : memref<10x8x32xf32, #tpu.memory_space<vmem>>, vector<1x8x32xf32>
    %153 = vector.shape_cast %152 : vector<1x8x32xf32> to vector<8x32xf32>
    %154 = arith.addf %153, %138 : vector<8x32xf32>
    %155 = arith.negf %154 : vector<8x32xf32>
    %156 = math.exp %155 : vector<8x32xf32>
    %cst_83 = arith.constant 1.000000e+00 : f32
    %157 = vector.broadcast %cst_83 : f32 to vector<8x32xf32>
    %158 = arith.addf %157, %156 : vector<8x32xf32>
    %159 = arith.divf %157, %158 : vector<8x32xf32>
    %160 = arith.index_cast %c2_i32 : i32 to index
    %c0_84 = arith.constant 0 : index
    %c0_85 = arith.constant 0 : index
    %161 = vector.load %arg15[%160, %c0_84, %c0_85] : memref<10x8x32xf32, #tpu.memory_space<vmem>>, vector<1x8x32xf32>
    %162 = vector.shape_cast %161 : vector<1x8x32xf32> to vector<8x32xf32>
    %163 = arith.mulf %150, %141 : vector<8x32xf32>
    %164 = arith.addf %162, %163 : vector<8x32xf32>
    %165 = math.tanh %164 : vector<8x32xf32>
    %cst_86 = arith.constant 1.000000e+00 : f32
    %166 = vector.broadcast %cst_86 : f32 to vector<8x32xf32>
    %167 = arith.subf %166, %159 : vector<8x32xf32>
    %168 = arith.mulf %167, %165 : vector<8x32xf32>
    %169 = arith.mulf %159, %131 : vector<8x32xf32>
    %170 = arith.addf %168, %169 : vector<8x32xf32>
    %171 = vector.broadcast %c2_i32 : i32 to vector<8x1xi32>
    %172 = arith.cmpi slt, %171, %42 : vector<8x1xi32>
    %173 = vector.shape_cast %172 : vector<8x1xi1> to vector<8x1xi1>
    %174 = vector.broadcast %173 : vector<8x1xi1> to vector<8x32xi1>
    %175 = arith.select %174, %170, %131 : vector<8x32xi1>, vector<8x32xf32>
    %c3_i32 = arith.constant 3 : i32
    %176 = arith.truncf %175 : vector<8x32xf32> to vector<8x32xbf16>
    %cst_87 = arith.constant dense<0.000000e+00> : vector<8x32xf32>
    %177 = tpu.matmul %176, %30, %cst_87 {dimension_numbers = #tpu.dot_dimension_numbers<[1], [0], [0], [1], [0, 0, 1, 1], [], []>} : vector<8x32xbf16>, vector<32x32xbf16>, vector<8x32xf32> -> vector<8x32xf32>
    %178 = vector.broadcast %36 : vector<1x32xf32> to vector<8x32xf32>
    %179 = arith.addf %177, %178 : vector<8x32xf32>
    %cst_88 = arith.constant dense<0.000000e+00> : vector<8x32xf32>
    %180 = tpu.matmul %176, %32, %cst_88 {dimension_numbers = #tpu.dot_dimension_numbers<[1], [0], [0], [1], [0, 0, 1, 1], [], []>} : vector<8x32xbf16>, vector<32x32xbf16>, vector<8x32xf32> -> vector<8x32xf32>
    %181 = vector.broadcast %38 : vector<1x32xf32> to vector<8x32xf32>
    %182 = arith.addf %180, %181 : vector<8x32xf32>
    %cst_89 = arith.constant dense<0.000000e+00> : vector<8x32xf32>
    %183 = tpu.matmul %176, %34, %cst_89 {dimension_numbers = #tpu.dot_dimension_numbers<[1], [0], [0], [1], [0, 0, 1, 1], [], []>} : vector<8x32xbf16>, vector<32x32xbf16>, vector<8x32xf32> -> vector<8x32xf32>
    %184 = vector.broadcast %40 : vector<1x32xf32> to vector<8x32xf32>
    %185 = arith.addf %183, %184 : vector<8x32xf32>
    %186 = arith.index_cast %c3_i32 : i32 to index
    %c0_90 = arith.constant 0 : index
    %c0_91 = arith.constant 0 : index
    %187 = vector.load %arg13[%186, %c0_90, %c0_91] : memref<10x8x32xf32, #tpu.memory_space<vmem>>, vector<1x8x32xf32>
    %188 = vector.shape_cast %187 : vector<1x8x32xf32> to vector<8x32xf32>
    %189 = arith.addf %188, %179 : vector<8x32xf32>
    %190 = arith.negf %189 : vector<8x32xf32>
    %191 = math.exp %190 : vector<8x32xf32>
    %cst_92 = arith.constant 1.000000e+00 : f32
    %192 = vector.broadcast %cst_92 : f32 to vector<8x32xf32>
    %193 = arith.addf %192, %191 : vector<8x32xf32>
    %194 = arith.divf %192, %193 : vector<8x32xf32>
    %195 = arith.index_cast %c3_i32 : i32 to index
    %c0_93 = arith.constant 0 : index
    %c0_94 = arith.constant 0 : index
    %196 = vector.load %arg14[%195, %c0_93, %c0_94] : memref<10x8x32xf32, #tpu.memory_space<vmem>>, vector<1x8x32xf32>
    %197 = vector.shape_cast %196 : vector<1x8x32xf32> to vector<8x32xf32>
    %198 = arith.addf %197, %182 : vector<8x32xf32>
    %199 = arith.negf %198 : vector<8x32xf32>
    %200 = math.exp %199 : vector<8x32xf32>
    %cst_95 = arith.constant 1.000000e+00 : f32
    %201 = vector.broadcast %cst_95 : f32 to vector<8x32xf32>
    %202 = arith.addf %201, %200 : vector<8x32xf32>
    %203 = arith.divf %201, %202 : vector<8x32xf32>
    %204 = arith.index_cast %c3_i32 : i32 to index
    %c0_96 = arith.constant 0 : index
    %c0_97 = arith.constant 0 : index
    %205 = vector.load %arg15[%204, %c0_96, %c0_97] : memref<10x8x32xf32, #tpu.memory_space<vmem>>, vector<1x8x32xf32>
    %206 = vector.shape_cast %205 : vector<1x8x32xf32> to vector<8x32xf32>
    %207 = arith.mulf %194, %185 : vector<8x32xf32>
    %208 = arith.addf %206, %207 : vector<8x32xf32>
    %209 = math.tanh %208 : vector<8x32xf32>
    %cst_98 = arith.constant 1.000000e+00 : f32
    %210 = vector.broadcast %cst_98 : f32 to vector<8x32xf32>
    %211 = arith.subf %210, %203 : vector<8x32xf32>
    %212 = arith.mulf %211, %209 : vector<8x32xf32>
    %213 = arith.mulf %203, %175 : vector<8x32xf32>
    %214 = arith.addf %212, %213 : vector<8x32xf32>
    %215 = vector.broadcast %c3_i32 : i32 to vector<8x1xi32>
    %216 = arith.cmpi slt, %215, %42 : vector<8x1xi32>
    %217 = vector.shape_cast %216 : vector<8x1xi1> to vector<8x1xi1>
    %218 = vector.broadcast %217 : vector<8x1xi1> to vector<8x32xi1>
    %219 = arith.select %218, %214, %175 : vector<8x32xi1>, vector<8x32xf32>
    %c4_i32 = arith.constant 4 : i32
    %220 = arith.truncf %219 : vector<8x32xf32> to vector<8x32xbf16>
    %cst_99 = arith.constant dense<0.000000e+00> : vector<8x32xf32>
    %221 = tpu.matmul %220, %30, %cst_99 {dimension_numbers = #tpu.dot_dimension_numbers<[1], [0], [0], [1], [0, 0, 1, 1], [], []>} : vector<8x32xbf16>, vector<32x32xbf16>, vector<8x32xf32> -> vector<8x32xf32>
    %222 = vector.broadcast %36 : vector<1x32xf32> to vector<8x32xf32>
    %223 = arith.addf %221, %222 : vector<8x32xf32>
    %cst_100 = arith.constant dense<0.000000e+00> : vector<8x32xf32>
    %224 = tpu.matmul %220, %32, %cst_100 {dimension_numbers = #tpu.dot_dimension_numbers<[1], [0], [0], [1], [0, 0, 1, 1], [], []>} : vector<8x32xbf16>, vector<32x32xbf16>, vector<8x32xf32> -> vector<8x32xf32>
    %225 = vector.broadcast %38 : vector<1x32xf32> to vector<8x32xf32>
    %226 = arith.addf %224, %225 : vector<8x32xf32>
    %cst_101 = arith.constant dense<0.000000e+00> : vector<8x32xf32>
    %227 = tpu.matmul %220, %34, %cst_101 {dimension_numbers = #tpu.dot_dimension_numbers<[1], [0], [0], [1], [0, 0, 1, 1], [], []>} : vector<8x32xbf16>, vector<32x32xbf16>, vector<8x32xf32> -> vector<8x32xf32>
    %228 = vector.broadcast %40 : vector<1x32xf32> to vector<8x32xf32>
    %229 = arith.addf %227, %228 : vector<8x32xf32>
    %230 = arith.index_cast %c4_i32 : i32 to index
    %c0_102 = arith.constant 0 : index
    %c0_103 = arith.constant 0 : index
    %231 = vector.load %arg13[%230, %c0_102, %c0_103] : memref<10x8x32xf32, #tpu.memory_space<vmem>>, vector<1x8x32xf32>
    %232 = vector.shape_cast %231 : vector<1x8x32xf32> to vector<8x32xf32>
    %233 = arith.addf %232, %223 : vector<8x32xf32>
    %234 = arith.negf %233 : vector<8x32xf32>
    %235 = math.exp %234 : vector<8x32xf32>
    %cst_104 = arith.constant 1.000000e+00 : f32
    %236 = vector.broadcast %cst_104 : f32 to vector<8x32xf32>
    %237 = arith.addf %236, %235 : vector<8x32xf32>
    %238 = arith.divf %236, %237 : vector<8x32xf32>
    %239 = arith.index_cast %c4_i32 : i32 to index
    %c0_105 = arith.constant 0 : index
    %c0_106 = arith.constant 0 : index
    %240 = vector.load %arg14[%239, %c0_105, %c0_106] : memref<10x8x32xf32, #tpu.memory_space<vmem>>, vector<1x8x32xf32>
    %241 = vector.shape_cast %240 : vector<1x8x32xf32> to vector<8x32xf32>
    %242 = arith.addf %241, %226 : vector<8x32xf32>
    %243 = arith.negf %242 : vector<8x32xf32>
    %244 = math.exp %243 : vector<8x32xf32>
    %cst_107 = arith.constant 1.000000e+00 : f32
    %245 = vector.broadcast %cst_107 : f32 to vector<8x32xf32>
    %246 = arith.addf %245, %244 : vector<8x32xf32>
    %247 = arith.divf %245, %246 : vector<8x32xf32>
    %248 = arith.index_cast %c4_i32 : i32 to index
    %c0_108 = arith.constant 0 : index
    %c0_109 = arith.constant 0 : index
    %249 = vector.load %arg15[%248, %c0_108, %c0_109] : memref<10x8x32xf32, #tpu.memory_space<vmem>>, vector<1x8x32xf32>
    %250 = vector.shape_cast %249 : vector<1x8x32xf32> to vector<8x32xf32>
    %251 = arith.mulf %238, %229 : vector<8x32xf32>
    %252 = arith.addf %250, %251 : vector<8x32xf32>
    %253 = math.tanh %252 : vector<8x32xf32>
    %cst_110 = arith.constant 1.000000e+00 : f32
    %254 = vector.broadcast %cst_110 : f32 to vector<8x32xf32>
    %255 = arith.subf %254, %247 : vector<8x32xf32>
    %256 = arith.mulf %255, %253 : vector<8x32xf32>
    %257 = arith.mulf %247, %219 : vector<8x32xf32>
    %258 = arith.addf %256, %257 : vector<8x32xf32>
    %259 = vector.broadcast %c4_i32 : i32 to vector<8x1xi32>
    %260 = arith.cmpi slt, %259, %42 : vector<8x1xi32>
    %261 = vector.shape_cast %260 : vector<8x1xi1> to vector<8x1xi1>
    %262 = vector.broadcast %261 : vector<8x1xi1> to vector<8x32xi1>
    %263 = arith.select %262, %258, %219 : vector<8x32xi1>, vector<8x32xf32>
    %c5_i32 = arith.constant 5 : i32
    %264 = arith.truncf %263 : vector<8x32xf32> to vector<8x32xbf16>
    %cst_111 = arith.constant dense<0.000000e+00> : vector<8x32xf32>
    %265 = tpu.matmul %264, %30, %cst_111 {dimension_numbers = #tpu.dot_dimension_numbers<[1], [0], [0], [1], [0, 0, 1, 1], [], []>} : vector<8x32xbf16>, vector<32x32xbf16>, vector<8x32xf32> -> vector<8x32xf32>
    %266 = vector.broadcast %36 : vector<1x32xf32> to vector<8x32xf32>
    %267 = arith.addf %265, %266 : vector<8x32xf32>
    %cst_112 = arith.constant dense<0.000000e+00> : vector<8x32xf32>
    %268 = tpu.matmul %264, %32, %cst_112 {dimension_numbers = #tpu.dot_dimension_numbers<[1], [0], [0], [1], [0, 0, 1, 1], [], []>} : vector<8x32xbf16>, vector<32x32xbf16>, vector<8x32xf32> -> vector<8x32xf32>
    %269 = vector.broadcast %38 : vector<1x32xf32> to vector<8x32xf32>
    %270 = arith.addf %268, %269 : vector<8x32xf32>
    %cst_113 = arith.constant dense<0.000000e+00> : vector<8x32xf32>
    %271 = tpu.matmul %264, %34, %cst_113 {dimension_numbers = #tpu.dot_dimension_numbers<[1], [0], [0], [1], [0, 0, 1, 1], [], []>} : vector<8x32xbf16>, vector<32x32xbf16>, vector<8x32xf32> -> vector<8x32xf32>
    %272 = vector.broadcast %40 : vector<1x32xf32> to vector<8x32xf32>
    %273 = arith.addf %271, %272 : vector<8x32xf32>
    %274 = arith.index_cast %c5_i32 : i32 to index
    %c0_114 = arith.constant 0 : index
    %c0_115 = arith.constant 0 : index
    %275 = vector.load %arg13[%274, %c0_114, %c0_115] : memref<10x8x32xf32, #tpu.memory_space<vmem>>, vector<1x8x32xf32>
    %276 = vector.shape_cast %275 : vector<1x8x32xf32> to vector<8x32xf32>
    %277 = arith.addf %276, %267 : vector<8x32xf32>
    %278 = arith.negf %277 : vector<8x32xf32>
    %279 = math.exp %278 : vector<8x32xf32>
    %cst_116 = arith.constant 1.000000e+00 : f32
    %280 = vector.broadcast %cst_116 : f32 to vector<8x32xf32>
    %281 = arith.addf %280, %279 : vector<8x32xf32>
    %282 = arith.divf %280, %281 : vector<8x32xf32>
    %283 = arith.index_cast %c5_i32 : i32 to index
    %c0_117 = arith.constant 0 : index
    %c0_118 = arith.constant 0 : index
    %284 = vector.load %arg14[%283, %c0_117, %c0_118] : memref<10x8x32xf32, #tpu.memory_space<vmem>>, vector<1x8x32xf32>
    %285 = vector.shape_cast %284 : vector<1x8x32xf32> to vector<8x32xf32>
    %286 = arith.addf %285, %270 : vector<8x32xf32>
    %287 = arith.negf %286 : vector<8x32xf32>
    %288 = math.exp %287 : vector<8x32xf32>
    %cst_119 = arith.constant 1.000000e+00 : f32
    %289 = vector.broadcast %cst_119 : f32 to vector<8x32xf32>
    %290 = arith.addf %289, %288 : vector<8x32xf32>
    %291 = arith.divf %289, %290 : vector<8x32xf32>
    %292 = arith.index_cast %c5_i32 : i32 to index
    %c0_120 = arith.constant 0 : index
    %c0_121 = arith.constant 0 : index
    %293 = vector.load %arg15[%292, %c0_120, %c0_121] : memref<10x8x32xf32, #tpu.memory_space<vmem>>, vector<1x8x32xf32>
    %294 = vector.shape_cast %293 : vector<1x8x32xf32> to vector<8x32xf32>
    %295 = arith.mulf %282, %273 : vector<8x32xf32>
    %296 = arith.addf %294, %295 : vector<8x32xf32>
    %297 = math.tanh %296 : vector<8x32xf32>
    %cst_122 = arith.constant 1.000000e+00 : f32
    %298 = vector.broadcast %cst_122 : f32 to vector<8x32xf32>
    %299 = arith.subf %298, %291 : vector<8x32xf32>
    %300 = arith.mulf %299, %297 : vector<8x32xf32>
    %301 = arith.mulf %291, %263 : vector<8x32xf32>
    %302 = arith.addf %300, %301 : vector<8x32xf32>
    %303 = vector.broadcast %c5_i32 : i32 to vector<8x1xi32>
    %304 = arith.cmpi slt, %303, %42 : vector<8x1xi32>
    %305 = vector.shape_cast %304 : vector<8x1xi1> to vector<8x1xi1>
    %306 = vector.broadcast %305 : vector<8x1xi1> to vector<8x32xi1>
    %307 = arith.select %306, %302, %263 : vector<8x32xi1>, vector<8x32xf32>
    %c6_i32 = arith.constant 6 : i32
    %308 = arith.truncf %307 : vector<8x32xf32> to vector<8x32xbf16>
    %cst_123 = arith.constant dense<0.000000e+00> : vector<8x32xf32>
    %309 = tpu.matmul %308, %30, %cst_123 {dimension_numbers = #tpu.dot_dimension_numbers<[1], [0], [0], [1], [0, 0, 1, 1], [], []>} : vector<8x32xbf16>, vector<32x32xbf16>, vector<8x32xf32> -> vector<8x32xf32>
    %310 = vector.broadcast %36 : vector<1x32xf32> to vector<8x32xf32>
    %311 = arith.addf %309, %310 : vector<8x32xf32>
    %cst_124 = arith.constant dense<0.000000e+00> : vector<8x32xf32>
    %312 = tpu.matmul %308, %32, %cst_124 {dimension_numbers = #tpu.dot_dimension_numbers<[1], [0], [0], [1], [0, 0, 1, 1], [], []>} : vector<8x32xbf16>, vector<32x32xbf16>, vector<8x32xf32> -> vector<8x32xf32>
    %313 = vector.broadcast %38 : vector<1x32xf32> to vector<8x32xf32>
    %314 = arith.addf %312, %313 : vector<8x32xf32>
    %cst_125 = arith.constant dense<0.000000e+00> : vector<8x32xf32>
    %315 = tpu.matmul %308, %34, %cst_125 {dimension_numbers = #tpu.dot_dimension_numbers<[1], [0], [0], [1], [0, 0, 1, 1], [], []>} : vector<8x32xbf16>, vector<32x32xbf16>, vector<8x32xf32> -> vector<8x32xf32>
    %316 = vector.broadcast %40 : vector<1x32xf32> to vector<8x32xf32>
    %317 = arith.addf %315, %316 : vector<8x32xf32>
    %318 = arith.index_cast %c6_i32 : i32 to index
    %c0_126 = arith.constant 0 : index
    %c0_127 = arith.constant 0 : index
    %319 = vector.load %arg13[%318, %c0_126, %c0_127] : memref<10x8x32xf32, #tpu.memory_space<vmem>>, vector<1x8x32xf32>
    %320 = vector.shape_cast %319 : vector<1x8x32xf32> to vector<8x32xf32>
    %321 = arith.addf %320, %311 : vector<8x32xf32>
    %322 = arith.negf %321 : vector<8x32xf32>
    %323 = math.exp %322 : vector<8x32xf32>
    %cst_128 = arith.constant 1.000000e+00 : f32
    %324 = vector.broadcast %cst_128 : f32 to vector<8x32xf32>
    %325 = arith.addf %324, %323 : vector<8x32xf32>
    %326 = arith.divf %324, %325 : vector<8x32xf32>
    %327 = arith.index_cast %c6_i32 : i32 to index
    %c0_129 = arith.constant 0 : index
    %c0_130 = arith.constant 0 : index
    %328 = vector.load %arg14[%327, %c0_129, %c0_130] : memref<10x8x32xf32, #tpu.memory_space<vmem>>, vector<1x8x32xf32>
    %329 = vector.shape_cast %328 : vector<1x8x32xf32> to vector<8x32xf32>
    %330 = arith.addf %329, %314 : vector<8x32xf32>
    %331 = arith.negf %330 : vector<8x32xf32>
    %332 = math.exp %331 : vector<8x32xf32>
    %cst_131 = arith.constant 1.000000e+00 : f32
    %333 = vector.broadcast %cst_131 : f32 to vector<8x32xf32>
    %334 = arith.addf %333, %332 : vector<8x32xf32>
    %335 = arith.divf %333, %334 : vector<8x32xf32>
    %336 = arith.index_cast %c6_i32 : i32 to index
    %c0_132 = arith.constant 0 : index
    %c0_133 = arith.constant 0 : index
    %337 = vector.load %arg15[%336, %c0_132, %c0_133] : memref<10x8x32xf32, #tpu.memory_space<vmem>>, vector<1x8x32xf32>
    %338 = vector.shape_cast %337 : vector<1x8x32xf32> to vector<8x32xf32>
    %339 = arith.mulf %326, %317 : vector<8x32xf32>
    %340 = arith.addf %338, %339 : vector<8x32xf32>
    %341 = math.tanh %340 : vector<8x32xf32>
    %cst_134 = arith.constant 1.000000e+00 : f32
    %342 = vector.broadcast %cst_134 : f32 to vector<8x32xf32>
    %343 = arith.subf %342, %335 : vector<8x32xf32>
    %344 = arith.mulf %343, %341 : vector<8x32xf32>
    %345 = arith.mulf %335, %307 : vector<8x32xf32>
    %346 = arith.addf %344, %345 : vector<8x32xf32>
    %347 = vector.broadcast %c6_i32 : i32 to vector<8x1xi32>
    %348 = arith.cmpi slt, %347, %42 : vector<8x1xi32>
    %349 = vector.shape_cast %348 : vector<8x1xi1> to vector<8x1xi1>
    %350 = vector.broadcast %349 : vector<8x1xi1> to vector<8x32xi1>
    %351 = arith.select %350, %346, %307 : vector<8x32xi1>, vector<8x32xf32>
    %c7_i32 = arith.constant 7 : i32
    %352 = arith.truncf %351 : vector<8x32xf32> to vector<8x32xbf16>
    %cst_135 = arith.constant dense<0.000000e+00> : vector<8x32xf32>
    %353 = tpu.matmul %352, %30, %cst_135 {dimension_numbers = #tpu.dot_dimension_numbers<[1], [0], [0], [1], [0, 0, 1, 1], [], []>} : vector<8x32xbf16>, vector<32x32xbf16>, vector<8x32xf32> -> vector<8x32xf32>
    %354 = vector.broadcast %36 : vector<1x32xf32> to vector<8x32xf32>
    %355 = arith.addf %353, %354 : vector<8x32xf32>
    %cst_136 = arith.constant dense<0.000000e+00> : vector<8x32xf32>
    %356 = tpu.matmul %352, %32, %cst_136 {dimension_numbers = #tpu.dot_dimension_numbers<[1], [0], [0], [1], [0, 0, 1, 1], [], []>} : vector<8x32xbf16>, vector<32x32xbf16>, vector<8x32xf32> -> vector<8x32xf32>
    %357 = vector.broadcast %38 : vector<1x32xf32> to vector<8x32xf32>
    %358 = arith.addf %356, %357 : vector<8x32xf32>
    %cst_137 = arith.constant dense<0.000000e+00> : vector<8x32xf32>
    %359 = tpu.matmul %352, %34, %cst_137 {dimension_numbers = #tpu.dot_dimension_numbers<[1], [0], [0], [1], [0, 0, 1, 1], [], []>} : vector<8x32xbf16>, vector<32x32xbf16>, vector<8x32xf32> -> vector<8x32xf32>
    %360 = vector.broadcast %40 : vector<1x32xf32> to vector<8x32xf32>
    %361 = arith.addf %359, %360 : vector<8x32xf32>
    %362 = arith.index_cast %c7_i32 : i32 to index
    %c0_138 = arith.constant 0 : index
    %c0_139 = arith.constant 0 : index
    %363 = vector.load %arg13[%362, %c0_138, %c0_139] : memref<10x8x32xf32, #tpu.memory_space<vmem>>, vector<1x8x32xf32>
    %364 = vector.shape_cast %363 : vector<1x8x32xf32> to vector<8x32xf32>
    %365 = arith.addf %364, %355 : vector<8x32xf32>
    %366 = arith.negf %365 : vector<8x32xf32>
    %367 = math.exp %366 : vector<8x32xf32>
    %cst_140 = arith.constant 1.000000e+00 : f32
    %368 = vector.broadcast %cst_140 : f32 to vector<8x32xf32>
    %369 = arith.addf %368, %367 : vector<8x32xf32>
    %370 = arith.divf %368, %369 : vector<8x32xf32>
    %371 = arith.index_cast %c7_i32 : i32 to index
    %c0_141 = arith.constant 0 : index
    %c0_142 = arith.constant 0 : index
    %372 = vector.load %arg14[%371, %c0_141, %c0_142] : memref<10x8x32xf32, #tpu.memory_space<vmem>>, vector<1x8x32xf32>
    %373 = vector.shape_cast %372 : vector<1x8x32xf32> to vector<8x32xf32>
    %374 = arith.addf %373, %358 : vector<8x32xf32>
    %375 = arith.negf %374 : vector<8x32xf32>
    %376 = math.exp %375 : vector<8x32xf32>
    %cst_143 = arith.constant 1.000000e+00 : f32
    %377 = vector.broadcast %cst_143 : f32 to vector<8x32xf32>
    %378 = arith.addf %377, %376 : vector<8x32xf32>
    %379 = arith.divf %377, %378 : vector<8x32xf32>
    %380 = arith.index_cast %c7_i32 : i32 to index
    %c0_144 = arith.constant 0 : index
    %c0_145 = arith.constant 0 : index
    %381 = vector.load %arg15[%380, %c0_144, %c0_145] : memref<10x8x32xf32, #tpu.memory_space<vmem>>, vector<1x8x32xf32>
    %382 = vector.shape_cast %381 : vector<1x8x32xf32> to vector<8x32xf32>
    %383 = arith.mulf %370, %361 : vector<8x32xf32>
    %384 = arith.addf %382, %383 : vector<8x32xf32>
    %385 = math.tanh %384 : vector<8x32xf32>
    %cst_146 = arith.constant 1.000000e+00 : f32
    %386 = vector.broadcast %cst_146 : f32 to vector<8x32xf32>
    %387 = arith.subf %386, %379 : vector<8x32xf32>
    %388 = arith.mulf %387, %385 : vector<8x32xf32>
    %389 = arith.mulf %379, %351 : vector<8x32xf32>
    %390 = arith.addf %388, %389 : vector<8x32xf32>
    %391 = vector.broadcast %c7_i32 : i32 to vector<8x1xi32>
    %392 = arith.cmpi slt, %391, %42 : vector<8x1xi32>
    %393 = vector.shape_cast %392 : vector<8x1xi1> to vector<8x1xi1>
    %394 = vector.broadcast %393 : vector<8x1xi1> to vector<8x32xi1>
    %395 = arith.select %394, %390, %351 : vector<8x32xi1>, vector<8x32xf32>
    %c8_i32 = arith.constant 8 : i32
    %396 = arith.truncf %395 : vector<8x32xf32> to vector<8x32xbf16>
    %cst_147 = arith.constant dense<0.000000e+00> : vector<8x32xf32>
    %397 = tpu.matmul %396, %30, %cst_147 {dimension_numbers = #tpu.dot_dimension_numbers<[1], [0], [0], [1], [0, 0, 1, 1], [], []>} : vector<8x32xbf16>, vector<32x32xbf16>, vector<8x32xf32> -> vector<8x32xf32>
    %398 = vector.broadcast %36 : vector<1x32xf32> to vector<8x32xf32>
    %399 = arith.addf %397, %398 : vector<8x32xf32>
    %cst_148 = arith.constant dense<0.000000e+00> : vector<8x32xf32>
    %400 = tpu.matmul %396, %32, %cst_148 {dimension_numbers = #tpu.dot_dimension_numbers<[1], [0], [0], [1], [0, 0, 1, 1], [], []>} : vector<8x32xbf16>, vector<32x32xbf16>, vector<8x32xf32> -> vector<8x32xf32>
    %401 = vector.broadcast %38 : vector<1x32xf32> to vector<8x32xf32>
    %402 = arith.addf %400, %401 : vector<8x32xf32>
    %cst_149 = arith.constant dense<0.000000e+00> : vector<8x32xf32>
    %403 = tpu.matmul %396, %34, %cst_149 {dimension_numbers = #tpu.dot_dimension_numbers<[1], [0], [0], [1], [0, 0, 1, 1], [], []>} : vector<8x32xbf16>, vector<32x32xbf16>, vector<8x32xf32> -> vector<8x32xf32>
    %404 = vector.broadcast %40 : vector<1x32xf32> to vector<8x32xf32>
    %405 = arith.addf %403, %404 : vector<8x32xf32>
    %406 = arith.index_cast %c8_i32 : i32 to index
    %c0_150 = arith.constant 0 : index
    %c0_151 = arith.constant 0 : index
    %407 = vector.load %arg13[%406, %c0_150, %c0_151] : memref<10x8x32xf32, #tpu.memory_space<vmem>>, vector<1x8x32xf32>
    %408 = vector.shape_cast %407 : vector<1x8x32xf32> to vector<8x32xf32>
    %409 = arith.addf %408, %399 : vector<8x32xf32>
    %410 = arith.negf %409 : vector<8x32xf32>
    %411 = math.exp %410 : vector<8x32xf32>
    %cst_152 = arith.constant 1.000000e+00 : f32
    %412 = vector.broadcast %cst_152 : f32 to vector<8x32xf32>
    %413 = arith.addf %412, %411 : vector<8x32xf32>
    %414 = arith.divf %412, %413 : vector<8x32xf32>
    %415 = arith.index_cast %c8_i32 : i32 to index
    %c0_153 = arith.constant 0 : index
    %c0_154 = arith.constant 0 : index
    %416 = vector.load %arg14[%415, %c0_153, %c0_154] : memref<10x8x32xf32, #tpu.memory_space<vmem>>, vector<1x8x32xf32>
    %417 = vector.shape_cast %416 : vector<1x8x32xf32> to vector<8x32xf32>
    %418 = arith.addf %417, %402 : vector<8x32xf32>
    %419 = arith.negf %418 : vector<8x32xf32>
    %420 = math.exp %419 : vector<8x32xf32>
    %cst_155 = arith.constant 1.000000e+00 : f32
    %421 = vector.broadcast %cst_155 : f32 to vector<8x32xf32>
    %422 = arith.addf %421, %420 : vector<8x32xf32>
    %423 = arith.divf %421, %422 : vector<8x32xf32>
    %424 = arith.index_cast %c8_i32 : i32 to index
    %c0_156 = arith.constant 0 : index
    %c0_157 = arith.constant 0 : index
    %425 = vector.load %arg15[%424, %c0_156, %c0_157] : memref<10x8x32xf32, #tpu.memory_space<vmem>>, vector<1x8x32xf32>
    %426 = vector.shape_cast %425 : vector<1x8x32xf32> to vector<8x32xf32>
    %427 = arith.mulf %414, %405 : vector<8x32xf32>
    %428 = arith.addf %426, %427 : vector<8x32xf32>
    %429 = math.tanh %428 : vector<8x32xf32>
    %cst_158 = arith.constant 1.000000e+00 : f32
    %430 = vector.broadcast %cst_158 : f32 to vector<8x32xf32>
    %431 = arith.subf %430, %423 : vector<8x32xf32>
    %432 = arith.mulf %431, %429 : vector<8x32xf32>
    %433 = arith.mulf %423, %395 : vector<8x32xf32>
    %434 = arith.addf %432, %433 : vector<8x32xf32>
    %435 = vector.broadcast %c8_i32 : i32 to vector<8x1xi32>
    %436 = arith.cmpi slt, %435, %42 : vector<8x1xi32>
    %437 = vector.shape_cast %436 : vector<8x1xi1> to vector<8x1xi1>
    %438 = vector.broadcast %437 : vector<8x1xi1> to vector<8x32xi1>
    %439 = arith.select %438, %434, %395 : vector<8x32xi1>, vector<8x32xf32>
    %c9_i32 = arith.constant 9 : i32
    %440 = arith.truncf %439 : vector<8x32xf32> to vector<8x32xbf16>
    %cst_159 = arith.constant dense<0.000000e+00> : vector<8x32xf32>
    %441 = tpu.matmul %440, %30, %cst_159 {dimension_numbers = #tpu.dot_dimension_numbers<[1], [0], [0], [1], [0, 0, 1, 1], [], []>} : vector<8x32xbf16>, vector<32x32xbf16>, vector<8x32xf32> -> vector<8x32xf32>
    %442 = vector.broadcast %36 : vector<1x32xf32> to vector<8x32xf32>
    %443 = arith.addf %441, %442 : vector<8x32xf32>
    %cst_160 = arith.constant dense<0.000000e+00> : vector<8x32xf32>
    %444 = tpu.matmul %440, %32, %cst_160 {dimension_numbers = #tpu.dot_dimension_numbers<[1], [0], [0], [1], [0, 0, 1, 1], [], []>} : vector<8x32xbf16>, vector<32x32xbf16>, vector<8x32xf32> -> vector<8x32xf32>
    %445 = vector.broadcast %38 : vector<1x32xf32> to vector<8x32xf32>
    %446 = arith.addf %444, %445 : vector<8x32xf32>
    %cst_161 = arith.constant dense<0.000000e+00> : vector<8x32xf32>
    %447 = tpu.matmul %440, %34, %cst_161 {dimension_numbers = #tpu.dot_dimension_numbers<[1], [0], [0], [1], [0, 0, 1, 1], [], []>} : vector<8x32xbf16>, vector<32x32xbf16>, vector<8x32xf32> -> vector<8x32xf32>
    %448 = vector.broadcast %40 : vector<1x32xf32> to vector<8x32xf32>
    %449 = arith.addf %447, %448 : vector<8x32xf32>
    %450 = arith.index_cast %c9_i32 : i32 to index
    %c0_162 = arith.constant 0 : index
    %c0_163 = arith.constant 0 : index
    %451 = vector.load %arg13[%450, %c0_162, %c0_163] : memref<10x8x32xf32, #tpu.memory_space<vmem>>, vector<1x8x32xf32>
    %452 = vector.shape_cast %451 : vector<1x8x32xf32> to vector<8x32xf32>
    %453 = arith.addf %452, %443 : vector<8x32xf32>
    %454 = arith.negf %453 : vector<8x32xf32>
    %455 = math.exp %454 : vector<8x32xf32>
    %cst_164 = arith.constant 1.000000e+00 : f32
    %456 = vector.broadcast %cst_164 : f32 to vector<8x32xf32>
    %457 = arith.addf %456, %455 : vector<8x32xf32>
    %458 = arith.divf %456, %457 : vector<8x32xf32>
    %459 = arith.index_cast %c9_i32 : i32 to index
    %c0_165 = arith.constant 0 : index
    %c0_166 = arith.constant 0 : index
    %460 = vector.load %arg14[%459, %c0_165, %c0_166] : memref<10x8x32xf32, #tpu.memory_space<vmem>>, vector<1x8x32xf32>
    %461 = vector.shape_cast %460 : vector<1x8x32xf32> to vector<8x32xf32>
    %462 = arith.addf %461, %446 : vector<8x32xf32>
    %463 = arith.negf %462 : vector<8x32xf32>
    %464 = math.exp %463 : vector<8x32xf32>
    %cst_167 = arith.constant 1.000000e+00 : f32
    %465 = vector.broadcast %cst_167 : f32 to vector<8x32xf32>
    %466 = arith.addf %465, %464 : vector<8x32xf32>
    %467 = arith.divf %465, %466 : vector<8x32xf32>
    %468 = arith.index_cast %c9_i32 : i32 to index
    %c0_168 = arith.constant 0 : index
    %c0_169 = arith.constant 0 : index
    %469 = vector.load %arg15[%468, %c0_168, %c0_169] : memref<10x8x32xf32, #tpu.memory_space<vmem>>, vector<1x8x32xf32>
    %470 = vector.shape_cast %469 : vector<1x8x32xf32> to vector<8x32xf32>
    %471 = arith.mulf %458, %449 : vector<8x32xf32>
    %472 = arith.addf %470, %471 : vector<8x32xf32>
    %473 = math.tanh %472 : vector<8x32xf32>
    %cst_170 = arith.constant 1.000000e+00 : f32
    %474 = vector.broadcast %cst_170 : f32 to vector<8x32xf32>
    %475 = arith.subf %474, %467 : vector<8x32xf32>
    %476 = arith.mulf %475, %473 : vector<8x32xf32>
    %477 = arith.mulf %467, %439 : vector<8x32xf32>
    %478 = arith.addf %476, %477 : vector<8x32xf32>
    %479 = vector.broadcast %c9_i32 : i32 to vector<8x1xi32>
    %480 = arith.cmpi slt, %479, %42 : vector<8x1xi32>
    %481 = vector.shape_cast %480 : vector<8x1xi1> to vector<8x1xi1>
    %482 = vector.broadcast %481 : vector<8x1xi1> to vector<8x32xi1>
    %483 = arith.select %482, %478, %439 : vector<8x32xi1>, vector<8x32xf32>
    %c10_i32 = arith.constant 10 : i32
    %484 = vector.shape_cast %483 : vector<8x32xf32> to vector<1x8x32xf32>
    %c0_171 = arith.constant 0 : index
    %c0_172 = arith.constant 0 : index
    %c0_173 = arith.constant 0 : index
    %485 = vector.load %arg11[%c0_171, %c0_172, %c0_173] : memref<1x8x32xf32, #tpu.memory_space<vmem>>, vector<1x8x32xf32>
    tpu.vector_store %arg11[%c0_171, %c0_172, %c0_173], %484 {strides = array<i32>} : memref<1x8x32xf32, #tpu.memory_space<vmem>>, vector<1x8x32xf32>,
    %486 = arith.truncf %483 : vector<8x32xf32> to vector<8x32xbf16>
    %c0_174 = arith.constant 0 : index
    %c0_175 = arith.constant 0 : index
    %487 = vector.load %arg7[%c0_174, %c0_175] : memref<32x512xbf16, #tpu.memory_space<vmem>>, vector<32x512xbf16>
    %cst_176 = arith.constant dense<0.000000e+00> : vector<8x512xf32>
    %488 = tpu.matmul %486, %487, %cst_176 {dimension_numbers = #tpu.dot_dimension_numbers<[1], [0], [0], [1], [0, 0, 1, 1], [], []>} : vector<8x32xbf16>, vector<32x512xbf16>, vector<8x512xf32> -> vector<8x512xf32>
    %489 = vector.extract_strided_slice %488 {offsets = [0, 0], sizes = [8, 256], strides = [1, 1]} : vector<8x512xf32> to vector<8x256xf32>
    %490 = vector.extract_strided_slice %488 {offsets = [0, 256], sizes = [8, 256], strides = [1, 1]} : vector<8x512xf32> to vector<8x256xf32>
    %491 = vector.shape_cast %489 : vector<8x256xf32> to vector<8x1x256xf32>
    %492 = vector.shape_cast %490 : vector<8x256xf32> to vector<1x8x256xf32>
    %493 = vector.broadcast %491 : vector<8x1x256xf32> to vector<8x8x256xf32>
    %494 = vector.broadcast %492 : vector<1x8x256xf32> to vector<8x8x256xf32>
    %495 = arith.addf %493, %494 : vector<8x8x256xf32>
    %c0_177 = arith.constant 0 : index
    %c0_178 = arith.constant 0 : index
    %496 = vector.load %arg8[%c0_177, %c0_178] : memref<1x256xf32, #tpu.memory_space<vmem>>, vector<1x256xf32>
    %497 = vector.shape_cast %496 : vector<1x256xf32> to vector<1x1x256xf32>
    %498 = vector.broadcast %497 : vector<1x1x256xf32> to vector<8x8x256xf32>
    %499 = arith.addf %495, %498 : vector<8x8x256xf32>
    %500 = math.tanh %499 : vector<8x8x256xf32>
    %c0_179 = arith.constant 0 : index
    %c0_180 = arith.constant 0 : index
    %501 = vector.load %arg9[%c0_179, %c0_180] : memref<1x256xf32, #tpu.memory_space<vmem>>, vector<1x256xf32>
    %502 = vector.shape_cast %501 : vector<1x256xf32> to vector<1x1x256xf32>
    %503 = vector.broadcast %502 : vector<1x1x256xf32> to vector<8x8x256xf32>
    %504 = arith.mulf %500, %503 : vector<8x8x256xf32>
    %cst_181 = arith.constant dense<0.000000e+00> : vector<8x8xf32>
    %505 = vector.multi_reduction <add>, %504, %cst_181 [2] : vector<8x8x256xf32> to vector<8x8xf32>
    %506 = math.tanh %505 : vector<8x8xf32>
    %c0_182 = arith.constant 0 : index
    %c0_183 = arith.constant 0 : index
    %c0_184 = arith.constant 0 : index
    %507 = vector.load %arg10[%c0_182, %c0_183, %c0_184] : memref<1x8x8xf32, #tpu.memory_space<vmem>>, vector<1x8x8xf32>
    %508 = vector.shape_cast %507 : vector<1x8x8xf32> to vector<8x8xf32>
    %509 = arith.mulf %506, %508 : vector<8x8xf32>
    %510 = vector.shape_cast %509 : vector<8x8xf32> to vector<1x8x8xf32>
    %c0_185 = arith.constant 0 : index
    %c0_186 = arith.constant 0 : index
    %c0_187 = arith.constant 0 : index
    %511 = vector.load %arg12[%c0_185, %c0_186, %c0_187] : memref<1x8x8xf32, #tpu.memory_space<vmem>>, vector<1x8x8xf32>
    tpu.vector_store %arg12[%c0_185, %c0_186, %c0_187], %510 {strides = array<i32>} : memref<1x8x8xf32, #tpu.memory_space<vmem>>, vector<1x8x8xf32>,
    return
  }
  func.func @transform_0(%arg0: i32) -> (i32, i32, i32) {
    %c0_i32 = arith.constant 0 : i32
    %c0_i32_0 = arith.constant 0 : i32
    %c0_i32_1 = arith.constant 0 : i32
    return %arg0, %c0_i32, %c0_i32_0 : i32, i32, i32
  }
  func.func @transform_1(%arg0: i32) -> (i32, i32, i32) {
    %c0_i32 = arith.constant 0 : i32
    %c0_i32_0 = arith.constant 0 : i32
    %c0_i32_1 = arith.constant 0 : i32
    %c0_i32_2 = arith.constant 0 : i32
    return %c0_i32, %c0_i32_0, %c0_i32_1 : i32, i32, i32
  }
  func.func @transform_2(%arg0: i32) -> (i32, i32, i32) {
    %c0_i32 = arith.constant 0 : i32
    %c0_i32_0 = arith.constant 0 : i32
    %c0_i32_1 = arith.constant 0 : i32
    %c0_i32_2 = arith.constant 0 : i32
    return %c0_i32, %c0_i32_0, %c0_i32_1 : i32, i32, i32
  }
  func.func @transform_3(%arg0: i32) -> (i32, i32, i32) {
    %c0_i32 = arith.constant 0 : i32
    %c0_i32_0 = arith.constant 0 : i32
    %c0_i32_1 = arith.constant 0 : i32
    %c0_i32_2 = arith.constant 0 : i32
    return %c0_i32, %c0_i32_0, %c0_i32_1 : i32, i32, i32
  }
  func.func @transform_4(%arg0: i32) -> (i32, i32, i32) {
    %c0_i32 = arith.constant 0 : i32
    %c0_i32_0 = arith.constant 0 : i32
    %c0_i32_1 = arith.constant 0 : i32
    %c0_i32_2 = arith.constant 0 : i32
    return %c0_i32, %c0_i32_0, %c0_i32_1 : i32, i32, i32
  }
  func.func @transform_5(%arg0: i32) -> (i32, i32, i32) {
    %c0_i32 = arith.constant 0 : i32
    %c0_i32_0 = arith.constant 0 : i32
    %c0_i32_1 = arith.constant 0 : i32
    return %arg0, %c0_i32, %c0_i32_0 : i32, i32, i32
  }
  func.func @transform_6(%arg0: i32) -> (i32, i32) {
    %c0_i32 = arith.constant 0 : i32
    %c0_i32_0 = arith.constant 0 : i32
    %c0_i32_1 = arith.constant 0 : i32
    return %c0_i32, %c0_i32_0 : i32, i32
  }
  func.func @transform_7(%arg0: i32) -> (i32, i32) {
    %c0_i32 = arith.constant 0 : i32
    %c0_i32_0 = arith.constant 0 : i32
    %c0_i32_1 = arith.constant 0 : i32
    return %c0_i32, %c0_i32_0 : i32, i32
  }
  func.func @transform_8(%arg0: i32) -> (i32, i32) {
    %c0_i32 = arith.constant 0 : i32
    %c0_i32_0 = arith.constant 0 : i32
    %c0_i32_1 = arith.constant 0 : i32
    return %c0_i32, %c0_i32_0 : i32, i32
  }
  func.func @transform_9(%arg0: i32) -> (i32, i32, i32) {
    %c0_i32 = arith.constant 0 : i32
    %c0_i32_0 = arith.constant 0 : i32
    %c0_i32_1 = arith.constant 0 : i32
    return %arg0, %c0_i32, %c0_i32_0 : i32, i32, i32
  }
  func.func @transform_10(%arg0: i32) -> (i32, i32, i32) {
    %c0_i32 = arith.constant 0 : i32
    %c0_i32_0 = arith.constant 0 : i32
    %c0_i32_1 = arith.constant 0 : i32
    return %arg0, %c0_i32, %c0_i32_0 : i32, i32, i32
  }
  func.func @transform_11(%arg0: i32) -> (i32, i32, i32) {
    %c0_i32 = arith.constant 0 : i32
    %c0_i32_0 = arith.constant 0 : i32
    %c0_i32_1 = arith.constant 0 : i32
    return %arg0, %c0_i32, %c0_i32_0 : i32, i32, i32
  }
}

</mosaic_0001>

<llo_original>
// kernel: custom-call.11
$region0: #{custom-call.11}
  %s0 = inlined_call_operand.vmem [shape: f32[2,8,8], index: 0, kind: input, shape index: {}]
  %s1 = inlined_call_operand.vmem [shape: f32[2,8,8], index: 1, kind: output, shape index: {0}]
  %s2 = inlined_call_operand.hbm [shape: s32[2,8], index: 2, kind: output, shape index: {1}]
  %s3 = inlined_call_operand.vmem [shape: s32[2,8], index: 3, kind: output, shape index: {2}]
  %4 = xla_tuple %s1, %s2, %s3
  $region1: #{custom-call.11} parent=0
    #allocation0 [shape = 'u8[8192]{0}', space=vmem, size = 0x2000, scoped, tag = 'operand span for operand 0']
    #allocation1 [shape = 'u8[8192]{0}', space=vmem, size = 0x2000, scoped, tag = 'operand span for operand 1']
    #allocation2 [shape = 'u8[4096]{0}', space=vmem, size = 0x1000, scoped, tag = 'operand span for operand 2']
    #allocation3 [shape = 'u8[2048]{0}', space=vmem, size = 0x800, scoped, tag = 'packed  for operand 2']
    #allocation4 [shape = 's32[2]{0}', space=sflag, size = 0x8, scoped, tag = 'scoped memory for custom-call.11']
    #allocation5 [shape = 'u8[4096]{0}', space=vmem, size = 0x1000, scoped, tag = 'operand span for operand 3']
    #allocation6 [shape = 'u8[2048]{0}', space=vmem, size = 0x800, scoped, tag = 'packed  for operand 3']
    %5 = vsyncpa [#allocation4], 0
    %s6 = scalar_lea.sflag [#allocation4], 1
    %7 = vsyncpa %s6, 0
    loop: start=0, step=1, limit=4
    $region2: #{custom-call.11} parent=1 // loop_pre_header
      _
    $region3: #{custom-call.11} parent=1 // loop_header
      %s9 = sphi 0, %s13
      %p10 = scmp.ge.s32.totalorder %s9, 4
      %s21 = sphi 0, %s23
      %s24 = sphi 0, %s21
      %s25 = sphi 0, %s24
      %s41 = sphi 0, %s25
      %s49 = sphi 0, %s51
      %s52 = sphi 0, %s49
      %s53 = sphi 0, %s52
      %s69 = sphi 0, %s53
    $region4: #{custom-call.11} parent=1 // loop_header_branch
      %12 = sbr.rel (%p10) target = $region8
    $region5: #{custom-call.11} parent=1 // loop_body
      %s14 = ssub.s32 %s9, 1
      %s15 = ssub.s32 %s9, 2
      %s16 = sadd.s32 %s9, 1
      %s17 = sshrl.u32 %s9, 3
      %s18 = sshrl.u32 %s16, 3
      %s19 = ssub.s32 %s17, %s18
      %p20 = scmp.eq.s32.totalorder %s19, 0
      %s22 = sadd.s32 %s21, 1
      %s23 = scalar_select %p20, %s21, %s22
      %p26 = pneg %p20
      %p27 = scmp.eq.s32.totalorder %s9, 1
      %p28 = por %p26, %p27
      %p29 = scmp.ne.s32.totalorder %s21, %s24
      %p30 = scmp.eq.s32.totalorder %s9, 0
      %p31 = por %p29, %p30
      %p32 = scmp.ne.s32.totalorder %s21, %s24
      %p33 = scmp.eq.s32.totalorder %s14, 1
      %p34 = por %p32, %p33
      %p35 = scmp.ne.s32.totalorder %s24, %s25
      %p36 = scmp.eq.s32.totalorder %s14, 0
      %p37 = por %p35, %p36
      %p38 = scmp.ne.s32.totalorder %s24, %s25
      %p39 = scmp.eq.s32.totalorder %s15, 1
      %p40 = por %p38, %p39
      %p42 = scmp.ne.s32.totalorder %s25, %s41
      %p43 = scmp.eq.s32.totalorder %s15, 0
      %p44 = por %p42, %p43
      %s45 = sshrl.u32 %s9, 3
      %s46 = sshrl.u32 %s16, 3
      %s47 = ssub.s32 %s45, %s46
      %p48 = scmp.eq.s32.totalorder %s47, 0
      %s50 = sadd.s32 %s49, 1
      %s51 = scalar_select %p48, %s49, %s50
      %p54 = pneg %p48
      %p55 = scmp.eq.s32.totalorder %s9, 1
      %p56 = por %p54, %p55
      %p57 = scmp.ne.s32.totalorder %s49, %s52
      %p58 = scmp.eq.s32.totalorder %s9, 0
      %p59 = por %p57, %p58
      %p60 = scmp.ne.s32.totalorder %s49, %s52
      %p61 = scmp.eq.s32.totalorder %s14, 1
      %p62 = por %p60, %p61
      %p63 = scmp.ne.s32.totalorder %s52, %s53
      %p64 = scmp.eq.s32.totalorder %s14, 0
      %p65 = por %p63, %p64
      %p66 = scmp.ne.s32.totalorder %s52, %s53
      %p67 = scmp.eq.s32.totalorder %s15, 1
      %p68 = por %p66, %p67
      %p70 = scmp.ne.s32.totalorder %s53, %s69
      %p71 = scmp.eq.s32.totalorder %s15, 0
      %p72 = por %p70, %p71
      %p73 = scmp.le.s32.totalorder 1, %s9
      %p74 = scmp.lt.s32.totalorder %s9, 3
      %p75 = pnand %p73, %p74
      %p76 = pneg %p75
      // Predicated region
      $region9: #{custom-call.11} parent=5 // pred_check
        _
      $region10: #{custom-call.11} parent=5 // pred_check_branch
        %78 = sbr.rel (%p75) target = $region12
      $region11: #{custom-call.11} parent=5 // pred_region
        %s79 = ssub.s32 %s9, 1
      $region12: #{custom-call.11} parent=5 // pred_fallthru
        _
      %p80 = scmp.lt.s32.totalorder %s9, 2
      // Predicated region
      $region13: #{custom-call.11} parent=5 // pred_check
        %p81 = pneg %p80
      $region14: #{custom-call.11} parent=5 // pred_check_branch
        %83 = sbr.rel (%p81) target = $region16
      $region15: #{custom-call.11} parent=5 // pred_region
        %s84 = sand.u32 %s9, 1
        %s85 = sand.u32 %s9, 1
        %s86 = smul.addr %s85, 8
        %s87 = scalar_lea.vmem [#allocation0], %s86
        %s88 = smul.addr %s9, 8
        %s89 = scalar_lea.vmem %s0, %s88
        // Predicated region
        $region17: #{custom-call.11} parent=15 // pred_check
          _
        $region18: #{custom-call.11} parent=15 // pred_check_branch
          %91 = sbr.rel (0) target = $region20
        $region19: #{custom-call.11} parent=15 // pred_region
          // Predicated region
          $region21: #{custom-call.11} parent=19 // pred_check
            _
          $region22: #{custom-call.11} parent=19 // pred_check_branch
            %93 = sbr.rel (0) target = $region24
          $region23: #{custom-call.11} parent=19 // pred_region
            // Predicated region
            $region36: #{custom-call.11} parent=23 // pred_check
              _
            $region37: #{custom-call.11} parent=23 // pred_check_branch
              %109 = sbr.rel (0) target = $region39
            $region38: #{custom-call.11} parent=23 // pred_region
              loop: start=0, step=1, limit=1
              $region40: #{custom-call.11} parent=38 // loop_pre_header
                _
              $region41: #{custom-call.11} parent=38 // loop_header
                %s111 = sphi 0, %s115
                %p112 = scmp.ge.s32.totalorder %s111, 1
                %s116 = sphi %s89, %s89
                %s117 = sphi %s87, %s87
              $region42: #{custom-call.11} parent=38 // loop_header_branch
                %114 = sbr.rel (%p112) target = $region46
              $region43: #{custom-call.11} parent=38 // loop_body
                %v118 = vld [vmem:[%s116] sm:$0xff]
                %119 = vst [vmem:[%s117] sm:$0xff] %v118
              $region44: #{custom-call.11} parent=38 // loop_footer
                %s115 = sadd.s32 1, %s111
              $region45: #{custom-call.11} parent=38 // loop_footer_branch
                %110 = sbr.rel target = $region41
              $region46: #{custom-call.11} parent=38 // loop_exit
                _
            $region39: #{custom-call.11} parent=23 // pred_fallthru
              _
            // Predicated region
            $region47: #{custom-call.11} parent=23 // pred_check
              _
            $region48: #{custom-call.11} parent=23 // pred_check_branch
              %121 = sbr.rel target = $region50
            $region49: #{custom-call.11} parent=23 // pred_region
              _
            $region50: #{custom-call.11} parent=23 // pred_fallthru
              _
          $region24: #{custom-call.11} parent=19 // pred_fallthru
            _
          // Predicated region
          $region25: #{custom-call.11} parent=19 // pred_check
            _
          $region26: #{custom-call.11} parent=19 // pred_check_branch
            %95 = sbr.rel target = $region28
          $region27: #{custom-call.11} parent=19 // pred_region
            %s97 = ssub.s32 256, 1
            loop: start=0, step=1, limit=1
            $region29: #{custom-call.11} parent=27 // loop_pre_header
              _
            $region30: #{custom-call.11} parent=27 // loop_header
              %s99 = sphi 0, %s103
              %p100 = scmp.ge.s32.totalorder %s99, 1
              %s104 = sphi %s89, %s89
              %s105 = sphi %s87, %s87
            $region31: #{custom-call.11} parent=27 // loop_header_branch
              %102 = sbr.rel (%p100) target = $region35
            $region32: #{custom-call.11} parent=27 // loop_body
              %v106 = vld [vmem:[%s104] sm:%s97]
              %107 = vst [vmem:[%s105] sm:%s97] %v106
            $region33: #{custom-call.11} parent=27 // loop_footer
              %s103 = sadd.s32 1, %s99
            $region34: #{custom-call.11} parent=27 // loop_footer_branch
              %98 = sbr.rel target = $region30
            $region35: #{custom-call.11} parent=27 // loop_exit
              _
          $region28: #{custom-call.11} parent=19 // pred_fallthru
            _
        $region20: #{custom-call.11} parent=15 // pred_fallthru
          _
        %122 = vnop
      $region16: #{custom-call.11} parent=5 // pred_fallthru
        _
      %p123 = scmp.le.s32.totalorder 1, %s9
      %p124 = scmp.lt.s32.totalorder %s9, 3
      %p125 = pnand %p123, %p124
      %p126 = pneg %p125
      // Predicated region
      $region51: #{custom-call.11} parent=5 // pred_check
        _
      $region52: #{custom-call.11} parent=5 // pred_check_branch
        %128 = sbr.rel (%p125) target = $region54
      $region53: #{custom-call.11} parent=5 // pred_region
        #allocation7 [shape = 's32[8,128]{1,0}', space=vmem, size = 0x1000, scoped, tag = 'scratch for permutations']
        %s129 = ssub.s32 %s9, 1
        %s130 = sand.u32 %s14, 1
        %s131 = sand.u32 %s14, 1
        %s132 = smul.addr %s131, 8
        %s133 = scalar_lea.vmem [#allocation0], %s132
        %s134 = sand.u32 %s14, 1
        %s135 = sand.u32 %s14, 1
        %s136 = smul.addr %s135, 8
        %s137 = scalar_lea.vmem [#allocation0], %s136
        %s138 = sand.u32 %s14, 1
        %s139 = sand.u32 %s14, 1
        %s140 = smul.addr %s139, 8
        %s141 = scalar_lea.vmem [#allocation1], %s140
        %p142 = pneg %p37
        %p143 = pneg %p34
        %s144 = sand.u32 %s24, 1
        %s145 = scalar_lea.sflag [#allocation4], %s144
        %s146 = sand.u32 %s24, 1
        %s147 = smul.addr %s146, 2
        %s148 = scalar_lea.vmem [#allocation3], %s147
        %p149 = pneg %p65
        %p150 = pneg %p62
        %s151 = sand.u32 %s52, 1
        %s152 = sand.u32 %s52, 1
        %s153 = smul.addr %s152, 2
        %s154 = scalar_lea.vmem [#allocation6], %s153
        %s155 = sshrl.u32 %s14, 3
        %s156 = sshrl.u32 %s14, 3
        %v157 = vld [vmem:[%s133] sm:$0xff]
        %158 = vst [vmem:[%s141] sm:$0xff] %v157
        %s159 = sand.u32 %s14, 7
        %s160 = scalar_lea.vmem [#allocation2], %s159
        %s161 = sand.u32 %s14, 7
        %s162 = scalar_lea.vmem [#allocation5], %s161
        %163 = vst [vmem:[%s160] sm:$0x1] 0
        %v164 = vlaneseq
        %v165 = vshrl.u32 %v164, 7
        %v166 = vmov %v165
        %168 = vst [vmem:[#allocation7] sm:$0xff] %v166
        loop: start=0, step=1, limit=8
        $region56: #{custom-call.11} parent=53 // loop_pre_header
          _
        $region57: #{custom-call.11} parent=53 // loop_header
          %s170 = sphi 0, %s174
          %p171 = scmp.ge.s32.totalorder %s170, 8
        $region58: #{custom-call.11} parent=53 // loop_header_branch
          %173 = sbr.rel (%p171) target = $region62
        $region59: #{custom-call.11} parent=53 // loop_body
          %v175 = vstv %s170
          %v176 = vlaneseq
          %v177 = vshrl.u32 %v176, 7
          %v178 = vmov %v177
          %v179 = vld [vmem:[%s141] sm:$0xff]
          %v180 = vand.u32 2147483647, %v179
          %v182 = vstv %s170
          %vm183 = vcmp.ge.s32.totalorder %v178, %v182
          %vm184 = vcmp.lt.s32.totalorder %v178, 8
          %vm185 = vmand %vm183, %vm184
          %vm186 = vcmp.lt.f32.partialorder -inf, %v180
          %vm187 = vmand %vm185, %vm186
          %v188 = vsel %vm187, %v178, %v175
          %v189 = vsel %vm187, %v180, -inf
          %v190 = vrot.slane %v189, 1
          %v191 = vrot.slane %v188, 1
          %vm192 = vcmp.ge.f32.partialorder %v190, %v189
          %v193 = vsel %vm192, %v190, %v189
          %v194 = vsel %vm192, %v191, %v188
          %v195 = vrot.slane %v190, 1
          %v196 = vrot.slane %v191, 1
          %vm197 = vcmp.ge.f32.partialorder %v195, %v193
          %v198 = vsel %vm197, %v195, %v193
          %v199 = vsel %vm197, %v196, %v194
          %v200 = vrot.slane %v195, 1
          %v201 = vrot.slane %v196, 1
          %vm202 = vcmp.ge.f32.partialorder %v200, %v198
          %v203 = vsel %vm202, %v200, %v198
          %v204 = vsel %vm202, %v201, %v199
          %v205 = vrot.slane %v200, 1
          %v206 = vrot.slane %v201, 1
          %vm207 = vcmp.ge.f32.partialorder %v205, %v203
          %v208 = vsel %vm207, %v205, %v203
          %v209 = vsel %vm207, %v206, %v204
          %v210 = vrot.slane %v205, 1
          %v211 = vrot.slane %v206, 1
          %vm212 = vcmp.ge.f32.partialorder %v210, %v208
          %v213 = vsel %vm212, %v210, %v208
          %v214 = vsel %vm212, %v211, %v209
          %v215 = vrot.slane %v210, 1
          %v216 = vrot.slane %v211, 1
          %vm217 = vcmp.ge.f32.partialorder %v215, %v213
          %v218 = vsel %vm217, %v215, %v213
          %v219 = vsel %vm217, %v216, %v214
          %v220 = vrot.slane %v215, 1
          %v221 = vrot.slane %v216, 1
          %vm222 = vcmp.ge.f32.partialorder %v220, %v218
          %v223 = vsel %vm222, %v220, %v218
          %v224 = vsel %vm222, %v221, %v219
          %s225 = ssub.s32 128, %s170
          %226 = vrot.lane.b32.xlu0 %v224, %s225
          %v227 = vpop.permute.xlu0 %226
          %s228 = vtos %v227
          %v229 = vstv %s170
          %v230 = vlaneseq
          %v231 = vand.u32 %v230, 127
          %vm232 = vcmp.eq.s32.totalorder %v231, %v229
          %v233 = vstv %s228
          %v234 = vld [vmem:[%s160] ss:$0 sm:$0xff]
          %v235 = vsel %vm232, %v233, %v234
          %236 = vst [vmem:[%s160] sm:$0x1] %v235
          %s237 = scalar_lea.vmem %s141, %s170 [#allocation1]
          %s238 = scalar_lea.vmem %s141, %s228 [#allocation1]
          %v239 = vld [vmem:[%s237] ss:$0 sm:$0xff]
          %v240 = vld [vmem:[%s238] ss:$0 sm:$0xff]
          %241 = vst [vmem:[%s238] sm:$0x1] %v239
          %242 = vst [vmem:[%s237] sm:$0x1] %v240
          %s243 = scalar_lea.vmem [#allocation7], %s170
          %s244 = scalar_lea.vmem [#allocation7], %s228
          %v245 = vld [vmem:[%s243] ss:$0 sm:$0xff]
          %v246 = vld [vmem:[%s244] ss:$0 sm:$0xff]
          %247 = vst [vmem:[%s244] sm:$0x1] %v245
          %248 = vst [vmem:[%s243] sm:$0x1] %v246
          %vm249 = vcmp.ne.f32.partialorder %v240, 0.0
          %vm250 = vmand %vm232, %vm249
          %v251 = vsel %vm250, %v240, 1.0
          %v252 = vlaneseq
          %v253 = vand.u32 %v252, 127
          %v254 = vstv %s170
          %vm255 = vcmp.gt.s32.totalorder %v253, %v254
          %v256 = vsel %vm255, %v240, 0.0
          %v257 = vlaneseq
          %v258 = vshrl.u32 %v257, 7
          %v259 = vmov %v258
          %v260 = vld [vmem:[%s141] sm:$0xff]
          %v262 = vstv %s170
          %vm263 = vcmp.gt.s32.totalorder %v259, %v262
          %v264 = vsel %vm263, %v251, 1.0
          %v265 = vrcp.pop %v264
          %v266 = vmul.f32 %v260, %v265
          %vm267 = vmand %vm263, %vm232
          %v268 = vsel %vm267, %v266, 0.0
          %269 = vadd.xlane.f32.xlu0 %v268
          %v270 = vpop.xlane.xlu0 %269
          %v271 = vmul.f32 %v270, %v256
          %v272 = vsub.f32 %v266, %v271
          %273 = vst [vmem:[%s141] sm:$0xff] %v272
        $region60: #{custom-call.11} parent=53 // loop_footer
          %s174 = sadd.s32 1, %s170
        $region61: #{custom-call.11} parent=53 // loop_footer_branch
          %169 = sbr.rel target = $region57
        $region62: #{custom-call.11} parent=53 // loop_exit
          _
        %v274 = vld [vmem:[#allocation7] sm:$0xff]
        %s275 = scalar_lea.vmem [#allocation7], 8
        %s276 = scalar_lea.vmem [#allocation7], 16
        %s277 = scalar_lea.vmem [#allocation7], 24
        %s278 = scalar_lea.vmem [#allocation7], 32
        %s279 = scalar_lea.vmem [#allocation7], 40
        %s280 = scalar_lea.vmem [#allocation7], 48
        %s281 = scalar_lea.vmem [#allocation7], 56
        %s282 = scalar_lea.vmem [#allocation7], 64
        %s283 = scalar_lea.vmem [#allocation7], 72
        %s284 = scalar_lea.vmem [#allocation7], 80
        %s285 = scalar_lea.vmem [#allocation7], 88
        %s286 = scalar_lea.vmem [#allocation7], 96
        %s287 = scalar_lea.vmem [#allocation7], 104
        %s288 = scalar_lea.vmem [#allocation7], 112
        %s289 = scalar_lea.vmem [#allocation7], 120
        %290 = vxpose.xlu0.b32.start [1/16] %v274, 128
        %291 = vxpose.xlu0.b32.cont [2/16] 0, 128
        %292 = vxpose.xlu0.b32.cont [3/16] 0, 128
        %293 = vxpose.xlu0.b32.cont [4/16] 0, 128
        %294 = vxpose.xlu0.b32.cont [5/16] 0, 128
        %295 = vxpose.xlu0.b32.cont [6/16] 0, 128
        %296 = vxpose.xlu0.b32.cont [7/16] 0, 128
        %297 = vxpose.xlu0.b32.cont [8/16] 0, 128
        %298 = vxpose.xlu0.b32.cont [9/16] 0, 128
        %299 = vxpose.xlu0.b32.cont [10/16] 0, 128
        %300 = vxpose.xlu0.b32.cont [11/16] 0, 128
        %301 = vxpose.xlu0.b32.cont [12/16] 0, 128
        %302 = vxpose.xlu0.b32.cont [13/16] 0, 128
        %303 = vxpose.xlu0.b32.cont [14/16] 0, 128
        %304 = vxpose.xlu0.b32.cont [15/16] 0, 128
        %305 = vxpose.xlu0.b32.end [16/16] 0, 128
        %v306 = vpop.trf.xlu0
        %v307 = vpop.trf.xlu0
        %v308 = vpop.trf.xlu0
        %v309 = vpop.trf.xlu0
        %v310 = vpop.trf.xlu0
        %v311 = vpop.trf.xlu0
        %v312 = vpop.trf.xlu0
        %v313 = vpop.trf.xlu0
        %v314 = vpop.trf.xlu0
        %v315 = vpop.trf.xlu0
        %v316 = vpop.trf.xlu0
        %v317 = vpop.trf.xlu0
        %v318 = vpop.trf.xlu0
        %v319 = vpop.trf.xlu0
        %v320 = vpop.trf.xlu0
        %v321 = vpop.trf.xlu0
        %322 = vst [vmem:[%s162] sm:$0x1] %v306
        %s324 = sshll.u32 1, 2
        %s325 = ssub.s32 %s324, 1
        %v327 = vld [vmem:[#allocation2] sm:%s325]
        %s328 = sshll.u32 1, 2
        %s329 = ssub.s32 %s328, 1
        %330 = vst [vmem:[%s148] sm:%s329] %v327
        %s332 = sshll.u32 1, 2
        %s333 = ssub.s32 %s332, 1
        %v335 = vld [vmem:[#allocation5] sm:%s333]
        %s336 = sshll.u32 1, 2
        %s337 = ssub.s32 %s336, 1
        %338 = vst [vmem:[%s154] sm:%s337] %v335
        %s339 = sand.u32 %s14, 1
        %s340 = sand.u32 %s14, 1
        %s341 = smul.addr %s340, 8
        %s342 = scalar_lea.vmem [#allocation1], %s341
        %s343 = sand.u32 %s24, 1
        %s344 = scalar_lea.sflag [#allocation4], %s343
        %s345 = sand.u32 %s24, 1
        %s346 = smul.addr %s345, 2
        %s347 = scalar_lea.vmem [#allocation3], %s346
        %s348 = sand.u32 %s52, 1
        %s349 = sand.u32 %s52, 1
        %s350 = smul.addr %s349, 2
        %s351 = scalar_lea.vmem [#allocation6], %s350
        %s352 = smul.addr %s14, 8
        %s353 = scalar_lea.vmem %s1, %s352
        // Predicated region
        $region63: #{custom-call.11} parent=53 // pred_check
          _
        $region64: #{custom-call.11} parent=53 // pred_check_branch
          %355 = sbr.rel (0) target = $region66
        $region65: #{custom-call.11} parent=53 // pred_region
          // Predicated region
          $region67: #{custom-call.11} parent=65 // pred_check
            _
          $region68: #{custom-call.11} parent=65 // pred_check_branch
            %357 = sbr.rel (0) target = $region70
          $region69: #{custom-call.11} parent=65 // pred_region
            // Predicated region
            $region82: #{custom-call.11} parent=69 // pred_check
              _
            $region83: #{custom-call.11} parent=69 // pred_check_branch
              %373 = sbr.rel (0) target = $region85
            $region84: #{custom-call.11} parent=69 // pred_region
              loop: start=0, step=1, limit=1
              $region86: #{custom-call.11} parent=84 // loop_pre_header
                _
              $region87: #{custom-call.11} parent=84 // loop_header
                %s375 = sphi 0, %s379
                %p376 = scmp.ge.s32.totalorder %s375, 1
                %s380 = sphi %s342, %s342
                %s381 = sphi %s353, %s353
              $region88: #{custom-call.11} parent=84 // loop_header_branch
                %378 = sbr.rel (%p376) target = $region92
              $region89: #{custom-call.11} parent=84 // loop_body
                %v382 = vld [vmem:[%s380] sm:$0xff]
                %383 = vst [vmem:[%s381] sm:$0xff] %v382
              $region90: #{custom-call.11} parent=84 // loop_footer
                %s379 = sadd.s32 1, %s375
              $region91: #{custom-call.11} parent=84 // loop_footer_branch
                %374 = sbr.rel target = $region87
              $region92: #{custom-call.11} parent=84 // loop_exit
                _
            $region85: #{custom-call.11} parent=69 // pred_fallthru
              _
            // Predicated region
            $region93: #{custom-call.11} parent=69 // pred_check
              _
            $region94: #{custom-call.11} parent=69 // pred_check_branch
              %385 = sbr.rel target = $region96
            $region95: #{custom-call.11} parent=69 // pred_region
              _
            $region96: #{custom-call.11} parent=69 // pred_fallthru
              _
          $region70: #{custom-call.11} parent=65 // pred_fallthru
            _
          // Predicated region
          $region71: #{custom-call.11} parent=65 // pred_check
            _
          $region72: #{custom-call.11} parent=65 // pred_check_branch
            %359 = sbr.rel target = $region74
          $region73: #{custom-call.11} parent=65 // pred_region
            %s361 = ssub.s32 256, 1
            loop: start=0, step=1, limit=1
            $region75: #{custom-call.11} parent=73 // loop_pre_header
              _
            $region76: #{custom-call.11} parent=73 // loop_header
              %s363 = sphi 0, %s367
              %p364 = scmp.ge.s32.totalorder %s363, 1
              %s368 = sphi %s342, %s342
              %s369 = sphi %s353, %s353
            $region77: #{custom-call.11} parent=73 // loop_header_branch
              %366 = sbr.rel (%p364) target = $region81
            $region78: #{custom-call.11} parent=73 // loop_body
              %v370 = vld [vmem:[%s368] sm:%s361]
              %371 = vst [vmem:[%s369] sm:%s361] %v370
            $region79: #{custom-call.11} parent=73 // loop_footer
              %s367 = sadd.s32 1, %s363
            $region80: #{custom-call.11} parent=73 // loop_footer_branch
              %362 = sbr.rel target = $region76
            $region81: #{custom-call.11} parent=73 // loop_exit
              _
          $region74: #{custom-call.11} parent=65 // pred_fallthru
            _
        $region66: #{custom-call.11} parent=53 // pred_fallthru
          _
        %386 = vnop
        // Predicated region
        $region97: #{custom-call.11} parent=53 // pred_check
          %p387 = pneg %p34
        $region98: #{custom-call.11} parent=53 // pred_check_branch
          %389 = sbr.rel (%p387) target = $region100
        $region99: #{custom-call.11} parent=53 // pred_region
          %s390 = sshrl.u32 %s14, 3
          %s392 = ssub.s32 32, 32
          %393 = vsyncadd %s344, %s392
          %s394 = smul.addr %s390, 32
          %s395 = scalar_lea.hbm %s2, %s394
          %s397 = sshll.u32 %s347, 4
          %s398 = int_to_ptr.vmem [resolvable:$true] %s397
          %400 = dma.vmem_to_hbm [thread:$0]  %s398, 32, %s395, %s344
        $region100: #{custom-call.11} parent=53 // pred_fallthru
          _
        // Predicated region
        $region101: #{custom-call.11} parent=53 // pred_check
          %p401 = pneg %p62
        $region102: #{custom-call.11} parent=53 // pred_check_branch
          %403 = sbr.rel (%p401) target = $region104
        $region103: #{custom-call.11} parent=53 // pred_region
          %s404 = sshrl.u32 %s14, 3
          %s405 = smul.addr %s404, 2
          %s406 = scalar_lea.vmem %s3, %s405
          // Predicated region
          $region105: #{custom-call.11} parent=103 // pred_check
            _
          $region106: #{custom-call.11} parent=103 // pred_check_branch
            %408 = sbr.rel (0) target = $region108
          $region107: #{custom-call.11} parent=103 // pred_region
            // Predicated region
            $region109: #{custom-call.11} parent=107 // pred_check
              _
            $region110: #{custom-call.11} parent=107 // pred_check_branch
              %410 = sbr.rel target = $region112
            $region111: #{custom-call.11} parent=107 // pred_region
              // Predicated region
              $region124: #{custom-call.11} parent=111 // pred_check
                _
              $region125: #{custom-call.11} parent=111 // pred_check_branch
                %426 = sbr.rel (0) target = $region127
              $region126: #{custom-call.11} parent=111 // pred_region
                %s428 = ssub.s32 4, 1
                loop: start=0, step=1, limit=1
                $region128: #{custom-call.11} parent=126 // loop_pre_header
                  _
                $region129: #{custom-call.11} parent=126 // loop_header
                  %s430 = sphi 0, %s434
                  %p431 = scmp.ge.s32.totalorder %s430, 1
                  %s435 = sphi %s351, %s351
                  %s436 = sphi %s406, %s406
                $region130: #{custom-call.11} parent=126 // loop_header_branch
                  %433 = sbr.rel (%p431) target = $region134
                $region131: #{custom-call.11} parent=126 // loop_body
                  %v437 = vld [vmem:[%s435] sm:%s428]
                  %438 = vst [vmem:[%s436] sm:%s428] %v437
                $region132: #{custom-call.11} parent=126 // loop_footer
                  %s434 = sadd.s32 1, %s430
                $region133: #{custom-call.11} parent=126 // loop_footer_branch
                  %429 = sbr.rel target = $region129
                $region134: #{custom-call.11} parent=126 // loop_exit
                  _
              $region127: #{custom-call.11} parent=111 // pred_fallthru
                _
            $region112: #{custom-call.11} parent=107 // pred_fallthru
              _
            // Predicated region
            $region113: #{custom-call.11} parent=107 // pred_check
              _
            $region114: #{custom-call.11} parent=107 // pred_check_branch
              %412 = sbr.rel (0) target = $region116
            $region115: #{custom-call.11} parent=107 // pred_region
              %s414 = ssub.s32 4, 1
              loop: start=0, step=1, limit=1
              $region117: #{custom-call.11} parent=115 // loop_pre_header
                _
              $region118: #{custom-call.11} parent=115 // loop_header
                %s416 = sphi 0, %s420
                %p417 = scmp.ge.s32.totalorder %s416, 1
                %s421 = sphi %s351, %s351
                %s422 = sphi %s406, %s406
              $region119: #{custom-call.11} parent=115 // loop_header_branch
                %419 = sbr.rel (%p417) target = $region123
              $region120: #{custom-call.11} parent=115 // loop_body
                %v423 = vld [vmem:[%s421] sm:%s414]
                %424 = vst [vmem:[%s422] sm:%s414] %v423
              $region121: #{custom-call.11} parent=115 // loop_footer
                %s420 = sadd.s32 1, %s416
              $region122: #{custom-call.11} parent=115 // loop_footer_branch
                %415 = sbr.rel target = $region118
              $region123: #{custom-call.11} parent=115 // loop_exit
                _
            $region116: #{custom-call.11} parent=107 // pred_fallthru
              _
          $region108: #{custom-call.11} parent=103 // pred_fallthru
            _
          %439 = vnop
        $region104: #{custom-call.11} parent=53 // pred_fallthru
          _
      $region54: #{custom-call.11} parent=5 // pred_fallthru
        _
      %p440 = scmp.le.s32.totalorder 2, %s9
      // Predicated region
      $region135: #{custom-call.11} parent=5 // pred_check
        %p441 = pneg %p440
      $region136: #{custom-call.11} parent=5 // pred_check_branch
        %443 = sbr.rel (%p441) target = $region138
      $region137: #{custom-call.11} parent=5 // pred_region
        %s444 = ssub.s32 %s9, 2
        %s445 = sand.u32 %s15, 1
        %s446 = sand.u32 %s15, 1
        %s447 = smul.addr %s446, 8
        %s448 = scalar_lea.vmem [#allocation1], %s447
        // Predicated region
        $region139: #{custom-call.11} parent=137 // pred_check
          %p449 = pneg %p40
        $region140: #{custom-call.11} parent=137 // pred_check_branch
          %451 = sbr.rel (%p449) target = $region142
        $region141: #{custom-call.11} parent=137 // pred_region
          %s452 = sand.u32 %s25, 1
          %s453 = scalar_lea.sflag [#allocation4], %s452
          %s454 = sand.u32 %s25, 1
          %s455 = smul.addr %s454, 2
          %s456 = scalar_lea.vmem [#allocation3], %s455
          %457 = dma.done %s453, 32
        $region142: #{custom-call.11} parent=137 // pred_fallthru
          _
        // Predicated region
        $region143: #{custom-call.11} parent=137 // pred_check
          %p458 = pneg %p68
        $region144: #{custom-call.11} parent=137 // pred_check_branch
          %460 = sbr.rel (%p458) target = $region146
        $region145: #{custom-call.11} parent=137 // pred_region
          %s461 = sand.u32 %s53, 1
          %s462 = sand.u32 %s53, 1
          %s463 = smul.addr %s462, 2
          %s464 = scalar_lea.vmem [#allocation6], %s463
        $region146: #{custom-call.11} parent=137 // pred_fallthru
          _
      $region138: #{custom-call.11} parent=5 // pred_fallthru
        _
    $region6: #{custom-call.11} parent=1 // loop_footer
      %s13 = sadd.s32 1, %s9
    $region7: #{custom-call.11} parent=1 // loop_footer_branch
      %8 = sbr.rel target = $region3
    $region8: #{custom-call.11} parent=1 // loop_exit
      _
    %465 = vsyncpa [#allocation4], 1
    %s466 = scalar_lea.sflag [#allocation4], 1
    %467 = vsyncpa %s466, 1

// kernel: custom-call.13
$region0: #{custom-call.13}
  %s0 = inlined_call_operand.vmem [shape: f32[2,1,8,8], index: 0, kind: input, shape index: {}]
  %s1 = inlined_call_operand.vmem [shape: f32[2,1,8,8], index: 1, kind: output, shape index: {}]
  $region1: #{custom-call.13} parent=0
    #allocation0 [shape = 'u8[8192]{0}', space=vmem, size = 0x2000, scoped, tag = 'operand span for operand 0']
    #allocation1 [shape = 'u8[8192]{0}', space=vmem, size = 0x2000, scoped, tag = 'operand span for operand 1']
    loop: start=0, step=1, limit=4
    $region2: #{custom-call.13} parent=1 // loop_pre_header
      _
    $region3: #{custom-call.13} parent=1 // loop_header
      %s3 = sphi 0, %s7
      %p4 = scmp.ge.s32.totalorder %s3, 4
      %s10 = sphi 0, %s36
      %s11 = sphi 0, %s32
      %s12 = sphi 0, %s28
      %s13 = sphi 0, %s24
      %s14 = sphi 0, %s10
      %s15 = sphi 0, %s11
      %s16 = sphi 0, %s12
      %s17 = sphi 0, %s13
      %s18 = sphi 0, %s14
      %s19 = sphi 0, %s15
      %s20 = sphi 0, %s16
      %s21 = sphi 0, %s17
    $region4: #{custom-call.13} parent=1 // loop_header_branch
      %6 = sbr.rel (%p4) target = $region8
    $region5: #{custom-call.13} parent=1 // loop_body
      %s8 = ssub.s32 %s3, 1
      %s9 = ssub.s32 %s3, 2
      %s22 = sadd.s32 1, %s13
      %p23 = scmp.ge.s32.totalorder %s22, 1
      %s24 = scalar_select %p23, 0, %s22
      %s25 = sadd.s32 1, %s12
      %s26 = scalar_select %p23, %s25, %s12
      %p27 = scmp.ge.s32.totalorder %s26, 1
      %s28 = scalar_select %p27, 0, %s26
      %s29 = sadd.s32 1, %s11
      %s30 = scalar_select %p27, %s29, %s11
      %p31 = scmp.ge.s32.totalorder %s30, 1
      %s32 = scalar_select %p31, 0, %s30
      %s33 = sadd.s32 1, %s10
      %s34 = scalar_select %p31, %s33, %s10
      %p35 = scmp.ge.s32.totalorder %s34, 2
      %s36 = scalar_select %p35, 0, %s34
      %p37 = scmp.le.s32.totalorder 1, %s3
      %p38 = scmp.lt.s32.totalorder %s3, 3
      %p39 = pnand %p37, %p38
      %p40 = pneg %p39
      // Predicated region
      $region9: #{custom-call.13} parent=5 // pred_check
        _
      $region10: #{custom-call.13} parent=5 // pred_check_branch
        %42 = sbr.rel (%p39) target = $region12
      $region11: #{custom-call.13} parent=5 // pred_region
        %s43 = ssub.s32 %s3, 1
      $region12: #{custom-call.13} parent=5 // pred_fallthru
        _
      %p44 = scmp.lt.s32.totalorder %s3, 2
      // Predicated region
      $region13: #{custom-call.13} parent=5 // pred_check
        %p45 = pneg %p44
      $region14: #{custom-call.13} parent=5 // pred_check_branch
        %47 = sbr.rel (%p45) target = $region16
      $region15: #{custom-call.13} parent=5 // pred_region
        %s48 = sand.u32 %s3, 1
        %s49 = sand.u32 %s3, 1
        %s50 = smul.addr %s49, 8
        %s51 = scalar_lea.vmem [#allocation0], %s50
        %s52 = sadd.s32 %s13, %s12
        %s53 = sadd.s32 %s52, %s11
        %s54 = sadd.s32 %s53, %s10
        %s55 = smul.addr %s54, 8
        %s56 = scalar_lea.vmem %s0, %s55
        // Predicated region
        $region17: #{custom-call.13} parent=15 // pred_check
          _
        $region18: #{custom-call.13} parent=15 // pred_check_branch
          %58 = sbr.rel (0) target = $region20
        $region19: #{custom-call.13} parent=15 // pred_region
          // Predicated region
          $region21: #{custom-call.13} parent=19 // pred_check
            _
          $region22: #{custom-call.13} parent=19 // pred_check_branch
            %60 = sbr.rel (0) target = $region24
          $region23: #{custom-call.13} parent=19 // pred_region
            // Predicated region
            $region36: #{custom-call.13} parent=23 // pred_check
              _
            $region37: #{custom-call.13} parent=23 // pred_check_branch
              %76 = sbr.rel (0) target = $region39
            $region38: #{custom-call.13} parent=23 // pred_region
              loop: start=0, step=1, limit=1
              $region40: #{custom-call.13} parent=38 // loop_pre_header
                _
              $region41: #{custom-call.13} parent=38 // loop_header
                %s78 = sphi 0, %s82
                %p79 = scmp.ge.s32.totalorder %s78, 1
                %s83 = sphi %s56, %s56
                %s84 = sphi %s51, %s51
              $region42: #{custom-call.13} parent=38 // loop_header_branch
                %81 = sbr.rel (%p79) target = $region46
              $region43: #{custom-call.13} parent=38 // loop_body
                %v85 = vld [vmem:[%s83] sm:$0xff]
                %86 = vst [vmem:[%s84] sm:$0xff] %v85
              $region44: #{custom-call.13} parent=38 // loop_footer
                %s82 = sadd.s32 1, %s78
              $region45: #{custom-call.13} parent=38 // loop_footer_branch
                %77 = sbr.rel target = $region41
              $region46: #{custom-call.13} parent=38 // loop_exit
                _
            $region39: #{custom-call.13} parent=23 // pred_fallthru
              _
            // Predicated region
            $region47: #{custom-call.13} parent=23 // pred_check
              _
            $region48: #{custom-call.13} parent=23 // pred_check_branch
              %88 = sbr.rel target = $region50
            $region49: #{custom-call.13} parent=23 // pred_region
              _
            $region50: #{custom-call.13} parent=23 // pred_fallthru
              _
          $region24: #{custom-call.13} parent=19 // pred_fallthru
            _
          // Predicated region
          $region25: #{custom-call.13} parent=19 // pred_check
            _
          $region26: #{custom-call.13} parent=19 // pred_check_branch
            %62 = sbr.rel target = $region28
          $region27: #{custom-call.13} parent=19 // pred_region
            %s64 = ssub.s32 256, 1
            loop: start=0, step=1, limit=1
            $region29: #{custom-call.13} parent=27 // loop_pre_header
              _
            $region30: #{custom-call.13} parent=27 // loop_header
              %s66 = sphi 0, %s70
              %p67 = scmp.ge.s32.totalorder %s66, 1
              %s71 = sphi %s56, %s56
              %s72 = sphi %s51, %s51
            $region31: #{custom-call.13} parent=27 // loop_header_branch
              %69 = sbr.rel (%p67) target = $region35
            $region32: #{custom-call.13} parent=27 // loop_body
              %v73 = vld [vmem:[%s71] sm:%s64]
              %74 = vst [vmem:[%s72] sm:%s64] %v73
            $region33: #{custom-call.13} parent=27 // loop_footer
              %s70 = sadd.s32 1, %s66
            $region34: #{custom-call.13} parent=27 // loop_footer_branch
              %65 = sbr.rel target = $region30
            $region35: #{custom-call.13} parent=27 // loop_exit
              _
          $region28: #{custom-call.13} parent=19 // pred_fallthru
            _
        $region20: #{custom-call.13} parent=15 // pred_fallthru
          _
        %89 = vnop
      $region16: #{custom-call.13} parent=5 // pred_fallthru
        _
      %p90 = scmp.le.s32.totalorder 1, %s3
      %p91 = scmp.lt.s32.totalorder %s3, 3
      %p92 = pnand %p90, %p91
      %p93 = pneg %p92
      // Predicated region
      $region51: #{custom-call.13} parent=5 // pred_check
        _
      $region52: #{custom-call.13} parent=5 // pred_check_branch
        %95 = sbr.rel (%p92) target = $region54
      $region53: #{custom-call.13} parent=5 // pred_region
        #allocation2 [shape = 'f32[8,8]{1,0}', space=vmem, size = 0x1000, scoped, tag = 'rescaled input a']
        %s96 = ssub.s32 %s3, 1
        %s97 = sand.u32 %s8, 1
        %s98 = sand.u32 %s8, 1
        %s99 = smul.addr %s98, 8
        %s100 = scalar_lea.vmem [#allocation0], %s99
        %s101 = sand.u32 %s8, 1
        %s102 = sand.u32 %s8, 1
        %s103 = smul.addr %s102, 8
        %s104 = scalar_lea.vmem [#allocation0], %s103
        %s105 = sand.u32 %s8, 1
        %s106 = sand.u32 %s8, 1
        %s107 = smul.addr %s106, 8
        %s108 = scalar_lea.vmem [#allocation1], %s107
        %v109 = vlaneseq
        %v110 = vand.u32 %v109, 127
        %vm111 = vcmp.lt.s32.totalorder %v110, 8
        %v112 = vlaneseq
        %v113 = vshrl.u32 %v112, 7
        %vm115 = vcmp.eq.s32.totalorder %v113, %v110
        %v116 = vld [vmem:[%s100] sm:$0xff]
        %v117 = vsel %vm115, %v116, 0.0
        %118 = vadd.xlane.f32.xlu0 %v117
        %v119 = vpop.xlane.xlu0 %118
        %vm120 = vcmp.ge.s32.totalorder %v113, %v110
        %vm121 = vmand %vm120, %vm111
        %v122 = vsel %vm121, %v116, 0.0
        %v123 = vrcp.pop %v119
        %v124 = vmul.f32 %v122, %v123
        %125 = vst [vmem:[#allocation2] sm:$0xff] %v124
        %v126 = vlaneseq
        %v127 = vand.u32 %v126, 127
        %v128 = vlaneseq
        %v129 = vshrl.u32 %v128, 7
        %vm131 = vcmp.eq.s32.totalorder %v127, %v129
        %v132 = vlaneseq
        %v133 = vand.u32 %v132, 127
        %vm134 = vcmp.eq.s32.totalorder %v133, 0
        %v135 = vsel %vm134, 1.0, -1.0
        %v136 = vsel %vm131, %v135, 0.0
        %s137 = scalar_lea.vmem [#allocation2], 1
        %v138 = vld [vmem:[%s137] ss:$0 sm:$0xff]
        %v139 = vxor.u32 %v138, 2147483648
        %v140 = vlaneseq
        %v141 = vand.u32 %v140, 127
        %vm142 = vcmp.eq.s32.totalorder %v141, 1
        %v143 = vmul.f32 %v139, %v136
        %144 = vadd.xlane.f32.xlu0 %v143
        %v145 = vpop.xlane.xlu0 %144
        %v146 = vsel %vm142, %v145, %v136
        %s147 = scalar_lea.vmem [#allocation2], 2
        %v148 = vld [vmem:[%s147] ss:$0 sm:$0xff]
        %v149 = vxor.u32 %v148, 2147483648
        %v150 = vlaneseq
        %v151 = vand.u32 %v150, 127
        %vm152 = vcmp.eq.s32.totalorder %v151, 2
        %v153 = vmul.f32 %v149, %v146
        %154 = vadd.xlane.f32.xlu0 %v153
        %v155 = vpop.xlane.xlu0 %154
        %v156 = vsel %vm152, %v155, %v146
        %s157 = scalar_lea.vmem [#allocation2], 3
        %v158 = vld [vmem:[%s157] ss:$0 sm:$0xff]
        %v159 = vxor.u32 %v158, 2147483648
        %v160 = vlaneseq
        %v161 = vand.u32 %v160, 127
        %vm162 = vcmp.eq.s32.totalorder %v161, 3
        %v163 = vmul.f32 %v159, %v156
        %164 = vadd.xlane.f32.xlu0 %v163
        %v165 = vpop.xlane.xlu0 %164
        %v166 = vsel %vm162, %v165, %v156
        %s167 = scalar_lea.vmem [#allocation2], 4
        %v168 = vld [vmem:[%s167] ss:$0 sm:$0xff]
        %v169 = vxor.u32 %v168, 2147483648
        %v170 = vlaneseq
        %v171 = vand.u32 %v170, 127
        %vm172 = vcmp.eq.s32.totalorder %v171, 4
        %v173 = vmul.f32 %v169, %v166
        %174 = vadd.xlane.f32.xlu0 %v173
        %v175 = vpop.xlane.xlu0 %174
        %v176 = vsel %vm172, %v175, %v166
        %s177 = scalar_lea.vmem [#allocation2], 5
        %v178 = vld [vmem:[%s177] ss:$0 sm:$0xff]
        %v179 = vxor.u32 %v178, 2147483648
        %v180 = vlaneseq
        %v181 = vand.u32 %v180, 127
        %vm182 = vcmp.eq.s32.totalorder %v181, 5
        %v183 = vmul.f32 %v179, %v176
        %184 = vadd.xlane.f32.xlu0 %v183
        %v185 = vpop.xlane.xlu0 %184
        %v186 = vsel %vm182, %v185, %v176
        %s187 = scalar_lea.vmem [#allocation2], 6
        %v188 = vld [vmem:[%s187] ss:$0 sm:$0xff]
        %v189 = vxor.u32 %v188, 2147483648
        %v190 = vlaneseq
        %v191 = vand.u32 %v190, 127
        %vm192 = vcmp.eq.s32.totalorder %v191, 6
        %v193 = vmul.f32 %v189, %v186
        %194 = vadd.xlane.f32.xlu0 %v193
        %v195 = vpop.xlane.xlu0 %194
        %v196 = vsel %vm192, %v195, %v186
        %s197 = scalar_lea.vmem [#allocation2], 7
        %v198 = vld [vmem:[%s197] ss:$0 sm:$0xff]
        %v199 = vxor.u32 %v198, 2147483648
        %v200 = vlaneseq
        %v201 = vand.u32 %v200, 127
        %vm202 = vcmp.eq.s32.totalorder %v201, 7
        %v203 = vmul.f32 %v199, %v196
        %204 = vadd.xlane.f32.xlu0 %v203
        %v205 = vpop.xlane.xlu0 %204
        %v206 = vsel %vm202, %v205, %v196
        %v207 = vrcp.pop %v119
        %v208 = vmul.f32 %v206, %v207
        %vm209 = vweird.f32 %v119
        %v210 = vsel %vm209, %v206, %v208
        %211 = vst [vmem:[%s108] sm:$0xff] %v210
        %s212 = sand.u32 %s8, 1
        %s213 = sand.u32 %s8, 1
        %s214 = smul.addr %s213, 8
        %s215 = scalar_lea.vmem [#allocation1], %s214
        %s216 = sadd.s32 %s17, %s16
        %s217 = sadd.s32 %s216, %s15
        %s218 = sadd.s32 %s217, %s14
        %s219 = smul.addr %s218, 8
        %s220 = scalar_lea.vmem %s1, %s219
        // Predicated region
        $region55: #{custom-call.13} parent=53 // pred_check
          _
        $region56: #{custom-call.13} parent=53 // pred_check_branch
          %222 = sbr.rel (0) target = $region58
        $region57: #{custom-call.13} parent=53 // pred_region
          // Predicated region
          $region59: #{custom-call.13} parent=57 // pred_check
            _
          $region60: #{custom-call.13} parent=57 // pred_check_branch
            %224 = sbr.rel (0) target = $region62
          $region61: #{custom-call.13} parent=57 // pred_region
            // Predicated region
            $region74: #{custom-call.13} parent=61 // pred_check
              _
            $region75: #{custom-call.13} parent=61 // pred_check_branch
              %240 = sbr.rel (0) target = $region77
            $region76: #{custom-call.13} parent=61 // pred_region
              loop: start=0, step=1, limit=1
              $region78: #{custom-call.13} parent=76 // loop_pre_header
                _
              $region79: #{custom-call.13} parent=76 // loop_header
                %s242 = sphi 0, %s246
                %p243 = scmp.ge.s32.totalorder %s242, 1
                %s247 = sphi %s215, %s215
                %s248 = sphi %s220, %s220
              $region80: #{custom-call.13} parent=76 // loop_header_branch
                %245 = sbr.rel (%p243) target = $region84
              $region81: #{custom-call.13} parent=76 // loop_body
                %v249 = vld [vmem:[%s247] sm:$0xff]
                %250 = vst [vmem:[%s248] sm:$0xff] %v249
              $region82: #{custom-call.13} parent=76 // loop_footer
                %s246 = sadd.s32 1, %s242
              $region83: #{custom-call.13} parent=76 // loop_footer_branch
                %241 = sbr.rel target = $region79
              $region84: #{custom-call.13} parent=76 // loop_exit
                _
            $region77: #{custom-call.13} parent=61 // pred_fallthru
              _
            // Predicated region
            $region85: #{custom-call.13} parent=61 // pred_check
              _
            $region86: #{custom-call.13} parent=61 // pred_check_branch
              %252 = sbr.rel target = $region88
            $region87: #{custom-call.13} parent=61 // pred_region
              _
            $region88: #{custom-call.13} parent=61 // pred_fallthru
              _
          $region62: #{custom-call.13} parent=57 // pred_fallthru
            _
          // Predicated region
          $region63: #{custom-call.13} parent=57 // pred_check
            _
          $region64: #{custom-call.13} parent=57 // pred_check_branch
            %226 = sbr.rel target = $region66
          $region65: #{custom-call.13} parent=57 // pred_region
            %s228 = ssub.s32 256, 1
            loop: start=0, step=1, limit=1
            $region67: #{custom-call.13} parent=65 // loop_pre_header
              _
            $region68: #{custom-call.13} parent=65 // loop_header
              %s230 = sphi 0, %s234
              %p231 = scmp.ge.s32.totalorder %s230, 1
              %s235 = sphi %s215, %s215
              %s236 = sphi %s220, %s220
            $region69: #{custom-call.13} parent=65 // loop_header_branch
              %233 = sbr.rel (%p231) target = $region73
            $region70: #{custom-call.13} parent=65 // loop_body
              %v237 = vld [vmem:[%s235] sm:%s228]
              %238 = vst [vmem:[%s236] sm:%s228] %v237
            $region71: #{custom-call.13} parent=65 // loop_footer
              %s234 = sadd.s32 1, %s230
            $region72: #{custom-call.13} parent=65 // loop_footer_branch
              %229 = sbr.rel target = $region68
            $region73: #{custom-call.13} parent=65 // loop_exit
              _
          $region66: #{custom-call.13} parent=57 // pred_fallthru
            _
        $region58: #{custom-call.13} parent=53 // pred_fallthru
          _
        %253 = vnop
      $region54: #{custom-call.13} parent=5 // pred_fallthru
        _
      %p254 = scmp.le.s32.totalorder 2, %s3
      // Predicated region
      $region89: #{custom-call.13} parent=5 // pred_check
        %p255 = pneg %p254
      $region90: #{custom-call.13} parent=5 // pred_check_branch
        %257 = sbr.rel (%p255) target = $region92
      $region91: #{custom-call.13} parent=5 // pred_region
        %s258 = ssub.s32 %s3, 2
        %s259 = sand.u32 %s9, 1
        %s260 = sand.u32 %s9, 1
        %s261 = smul.addr %s260, 8
        %s262 = scalar_lea.vmem [#allocation1], %s261
      $region92: #{custom-call.13} parent=5 // pred_fallthru
        _
    $region6: #{custom-call.13} parent=1 // loop_footer
      %s7 = sadd.s32 1, %s3
    $region7: #{custom-call.13} parent=1 // loop_footer_branch
      %2 = sbr.rel target = $region3
    $region8: #{custom-call.13} parent=1 // loop_exit
      _

// kernel: custom-call.12
$region0: #{custom-call.12}
  %s0 = inlined_call_operand.vmem [shape: f32[2,1,8,8], index: 0, kind: input, shape index: {}]
  %s1 = inlined_call_operand.vmem [shape: f32[2,1,8,8], index: 1, kind: output, shape index: {}]
  $region1: #{custom-call.12} parent=0
    #allocation0 [shape = 'u8[8192]{0}', space=vmem, size = 0x2000, scoped, tag = 'operand span for operand 0']
    #allocation1 [shape = 'u8[8192]{0}', space=vmem, size = 0x2000, scoped, tag = 'operand span for operand 1']
    loop: start=0, step=1, limit=4
    $region2: #{custom-call.12} parent=1 // loop_pre_header
      _
    $region3: #{custom-call.12} parent=1 // loop_header
      %s3 = sphi 0, %s7
      %p4 = scmp.ge.s32.totalorder %s3, 4
      %s10 = sphi 0, %s36
      %s11 = sphi 0, %s32
      %s12 = sphi 0, %s28
      %s13 = sphi 0, %s24
      %s14 = sphi 0, %s10
      %s15 = sphi 0, %s11
      %s16 = sphi 0, %s12
      %s17 = sphi 0, %s13
      %s18 = sphi 0, %s14
      %s19 = sphi 0, %s15
      %s20 = sphi 0, %s16
      %s21 = sphi 0, %s17
    $region4: #{custom-call.12} parent=1 // loop_header_branch
      %6 = sbr.rel (%p4) target = $region8
    $region5: #{custom-call.12} parent=1 // loop_body
      %s8 = ssub.s32 %s3, 1
      %s9 = ssub.s32 %s3, 2
      %s22 = sadd.s32 1, %s13
      %p23 = scmp.ge.s32.totalorder %s22, 1
      %s24 = scalar_select %p23, 0, %s22
      %s25 = sadd.s32 1, %s12
      %s26 = scalar_select %p23, %s25, %s12
      %p27 = scmp.ge.s32.totalorder %s26, 1
      %s28 = scalar_select %p27, 0, %s26
      %s29 = sadd.s32 1, %s11
      %s30 = scalar_select %p27, %s29, %s11
      %p31 = scmp.ge.s32.totalorder %s30, 1
      %s32 = scalar_select %p31, 0, %s30
      %s33 = sadd.s32 1, %s10
      %s34 = scalar_select %p31, %s33, %s10
      %p35 = scmp.ge.s32.totalorder %s34, 2
      %s36 = scalar_select %p35, 0, %s34
      %p37 = scmp.le.s32.totalorder 1, %s3
      %p38 = scmp.lt.s32.totalorder %s3, 3
      %p39 = pnand %p37, %p38
      %p40 = pneg %p39
      // Predicated region
      $region9: #{custom-call.12} parent=5 // pred_check
        _
      $region10: #{custom-call.12} parent=5 // pred_check_branch
        %42 = sbr.rel (%p39) target = $region12
      $region11: #{custom-call.12} parent=5 // pred_region
        %s43 = ssub.s32 %s3, 1
      $region12: #{custom-call.12} parent=5 // pred_fallthru
        _
      %p44 = scmp.lt.s32.totalorder %s3, 2
      // Predicated region
      $region13: #{custom-call.12} parent=5 // pred_check
        %p45 = pneg %p44
      $region14: #{custom-call.12} parent=5 // pred_check_branch
        %47 = sbr.rel (%p45) target = $region16
      $region15: #{custom-call.12} parent=5 // pred_region
        %s48 = sand.u32 %s3, 1
        %s49 = sand.u32 %s3, 1
        %s50 = smul.addr %s49, 8
        %s51 = scalar_lea.vmem [#allocation0], %s50
        %s52 = sadd.s32 %s13, %s12
        %s53 = sadd.s32 %s52, %s11
        %s54 = sadd.s32 %s53, %s10
        %s55 = smul.addr %s54, 8
        %s56 = scalar_lea.vmem %s0, %s55
        // Predicated region
        $region17: #{custom-call.12} parent=15 // pred_check
          _
        $region18: #{custom-call.12} parent=15 // pred_check_branch
          %58 = sbr.rel (0) target = $region20
        $region19: #{custom-call.12} parent=15 // pred_region
          // Predicated region
          $region21: #{custom-call.12} parent=19 // pred_check
            _
          $region22: #{custom-call.12} parent=19 // pred_check_branch
            %60 = sbr.rel (0) target = $region24
          $region23: #{custom-call.12} parent=19 // pred_region
            // Predicated region
            $region36: #{custom-call.12} parent=23 // pred_check
              _
            $region37: #{custom-call.12} parent=23 // pred_check_branch
              %76 = sbr.rel (0) target = $region39
            $region38: #{custom-call.12} parent=23 // pred_region
              loop: start=0, step=1, limit=1
              $region40: #{custom-call.12} parent=38 // loop_pre_header
                _
              $region41: #{custom-call.12} parent=38 // loop_header
                %s78 = sphi 0, %s82
                %p79 = scmp.ge.s32.totalorder %s78, 1
                %s83 = sphi %s56, %s56
                %s84 = sphi %s51, %s51
              $region42: #{custom-call.12} parent=38 // loop_header_branch
                %81 = sbr.rel (%p79) target = $region46
              $region43: #{custom-call.12} parent=38 // loop_body
                %v85 = vld [vmem:[%s83] sm:$0xff]
                %86 = vst [vmem:[%s84] sm:$0xff] %v85
              $region44: #{custom-call.12} parent=38 // loop_footer
                %s82 = sadd.s32 1, %s78
              $region45: #{custom-call.12} parent=38 // loop_footer_branch
                %77 = sbr.rel target = $region41
              $region46: #{custom-call.12} parent=38 // loop_exit
                _
            $region39: #{custom-call.12} parent=23 // pred_fallthru
              _
            // Predicated region
            $region47: #{custom-call.12} parent=23 // pred_check
              _
            $region48: #{custom-call.12} parent=23 // pred_check_branch
              %88 = sbr.rel target = $region50
            $region49: #{custom-call.12} parent=23 // pred_region
              _
            $region50: #{custom-call.12} parent=23 // pred_fallthru
              _
          $region24: #{custom-call.12} parent=19 // pred_fallthru
            _
          // Predicated region
          $region25: #{custom-call.12} parent=19 // pred_check
            _
          $region26: #{custom-call.12} parent=19 // pred_check_branch
            %62 = sbr.rel target = $region28
          $region27: #{custom-call.12} parent=19 // pred_region
            %s64 = ssub.s32 256, 1
            loop: start=0, step=1, limit=1
            $region29: #{custom-call.12} parent=27 // loop_pre_header
              _
            $region30: #{custom-call.12} parent=27 // loop_header
              %s66 = sphi 0, %s70
              %p67 = scmp.ge.s32.totalorder %s66, 1
              %s71 = sphi %s56, %s56
              %s72 = sphi %s51, %s51
            $region31: #{custom-call.12} parent=27 // loop_header_branch
              %69 = sbr.rel (%p67) target = $region35
            $region32: #{custom-call.12} parent=27 // loop_body
              %v73 = vld [vmem:[%s71] sm:%s64]
              %74 = vst [vmem:[%s72] sm:%s64] %v73
            $region33: #{custom-call.12} parent=27 // loop_footer
              %s70 = sadd.s32 1, %s66
            $region34: #{custom-call.12} parent=27 // loop_footer_branch
              %65 = sbr.rel target = $region30
            $region35: #{custom-call.12} parent=27 // loop_exit
              _
          $region28: #{custom-call.12} parent=19 // pred_fallthru
            _
        $region20: #{custom-call.12} parent=15 // pred_fallthru
          _
        %89 = vnop
      $region16: #{custom-call.12} parent=5 // pred_fallthru
        _
      %p90 = scmp.le.s32.totalorder 1, %s3
      %p91 = scmp.lt.s32.totalorder %s3, 3
      %p92 = pnand %p90, %p91
      %p93 = pneg %p92
      // Predicated region
      $region51: #{custom-call.12} parent=5 // pred_check
        _
      $region52: #{custom-call.12} parent=5 // pred_check_branch
        %95 = sbr.rel (%p92) target = $region54
      $region53: #{custom-call.12} parent=5 // pred_region
        #allocation2 [shape = 'f32[8,8]{1,0}', space=vmem, size = 0x1000, scoped, tag = 'rescaled input a']
        %s96 = ssub.s32 %s3, 1
        %s97 = sand.u32 %s8, 1
        %s98 = sand.u32 %s8, 1
        %s99 = smul.addr %s98, 8
        %s100 = scalar_lea.vmem [#allocation0], %s99
        %s101 = sand.u32 %s8, 1
        %s102 = sand.u32 %s8, 1
        %s103 = smul.addr %s102, 8
        %s104 = scalar_lea.vmem [#allocation0], %s103
        %s105 = sand.u32 %s8, 1
        %s106 = sand.u32 %s8, 1
        %s107 = smul.addr %s106, 8
        %s108 = scalar_lea.vmem [#allocation1], %s107
        %v109 = vlaneseq
        %v110 = vand.u32 %v109, 127
        %vm111 = vcmp.lt.s32.totalorder %v110, 8
        %v112 = vlaneseq
        %v113 = vshrl.u32 %v112, 7
        %vm115 = vcmp.eq.s32.totalorder %v113, %v110
        %v116 = vld [vmem:[%s100] sm:$0xff]
        %v117 = vsel %vm115, %v116, 0.0
        %118 = vadd.xlane.f32.xlu0 %v117
        %v119 = vpop.xlane.xlu0 %118
        %vm120 = vcmp.le.s32.totalorder %v113, %v110
        %vm121 = vmand %vm120, %vm111
        %v122 = vsel %vm121, %v116, 0.0
        %v123 = vrcp.pop %v119
        %v124 = vmul.f32 %v122, %v123
        %125 = vst [vmem:[#allocation2] sm:$0xff] %v124
        %v126 = vlaneseq
        %v127 = vand.u32 %v126, 127
        %v128 = vlaneseq
        %v129 = vshrl.u32 %v128, 7
        %vm131 = vcmp.eq.s32.totalorder %v127, %v129
        %v132 = vlaneseq
        %v133 = vand.u32 %v132, 127
        %vm134 = vcmp.eq.s32.totalorder %v133, 7
        %v135 = vsel %vm134, 1.0, -1.0
        %v136 = vsel %vm131, %v135, 0.0
        %s137 = scalar_lea.vmem [#allocation2], 6
        %v138 = vld [vmem:[%s137] ss:$0 sm:$0xff]
        %v139 = vxor.u32 %v138, 2147483648
        %v140 = vlaneseq
        %v141 = vand.u32 %v140, 127
        %vm142 = vcmp.eq.s32.totalorder %v141, 6
        %v143 = vmul.f32 %v139, %v136
        %144 = vadd.xlane.f32.xlu0 %v143
        %v145 = vpop.xlane.xlu0 %144
        %v146 = vsel %vm142, %v145, %v136
        %s147 = scalar_lea.vmem [#allocation2], 5
        %v148 = vld [vmem:[%s147] ss:$0 sm:$0xff]
        %v149 = vxor.u32 %v148, 2147483648
        %v150 = vlaneseq
        %v151 = vand.u32 %v150, 127
        %vm152 = vcmp.eq.s32.totalorder %v151, 5
        %v153 = vmul.f32 %v149, %v146
        %154 = vadd.xlane.f32.xlu0 %v153
        %v155 = vpop.xlane.xlu0 %154
        %v156 = vsel %vm152, %v155, %v146
        %s157 = scalar_lea.vmem [#allocation2], 4
        %v158 = vld [vmem:[%s157] ss:$0 sm:$0xff]
        %v159 = vxor.u32 %v158, 2147483648
        %v160 = vlaneseq
        %v161 = vand.u32 %v160, 127
        %vm162 = vcmp.eq.s32.totalorder %v161, 4
        %v163 = vmul.f32 %v159, %v156
        %164 = vadd.xlane.f32.xlu0 %v163
        %v165 = vpop.xlane.xlu0 %164
        %v166 = vsel %vm162, %v165, %v156
        %s167 = scalar_lea.vmem [#allocation2], 3
        %v168 = vld [vmem:[%s167] ss:$0 sm:$0xff]
        %v169 = vxor.u32 %v168, 2147483648
        %v170 = vlaneseq
        %v171 = vand.u32 %v170, 127
        %vm172 = vcmp.eq.s32.totalorder %v171, 3
        %v173 = vmul.f32 %v169, %v166
        %174 = vadd.xlane.f32.xlu0 %v173
        %v175 = vpop.xlane.xlu0 %174
        %v176 = vsel %vm172, %v175, %v166
        %s177 = scalar_lea.vmem [#allocation2], 2
        %v178 = vld [vmem:[%s177] ss:$0 sm:$0xff]
        %v179 = vxor.u32 %v178, 2147483648
        %v180 = vlaneseq
        %v181 = vand.u32 %v180, 127
        %vm182 = vcmp.eq.s32.totalorder %v181, 2
        %v183 = vmul.f32 %v179, %v176
        %184 = vadd.xlane.f32.xlu0 %v183
        %v185 = vpop.xlane.xlu0 %184
        %v186 = vsel %vm182, %v185, %v176
        %s187 = scalar_lea.vmem [#allocation2], 1
        %v188 = vld [vmem:[%s187] ss:$0 sm:$0xff]
        %v189 = vxor.u32 %v188, 2147483648
        %v190 = vlaneseq
        %v191 = vand.u32 %v190, 127
        %vm192 = vcmp.eq.s32.totalorder %v191, 1
        %v193 = vmul.f32 %v189, %v186
        %194 = vadd.xlane.f32.xlu0 %v193
        %v195 = vpop.xlane.xlu0 %194
        %v196 = vsel %vm192, %v195, %v186
        %v197 = vld [vmem:[#allocation2] ss:$0 sm:$0xff]
        %v198 = vxor.u32 %v197, 2147483648
        %v199 = vlaneseq
        %v200 = vand.u32 %v199, 127
        %vm201 = vcmp.eq.s32.totalorder %v200, 0
        %v202 = vmul.f32 %v198, %v196
        %203 = vadd.xlane.f32.xlu0 %v202
        %v204 = vpop.xlane.xlu0 %203
        %v205 = vsel %vm201, %v204, %v196
        %v206 = vrcp.pop %v119
        %v207 = vmul.f32 %v205, %v206
        %vm208 = vweird.f32 %v119
        %v209 = vsel %vm208, %v205, %v207
        %210 = vst [vmem:[%s108] sm:$0xff] %v209
        %s211 = sand.u32 %s8, 1
        %s212 = sand.u32 %s8, 1
        %s213 = smul.addr %s212, 8
        %s214 = scalar_lea.vmem [#allocation1], %s213
        %s215 = sadd.s32 %s17, %s16
        %s216 = sadd.s32 %s215, %s15
        %s217 = sadd.s32 %s216, %s14
        %s218 = smul.addr %s217, 8
        %s219 = scalar_lea.vmem %s1, %s218
        // Predicated region
        $region55: #{custom-call.12} parent=53 // pred_check
          _
        $region56: #{custom-call.12} parent=53 // pred_check_branch
          %221 = sbr.rel (0) target = $region58
        $region57: #{custom-call.12} parent=53 // pred_region
          // Predicated region
          $region59: #{custom-call.12} parent=57 // pred_check
            _
          $region60: #{custom-call.12} parent=57 // pred_check_branch
            %223 = sbr.rel (0) target = $region62
          $region61: #{custom-call.12} parent=57 // pred_region
            // Predicated region
            $region74: #{custom-call.12} parent=61 // pred_check
              _
            $region75: #{custom-call.12} parent=61 // pred_check_branch
              %239 = sbr.rel (0) target = $region77
            $region76: #{custom-call.12} parent=61 // pred_region
              loop: start=0, step=1, limit=1
              $region78: #{custom-call.12} parent=76 // loop_pre_header
                _
              $region79: #{custom-call.12} parent=76 // loop_header
                %s241 = sphi 0, %s245
                %p242 = scmp.ge.s32.totalorder %s241, 1
                %s246 = sphi %s214, %s214
                %s247 = sphi %s219, %s219
              $region80: #{custom-call.12} parent=76 // loop_header_branch
                %244 = sbr.rel (%p242) target = $region84
              $region81: #{custom-call.12} parent=76 // loop_body
                %v248 = vld [vmem:[%s246] sm:$0xff]
                %249 = vst [vmem:[%s247] sm:$0xff] %v248
              $region82: #{custom-call.12} parent=76 // loop_footer
                %s245 = sadd.s32 1, %s241
              $region83: #{custom-call.12} parent=76 // loop_footer_branch
                %240 = sbr.rel target = $region79
              $region84: #{custom-call.12} parent=76 // loop_exit
                _
            $region77: #{custom-call.12} parent=61 // pred_fallthru
              _
            // Predicated region
            $region85: #{custom-call.12} parent=61 // pred_check
              _
            $region86: #{custom-call.12} parent=61 // pred_check_branch
              %251 = sbr.rel target = $region88
            $region87: #{custom-call.12} parent=61 // pred_region
              _
            $region88: #{custom-call.12} parent=61 // pred_fallthru
              _
          $region62: #{custom-call.12} parent=57 // pred_fallthru
            _
          // Predicated region
          $region63: #{custom-call.12} parent=57 // pred_check
            _
          $region64: #{custom-call.12} parent=57 // pred_check_branch
            %225 = sbr.rel target = $region66
          $region65: #{custom-call.12} parent=57 // pred_region
            %s227 = ssub.s32 256, 1
            loop: start=0, step=1, limit=1
            $region67: #{custom-call.12} parent=65 // loop_pre_header
              _
            $region68: #{custom-call.12} parent=65 // loop_header
              %s229 = sphi 0, %s233
              %p230 = scmp.ge.s32.totalorder %s229, 1
              %s234 = sphi %s214, %s214
              %s235 = sphi %s219, %s219
            $region69: #{custom-call.12} parent=65 // loop_header_branch
              %232 = sbr.rel (%p230) target = $region73
            $region70: #{custom-call.12} parent=65 // loop_body
              %v236 = vld [vmem:[%s234] sm:%s227]
              %237 = vst [vmem:[%s235] sm:%s227] %v236
            $region71: #{custom-call.12} parent=65 // loop_footer
              %s233 = sadd.s32 1, %s229
            $region72: #{custom-call.12} parent=65 // loop_footer_branch
              %228 = sbr.rel target = $region68
            $region73: #{custom-call.12} parent=65 // loop_exit
              _
          $region66: #{custom-call.12} parent=57 // pred_fallthru
            _
        $region58: #{custom-call.12} parent=53 // pred_fallthru
          _
        %252 = vnop
      $region54: #{custom-call.12} parent=5 // pred_fallthru
        _
      %p253 = scmp.le.s32.totalorder 2, %s3
      // Predicated region
      $region89: #{custom-call.12} parent=5 // pred_check
        %p254 = pneg %p253
      $region90: #{custom-call.12} parent=5 // pred_check_branch
        %256 = sbr.rel (%p254) target = $region92
      $region91: #{custom-call.12} parent=5 // pred_region
        %s257 = ssub.s32 %s3, 2
        %s258 = sand.u32 %s9, 1
        %s259 = sand.u32 %s9, 1
        %s260 = smul.addr %s259, 8
        %s261 = scalar_lea.vmem [#allocation1], %s260
      $region92: #{custom-call.12} parent=5 // pred_fallthru
        _
    $region6: #{custom-call.12} parent=1 // loop_footer
      %s7 = sadd.s32 1, %s3
    $region7: #{custom-call.12} parent=1 // loop_footer_branch
      %2 = sbr.rel target = $region3
    $region8: #{custom-call.12} parent=1 // loop_exit
      _

// kernel: tree_vrnn_forward.1
$region0: #{tree_vrnn_forward.1}
  #allocation0 [shape = 'u32[]', space=smem, size = 0x4, offset = 0x4, fixed_abs, tag = 'smem constant byte address 0x4 - core index']
  #allocation1 [shape = 'u32[144,128]{1,0:T(1,128)}', space=vmem, size = 0x12000, scoped, tag = 'internal scratch']
  #allocation2 [shape = 'f32[10,8,32]{2,1,0:T(8,128)}', space=vmem, size = 0xa000, scoped, tag = 'scratch operand']
  #allocation3 [shape = 'f32[10,8,32]{2,1,0:T(8,128)}', space=vmem, size = 0xa000, scoped, tag = 'scratch operand']
  #allocation4 [shape = 'f32[10,8,32]{2,1,0:T(8,128)}', space=vmem, size = 0xa000, scoped, tag = 'scratch operand']
  %s0 = inlined_call_operand.vmem [shape: bf16[2,80,16], index: 0, kind: input, shape index: {}]
  %s1 = inlined_call_operand.vmem [shape: bf16[3,16,32], index: 1, kind: input, shape index: {}]
  %s2 = inlined_call_operand.vmem [shape: bf16[3,32,32], index: 2, kind: input, shape index: {}]
  %s3 = inlined_call_operand.vmem [shape: f32[3,1,32], index: 3, kind: input, shape index: {}]
  %s4 = inlined_call_operand.vmem [shape: f32[3,1,32], index: 4, kind: input, shape index: {}]
  %s5 = inlined_call_operand.vmem [shape: s32[2,8,1], index: 5, kind: input, shape index: {}]
  %s6 = inlined_call_operand.vmem [shape: bf16[32,512], index: 6, kind: input, shape index: {}]
  %s7 = inlined_call_operand.vmem [shape: f32[1,256], index: 7, kind: input, shape index: {}]
  %s8 = inlined_call_operand.vmem [shape: f32[1,256], index: 8, kind: input, shape index: {}]
  %s9 = inlined_call_operand.vmem [shape: f32[2,8,8], index: 9, kind: input, shape index: {}]
  %s10 = inlined_call_operand.vmem [shape: f32[2,8,32], index: 10, kind: output, shape index: {0}]
  %s11 = inlined_call_operand.vmem [shape: f32[2,8,8], index: 11, kind: output, shape index: {1}]
  %12 = xla_tuple %s10, %s11
  %s13 = sld [smem:[#allocation0]]
  $region81: #{tree_vrnn_forward.1} parent=0
    _
  %s15 = ssub.s32 1, %s13
  %s16 = scalar_select 0, %s15, %s13
  loop: start=0, step=1, limit=4
  $region2: #{tree_vrnn_forward.1} parent=0 // loop_pre_header
    _
  $region3: #{tree_vrnn_forward.1} parent=0 // loop_header
    %s18 = sphi 0, %s22
    %p19 = scmp.ge.s32.totalorder %s18, 4
    %s28 = sphi 0, %s30
    %s31 = sphi 0, %s28
    %s32 = sphi 0, %s31
    %s48 = sphi 0, %s32
    %s52 = sphi 0, %s52
    %s54 = sphi 0, %s52
    %s55 = sphi 0, %s54
    %s69 = sphi 0, %s55
    %s73 = sphi 0, %s73
    %s75 = sphi 0, %s73
    %s76 = sphi 0, %s75
    %s90 = sphi 0, %s76
    %s94 = sphi 0, %s94
    %s96 = sphi 0, %s94
    %s97 = sphi 0, %s96
    %s111 = sphi 0, %s97
    %s115 = sphi 0, %s115
    %s117 = sphi 0, %s115
    %s118 = sphi 0, %s117
    %s132 = sphi 0, %s118
    %s138 = sphi 0, %s140
    %s141 = sphi 0, %s138
    %s142 = sphi 0, %s141
    %s158 = sphi 0, %s142
    %s162 = sphi 0, %s162
    %s164 = sphi 0, %s162
    %s165 = sphi 0, %s164
    %s179 = sphi 0, %s165
    %s183 = sphi 0, %s183
    %s185 = sphi 0, %s183
    %s186 = sphi 0, %s185
    %s200 = sphi 0, %s186
    %s204 = sphi 0, %s204
    %s206 = sphi 0, %s204
    %s207 = sphi 0, %s206
    %s221 = sphi 0, %s207
    %s227 = sphi 0, %s229
    %s230 = sphi 0, %s227
    %s231 = sphi 0, %s230
    %s247 = sphi 0, %s231
    %s253 = sphi 0, %s255
    %s256 = sphi 0, %s253
    %s257 = sphi 0, %s256
    %s273 = sphi 0, %s257
    %s279 = sphi 0, %s281
    %s282 = sphi 0, %s279
    %s283 = sphi 0, %s282
    %s299 = sphi 0, %s283
  $region4: #{tree_vrnn_forward.1} parent=0 // loop_header_branch
    %21 = sbr.rel (%p19) target = $region8
  $region5: #{tree_vrnn_forward.1} parent=0 // loop_body
    %s23 = ssub.s32 %s18, 1
    %s24 = ssub.s32 %s18, 2
    %s25 = sadd.s32 %s18, 1
    %s26 = ssub.s32 %s18, %s25
    %p27 = scmp.eq.s32.totalorder %s26, 0
    %s29 = sadd.s32 %s28, 1
    %s30 = scalar_select %p27, %s28, %s29
    %p33 = pneg %p27
    %p34 = scmp.eq.s32.totalorder %s18, 1
    %p35 = por %p33, %p34
    %p36 = scmp.ne.s32.totalorder %s28, %s31
    %p37 = scmp.eq.s32.totalorder %s18, 0
    %p38 = por %p36, %p37
    %p39 = scmp.ne.s32.totalorder %s28, %s31
    %p40 = scmp.eq.s32.totalorder %s23, 1
    %p41 = por %p39, %p40
    %p42 = scmp.ne.s32.totalorder %s31, %s32
    %p43 = scmp.eq.s32.totalorder %s23, 0
    %p44 = por %p42, %p43
    %p45 = scmp.ne.s32.totalorder %s31, %s32
    %p46 = scmp.eq.s32.totalorder %s24, 1
    %p47 = por %p45, %p46
    %p49 = scmp.ne.s32.totalorder %s32, %s48
    %p50 = scmp.eq.s32.totalorder %s24, 0
    %p51 = por %p49, %p50
    %s53 = sadd.s32 %s52, 1
    %p56 = scmp.eq.s32.totalorder %s18, 1
    %p57 = scmp.ne.s32.totalorder %s52, %s54
    %p58 = scmp.eq.s32.totalorder %s18, 0
    %p59 = por %p57, %p58
    %p60 = scmp.ne.s32.totalorder %s52, %s54
    %p61 = scmp.eq.s32.totalorder %s23, 1
    %p62 = por %p60, %p61
    %p63 = scmp.ne.s32.totalorder %s54, %s55
    %p64 = scmp.eq.s32.totalorder %s23, 0
    %p65 = por %p63, %p64
    %p66 = scmp.ne.s32.totalorder %s54, %s55
    %p67 = scmp.eq.s32.totalorder %s24, 1
    %p68 = por %p66, %p67
    %p70 = scmp.ne.s32.totalorder %s55, %s69
    %p71 = scmp.eq.s32.totalorder %s24, 0
    %p72 = por %p70, %p71
    %s74 = sadd.s32 %s73, 1
    %p77 = scmp.eq.s32.totalorder %s18, 1
    %p78 = scmp.ne.s32.totalorder %s73, %s75
    %p79 = scmp.eq.s32.totalorder %s18, 0
    %p80 = por %p78, %p79
    %p81 = scmp.ne.s32.totalorder %s73, %s75
    %p82 = scmp.eq.s32.totalorder %s23, 1
    %p83 = por %p81, %p82
    %p84 = scmp.ne.s32.totalorder %s75, %s76
    %p85 = scmp.eq.s32.totalorder %s23, 0
    %p86 = por %p84, %p85
    %p87 = scmp.ne.s32.totalorder %s75, %s76
    %p88 = scmp.eq.s32.totalorder %s24, 1
    %p89 = por %p87, %p88
    %p91 = scmp.ne.s32.totalorder %s76, %s90
    %p92 = scmp.eq.s32.totalorder %s24, 0
    %p93 = por %p91, %p92
    %s95 = sadd.s32 %s94, 1
    %p98 = scmp.eq.s32.totalorder %s18, 1
    %p99 = scmp.ne.s32.totalorder %s94, %s96
    %p100 = scmp.eq.s32.totalorder %s18, 0
    %p101 = por %p99, %p100
    %p102 = scmp.ne.s32.totalorder %s94, %s96
    %p103 = scmp.eq.s32.totalorder %s23, 1
    %p104 = por %p102, %p103
    %p105 = scmp.ne.s32.totalorder %s96, %s97
    %p106 = scmp.eq.s32.totalorder %s23, 0
    %p107 = por %p105, %p106
    %p108 = scmp.ne.s32.totalorder %s96, %s97
    %p109 = scmp.eq.s32.totalorder %s24, 1
    %p110 = por %p108, %p109
    %p112 = scmp.ne.s32.totalorder %s97, %s111
    %p113 = scmp.eq.s32.totalorder %s24, 0
    %p114 = por %p112, %p113
    %s116 = sadd.s32 %s115, 1
    %p119 = scmp.eq.s32.totalorder %s18, 1
    %p120 = scmp.ne.s32.totalorder %s115, %s117
    %p121 = scmp.eq.s32.totalorder %s18, 0
    %p122 = por %p120, %p121
    %p123 = scmp.ne.s32.totalorder %s115, %s117
    %p124 = scmp.eq.s32.totalorder %s23, 1
    %p125 = por %p123, %p124
    %p126 = scmp.ne.s32.totalorder %s117, %s118
    %p127 = scmp.eq.s32.totalorder %s23, 0
    %p128 = por %p126, %p127
    %p129 = scmp.ne.s32.totalorder %s117, %s118
    %p130 = scmp.eq.s32.totalorder %s24, 1
    %p131 = por %p129, %p130
    %p133 = scmp.ne.s32.totalorder %s118, %s132
    %p134 = scmp.eq.s32.totalorder %s24, 0
    %p135 = por %p133, %p134
    %s136 = ssub.s32 %s18, %s25
    %p137 = scmp.eq.s32.totalorder %s136, 0
    %s139 = sadd.s32 %s138, 1
    %s140 = scalar_select %p137, %s138, %s139
    %p143 = pneg %p137
    %p144 = scmp.eq.s32.totalorder %s18, 1
    %p145 = por %p143, %p144
    %p146 = scmp.ne.s32.totalorder %s138, %s141
    %p147 = scmp.eq.s32.totalorder %s18, 0
    %p148 = por %p146, %p147
    %p149 = scmp.ne.s32.totalorder %s138, %s141
    %p150 = scmp.eq.s32.totalorder %s23, 1
    %p151 = por %p149, %p150
    %p152 = scmp.ne.s32.totalorder %s141, %s142
    %p153 = scmp.eq.s32.totalorder %s23, 0
    %p154 = por %p152, %p153
    %p155 = scmp.ne.s32.totalorder %s141, %s142
    %p156 = scmp.eq.s32.totalorder %s24, 1
    %p157 = por %p155, %p156
    %p159 = scmp.ne.s32.totalorder %s142, %s158
    %p160 = scmp.eq.s32.totalorder %s24, 0
    %p161 = por %p159, %p160
    %s163 = sadd.s32 %s162, 1
    %p166 = scmp.eq.s32.totalorder %s18, 1
    %p167 = scmp.ne.s32.totalorder %s162, %s164
    %p168 = scmp.eq.s32.totalorder %s18, 0
    %p169 = por %p167, %p168
    %p170 = scmp.ne.s32.totalorder %s162, %s164
    %p171 = scmp.eq.s32.totalorder %s23, 1
    %p172 = por %p170, %p171
    %p173 = scmp.ne.s32.totalorder %s164, %s165
    %p174 = scmp.eq.s32.totalorder %s23, 0
    %p175 = por %p173, %p174
    %p176 = scmp.ne.s32.totalorder %s164, %s165
    %p177 = scmp.eq.s32.totalorder %s24, 1
    %p178 = por %p176, %p177
    %p180 = scmp.ne.s32.totalorder %s165, %s179
    %p181 = scmp.eq.s32.totalorder %s24, 0
    %p182 = por %p180, %p181
    %s184 = sadd.s32 %s183, 1
    %p187 = scmp.eq.s32.totalorder %s18, 1
    %p188 = scmp.ne.s32.totalorder %s183, %s185
    %p189 = scmp.eq.s32.totalorder %s18, 0
    %p190 = por %p188, %p189
    %p191 = scmp.ne.s32.totalorder %s183, %s185
    %p192 = scmp.eq.s32.totalorder %s23, 1
    %p193 = por %p191, %p192
    %p194 = scmp.ne.s32.totalorder %s185, %s186
    %p195 = scmp.eq.s32.totalorder %s23, 0
    %p196 = por %p194, %p195
    %p197 = scmp.ne.s32.totalorder %s185, %s186
    %p198 = scmp.eq.s32.totalorder %s24, 1
    %p199 = por %p197, %p198
    %p201 = scmp.ne.s32.totalorder %s186, %s200
    %p202 = scmp.eq.s32.totalorder %s24, 0
    %p203 = por %p201, %p202
    %s205 = sadd.s32 %s204, 1
    %p208 = scmp.eq.s32.totalorder %s18, 1
    %p209 = scmp.ne.s32.totalorder %s204, %s206
    %p210 = scmp.eq.s32.totalorder %s18, 0
    %p211 = por %p209, %p210
    %p212 = scmp.ne.s32.totalorder %s204, %s206
    %p213 = scmp.eq.s32.totalorder %s23, 1
    %p214 = por %p212, %p213
    %p215 = scmp.ne.s32.totalorder %s206, %s207
    %p216 = scmp.eq.s32.totalorder %s23, 0
    %p217 = por %p215, %p216
    %p218 = scmp.ne.s32.totalorder %s206, %s207
    %p219 = scmp.eq.s32.totalorder %s24, 1
    %p220 = por %p218, %p219
    %p222 = scmp.ne.s32.totalorder %s207, %s221
    %p223 = scmp.eq.s32.totalorder %s24, 0
    %p224 = por %p222, %p223
    %s225 = ssub.s32 %s18, %s25
    %p226 = scmp.eq.s32.totalorder %s225, 0
    %s228 = sadd.s32 %s227, 1
    %s229 = scalar_select %p226, %s227, %s228
    %p232 = pneg %p226
    %p233 = scmp.eq.s32.totalorder %s18, 1
    %p234 = por %p232, %p233
    %p235 = scmp.ne.s32.totalorder %s227, %s230
    %p236 = scmp.eq.s32.totalorder %s18, 0
    %p237 = por %p235, %p236
    %p238 = scmp.ne.s32.totalorder %s227, %s230
    %p239 = scmp.eq.s32.totalorder %s23, 1
    %p240 = por %p238, %p239
    %p241 = scmp.ne.s32.totalorder %s230, %s231
    %p242 = scmp.eq.s32.totalorder %s23, 0
    %p243 = por %p241, %p242
    %p244 = scmp.ne.s32.totalorder %s230, %s231
    %p245 = scmp.eq.s32.totalorder %s24, 1
    %p246 = por %p244, %p245
    %p248 = scmp.ne.s32.totalorder %s231, %s247
    %p249 = scmp.eq.s32.totalorder %s24, 0
    %p250 = por %p248, %p249
    %s251 = ssub.s32 %s18, %s25
    %p252 = scmp.eq.s32.totalorder %s251, 0
    %s254 = sadd.s32 %s253, 1
    %s255 = scalar_select %p252, %s253, %s254
    %p258 = pneg %p252
    %p259 = scmp.eq.s32.totalorder %s18, 1
    %p260 = por %p258, %p259
    %p261 = scmp.ne.s32.totalorder %s253, %s256
    %p262 = scmp.eq.s32.totalorder %s18, 0
    %p263 = por %p261, %p262
    %p264 = scmp.ne.s32.totalorder %s253, %s256
    %p265 = scmp.eq.s32.totalorder %s23, 1
    %p266 = por %p264, %p265
    %p267 = scmp.ne.s32.totalorder %s256, %s257
    %p268 = scmp.eq.s32.totalorder %s23, 0
    %p269 = por %p267, %p268
    %p270 = scmp.ne.s32.totalorder %s256, %s257
    %p271 = scmp.eq.s32.totalorder %s24, 1
    %p272 = por %p270, %p271
    %p274 = scmp.ne.s32.totalorder %s257, %s273
    %p275 = scmp.eq.s32.totalorder %s24, 0
    %p276 = por %p274, %p275
    %s277 = ssub.s32 %s18, %s25
    %p278 = scmp.eq.s32.totalorder %s277, 0
    %s280 = sadd.s32 %s279, 1
    %s281 = scalar_select %p278, %s279, %s280
    %p284 = pneg %p278
    %p285 = scmp.eq.s32.totalorder %s18, 1
    %p286 = por %p284, %p285
    %p287 = scmp.ne.s32.totalorder %s279, %s282
    %p288 = scmp.eq.s32.totalorder %s18, 0
    %p289 = por %p287, %p288
    %p290 = scmp.ne.s32.totalorder %s279, %s282
    %p291 = scmp.eq.s32.totalorder %s23, 1
    %p292 = por %p290, %p291
    %p293 = scmp.ne.s32.totalorder %s282, %s283
    %p294 = scmp.eq.s32.totalorder %s23, 0
    %p295 = por %p293, %p294
    %p296 = scmp.ne.s32.totalorder %s282, %s283
    %p297 = scmp.eq.s32.totalorder %s24, 1
    %p298 = por %p296, %p297
    %p300 = scmp.ne.s32.totalorder %s283, %s299
    %p301 = scmp.eq.s32.totalorder %s24, 0
    %p302 = por %p300, %p301
    %p303 = scmp.le.s32.totalorder 1, %s18
    %p304 = scmp.lt.s32.totalorder %s18, 3
    %p305 = pnand %p303, %p304
    %p306 = pneg %p305
    // Predicated region
    $region9: #{tree_vrnn_forward.1} parent=5 // pred_check
      _
    $region10: #{tree_vrnn_forward.1} parent=5 // pred_check_branch
      %308 = sbr.rel (%p305) target = $region12
    $region11: #{tree_vrnn_forward.1} parent=5 // pred_region
      %s309 = ssub.s32 %s18, 1
      // Predicated region
      $region13: #{tree_vrnn_forward.1} parent=11 // pred_check
        %p310 = pneg %p65
      $region14: #{tree_vrnn_forward.1} parent=11 // pred_check_branch
        %312 = sbr.rel (%p310) target = $region16
      $region15: #{tree_vrnn_forward.1} parent=11 // pred_region
        _
      $region16: #{tree_vrnn_forward.1} parent=11 // pred_fallthru
        _
      // Predicated region
      $region17: #{tree_vrnn_forward.1} parent=11 // pred_check
        %p313 = pneg %p86
      $region18: #{tree_vrnn_forward.1} parent=11 // pred_check_branch
        %315 = sbr.rel (%p313) target = $region20
      $region19: #{tree_vrnn_forward.1} parent=11 // pred_region
        _
      $region20: #{tree_vrnn_forward.1} parent=11 // pred_fallthru
        _
      // Predicated region
      $region21: #{tree_vrnn_forward.1} parent=11 // pred_check
        %p316 = pneg %p107
      $region22: #{tree_vrnn_forward.1} parent=11 // pred_check_branch
        %318 = sbr.rel (%p316) target = $region24
      $region23: #{tree_vrnn_forward.1} parent=11 // pred_region
        _
      $region24: #{tree_vrnn_forward.1} parent=11 // pred_fallthru
        _
      // Predicated region
      $region25: #{tree_vrnn_forward.1} parent=11 // pred_check
        %p319 = pneg %p128
      $region26: #{tree_vrnn_forward.1} parent=11 // pred_check_branch
        %321 = sbr.rel (%p319) target = $region28
      $region27: #{tree_vrnn_forward.1} parent=11 // pred_region
        _
      $region28: #{tree_vrnn_forward.1} parent=11 // pred_fallthru
        _
      // Predicated region
      $region29: #{tree_vrnn_forward.1} parent=11 // pred_check
        %p322 = pneg %p175
      $region30: #{tree_vrnn_forward.1} parent=11 // pred_check_branch
        %324 = sbr.rel (%p322) target = $region32
      $region31: #{tree_vrnn_forward.1} parent=11 // pred_region
        _
      $region32: #{tree_vrnn_forward.1} parent=11 // pred_fallthru
        _
      // Predicated region
      $region33: #{tree_vrnn_forward.1} parent=11 // pred_check
        %p325 = pneg %p196
      $region34: #{tree_vrnn_forward.1} parent=11 // pred_check_branch
        %327 = sbr.rel (%p325) target = $region36
      $region35: #{tree_vrnn_forward.1} parent=11 // pred_region
        _
      $region36: #{tree_vrnn_forward.1} parent=11 // pred_fallthru
        _
      // Predicated region
      $region37: #{tree_vrnn_forward.1} parent=11 // pred_check
        %p328 = pneg %p217
      $region38: #{tree_vrnn_forward.1} parent=11 // pred_check_branch
        %330 = sbr.rel (%p328) target = $region40
      $region39: #{tree_vrnn_forward.1} parent=11 // pred_region
        _
      $region40: #{tree_vrnn_forward.1} parent=11 // pred_fallthru
        _
    $region12: #{tree_vrnn_forward.1} parent=5 // pred_fallthru
      _
    %p331 = scmp.lt.s32.totalorder %s18, 2
    // Predicated region
    $region41: #{tree_vrnn_forward.1} parent=5 // pred_check
      %p332 = pneg %p331
    $region42: #{tree_vrnn_forward.1} parent=5 // pred_check_branch
      %334 = sbr.rel (%p332) target = $region44
    $region43: #{tree_vrnn_forward.1} parent=5 // pred_region
      // Predicated region
      $region45: #{tree_vrnn_forward.1} parent=43 // pred_check
        %p335 = pneg %p38
      $region46: #{tree_vrnn_forward.1} parent=43 // pred_check_branch
        %337 = sbr.rel (%p335) target = $region48
      $region47: #{tree_vrnn_forward.1} parent=43 // pred_region
        %p338 = scmp.lt.s32.totalorder %s18, 1
        %s339 = scalar_select %p338, %s18, 1
        %s340 = smul.addr %s339, 10
        %s341 = smul.addr %s340, 4
        %s342 = scalar_lea.vmem %s0, %s341
      $region48: #{tree_vrnn_forward.1} parent=43 // pred_fallthru
        _
      // Predicated region
      $region49: #{tree_vrnn_forward.1} parent=43 // pred_check
        %p343 = pneg %p148
      $region50: #{tree_vrnn_forward.1} parent=43 // pred_check_branch
        %345 = sbr.rel (%p343) target = $region52
      $region51: #{tree_vrnn_forward.1} parent=43 // pred_region
        %p346 = scmp.lt.s32.totalorder %s18, 1
        %s347 = scalar_select %p346, %s18, 1
        %s348 = smul.addr %s347, 8
        %s349 = scalar_lea.vmem %s5, %s348
      $region52: #{tree_vrnn_forward.1} parent=43 // pred_fallthru
        _
      // Predicated region
      $region53: #{tree_vrnn_forward.1} parent=43 // pred_check
        %p350 = pneg %p237
      $region54: #{tree_vrnn_forward.1} parent=43 // pred_check_branch
        %352 = sbr.rel (%p350) target = $region56
      $region55: #{tree_vrnn_forward.1} parent=43 // pred_region
        %p353 = scmp.lt.s32.totalorder %s18, 1
        %s354 = scalar_select %p353, %s18, 1
        %s355 = smul.addr %s354, 8
        %s356 = scalar_lea.vmem %s9, %s355
      $region56: #{tree_vrnn_forward.1} parent=43 // pred_fallthru
        _
    $region44: #{tree_vrnn_forward.1} parent=5 // pred_fallthru
      _
    %p357 = scmp.le.s32.totalorder 1, %s18
    %p358 = scmp.lt.s32.totalorder %s18, 3
    %p359 = pnand %p357, %p358
    %p360 = pneg %p359
    // Predicated region
    $region57: #{tree_vrnn_forward.1} parent=5 // pred_check
      _
    $region58: #{tree_vrnn_forward.1} parent=5 // pred_check_branch
      %362 = sbr.rel (%p359) target = $region60
    $region59: #{tree_vrnn_forward.1} parent=5 // pred_region
      %s363 = ssub.s32 %s18, 1
      %p364 = scmp.lt.s32.totalorder %s23, 1
      %s365 = scalar_select %p364, %s23, 1
      %s366 = smul.addr %s365, 10
      %s367 = smul.addr %s366, 4
      %s368 = scalar_lea.vmem %s0, %s367
      %p369 = pneg %p44
      %p370 = pneg %p41
      %p371 = pneg %p65
      %p372 = pneg %p62
      %p373 = pneg %p86
      %p374 = pneg %p83
      %p375 = pneg %p107
      %p376 = pneg %p104
      %p377 = pneg %p128
      %p378 = pneg %p125
      %p379 = scmp.lt.s32.totalorder %s23, 1
      %s380 = scalar_select %p379, %s23, 1
      %s381 = smul.addr %s380, 8
      %s382 = scalar_lea.vmem %s5, %s381
      %p383 = pneg %p154
      %p384 = pneg %p151
      %p385 = pneg %p175
      %p386 = pneg %p172
      %p387 = pneg %p196
      %p388 = pneg %p193
      %p389 = pneg %p217
      %p390 = pneg %p214
      %p391 = scmp.lt.s32.totalorder %s23, 1
      %s392 = scalar_select %p391, %s23, 1
      %s393 = smul.addr %s392, 8
      %s394 = scalar_lea.vmem %s9, %s393
      %p395 = pneg %p243
      %p396 = pneg %p240
      %p397 = pneg %p269
      %p398 = pneg %p266
      %p399 = scmp.lt.s32.totalorder %s23, 1
      %s400 = scalar_select %p399, %s23, 1
      %s401 = smul.addr %s400, 8
      %s402 = scalar_lea.vmem %s10, %s401
      %p403 = pneg %p295
      %p404 = pneg %p292
      %p405 = scmp.lt.s32.totalorder %s23, 1
      %s406 = scalar_select %p405, %s23, 1
      %s407 = smul.addr %s406, 8
      %s408 = scalar_lea.vmem %s11, %s407
      %p409 = scmp.lt.s32.totalorder %s23, 1
      %s410 = scalar_select %p409, %s23, 1
      %s411 = smul.addr %s410, 10
      %s412 = smul.addr %s411, 4
      %s413 = scalar_lea.vmem %s0, %s412
      %p414 = scmp.lt.s32.totalorder %s23, 1
      %s415 = scalar_select %p414, %s23, 1
      %s416 = smul.addr %s415, 8
      %s417 = scalar_lea.vmem %s5, %s416
      %p418 = scmp.lt.s32.totalorder %s23, 1
      %s419 = scalar_select %p418, %s23, 1
      %s420 = smul.addr %s419, 8
      %s421 = scalar_lea.vmem %s9, %s420
      %p422 = scmp.lt.s32.totalorder %s23, 1
      %s423 = scalar_select %p422, %s23, 1
      %s424 = smul.addr %s423, 8
      %s425 = scalar_lea.vmem %s10, %s424
      %p426 = scmp.lt.s32.totalorder %s23, 1
      %s427 = scalar_select %p426, %s23, 1
      %s428 = smul.addr %s427, 8
      %s429 = scalar_lea.vmem %s11, %s428
      %v431 = vld [vmem:[%s413] sm:$0xf]
      %v432 = vld [vmem:[%s413 + $0x4] sm:$0xf]
      %v433 = vld [vmem:[%s413 + $0x8] sm:$0xf]
      %v434 = vld [vmem:[%s413 + $0xc] sm:$0xf]
      %v435 = vld [vmem:[%s413 + $0x10] sm:$0xf]
      %v436 = vld [vmem:[%s413 + $0x14] sm:$0xf]
      %v437 = vld [vmem:[%s413 + $0x18] sm:$0xf]
      %v438 = vld [vmem:[%s413 + $0x1c] sm:$0xf]
      %v439 = vld [vmem:[%s413 + $0x20] sm:$0xf]
      %v440 = vld [vmem:[%s413 + $0x24] sm:$0xf]
      %v441 = vld [vmem:[%s1] sm:$0xf]
      %v442 = vld [vmem:[%s1 + $0x4] sm:$0xf]
      %v443 = vld [vmem:[%s3] sm:$0x1]
      %v445 = vlaneseq
      %v446 = vshrl.u32 %v445, 7
      %v447 = vsub.s32 0, %v446
      %v448 = vrot.slane %v443, %v447
      %v460 = vunpack.c.l.b16 %v431
      %v461 = vunpack.c.l.b16 %v432
      %v462 = vunpack.c.l.b16 %v433
      %v463 = vunpack.c.l.b16 %v434
      %v464 = vunpack.c.l.b16 %v435
      %v465 = vunpack.c.l.b16 %v436
      %v466 = vunpack.c.l.b16 %v437
      %v467 = vunpack.c.l.b16 %v438
      %v468 = vunpack.c.l.b16 %v439
      %v469 = vunpack.c.l.b16 %v440
      %v470 = vpack.c.b16 %v461, %v460
      %v471 = vpack.c.b16 %v463, %v462
      %v472 = vpack.c.b16 %v465, %v464
      %v473 = vpack.c.b16 %v467, %v466
      %v474 = vpack.c.b16 %v469, %v468
      %v477 = vunpack.c.l.b16 %v441
      %v478 = vunpack.c.l.b16 %v442
      %v479 = vpack.c.b16 %v478, %v477
      %vm481 = vcmask 130048
      %v483 = vsel %vm481, %v470, 0
      %v486 = vsel %vm481, %v471, 0
      %v489 = vsel %vm481, %v472, 0
      %v492 = vsel %vm481, %v473, 0
      %v495 = vsel %vm481, %v474, 0
      %497 = vmatprep.subr.bf16.mxu0 0
      %498 = vmatpush1.bf16.msra.mxu0 0
      %499 = vmatprep.subr.bf16.mxu0 0
      %500 = vmatpush1.bf16.msra.mxu0 0
      %501 = vmatprep.subr.bf16.mxu0 0
      %502 = vmatpush1.bf16.msra.mxu0 0
      %503 = vmatprep.subr.bf16.mxu0 0
      %504 = vmatpush1.bf16.msra.mxu0 0
      %505 = vmatprep.subr.bf16.mxu0 0
      %506 = vmatpush1.bf16.msra.mxu0 0
      %507 = vmatprep.subr.bf16.mxu0 0
      %508 = vmatpush1.bf16.msra.mxu0 0
      %509 = vmatprep.subr.bf16.mxu0 0
      %510 = vmatpush1.bf16.msra.mxu0 0
      %511 = vmatprep.subr.bf16.mxu0 0
      %512 = vmatpush1.bf16.msra.mxu0 %v479
      %513 = vmatprep.subr.bf16.mxu0 0
      %514 = vmatpush2.bf16.msra.mxu0 0
      %515 = vmatprep.subr.bf16.mxu0 0
      %516 = vmatpush2.bf16.msra.mxu0 0
      %517 = vmatprep.subr.bf16.mxu0 0
      %518 = vmatpush2.bf16.msra.mxu0 0
      %519 = vmatprep.subr.bf16.mxu0 0
      %520 = vmatpush2.bf16.msra.mxu0 0
      %521 = vmatprep.subr.bf16.mxu0 0
      %522 = vmatpush2.bf16.msra.mxu0 0
      %523 = vmatprep.subr.bf16.mxu0 0
      %524 = vmatpush2.bf16.msra.mxu0 0
      %525 = vmatprep.subr.bf16.mxu0 0
      %526 = vmatpush2.bf16.msra.mxu0 0
      %527 = vmatprep.subr.bf16.mxu0 0
      %528 = vmatpush2.bf16.msra.mxu0 0
      %529 = vmatprep.mubr.bf16.mxu0 0
      %530 = vmatmul.mubr.bf16.gmra.mxu0 %v483
      %v531 = vpop.f32.mrf.mxu0
      %v532 = vadd.f32 %v448, %v531
      %v533 = vpop.f32.mrf.mxu0
      %v534 = vpop.f32.mrf.mxu0
      %v535 = vadd.f32 %v448, %v534
      %v536 = vpop.f32.mrf.mxu0
      %537 = vmatprep.mubr.bf16.mxu0 0
      %538 = vmatmul.mubr.bf16.gmra.mxu0 %v486
      %v539 = vpop.f32.mrf.mxu0
      %v540 = vadd.f32 %v448, %v539
      %v541 = vpop.f32.mrf.mxu0
      %v542 = vpop.f32.mrf.mxu0
      %v543 = vadd.f32 %v448, %v542
      %v544 = vpop.f32.mrf.mxu0
      %545 = vmatprep.mubr.bf16.mxu0 0
      %546 = vmatmul.mubr.bf16.gmra.mxu0 %v489
      %v547 = vpop.f32.mrf.mxu0
      %v548 = vadd.f32 %v448, %v547
      %v549 = vpop.f32.mrf.mxu0
      %v550 = vpop.f32.mrf.mxu0
      %v551 = vadd.f32 %v448, %v550
      %v552 = vpop.f32.mrf.mxu0
      %553 = vmatprep.mubr.bf16.mxu0 0
      %554 = vmatmul.mubr.bf16.gmra.mxu0 %v492
      %v555 = vpop.f32.mrf.mxu0
      %v556 = vadd.f32 %v448, %v555
      %v557 = vpop.f32.mrf.mxu0
      %v558 = vpop.f32.mrf.mxu0
      %v559 = vadd.f32 %v448, %v558
      %v560 = vpop.f32.mrf.mxu0
      %561 = vmatprep.mubr.bf16.mxu0 0
      %562 = vmatmul.mubr.bf16.gmra.mxu0 %v495
      %v563 = vpop.f32.mrf.mxu0
      %v564 = vadd.f32 %v448, %v563
      %v565 = vpop.f32.mrf.mxu0
      %v566 = vpop.f32.mrf.mxu0
      %v567 = vadd.f32 %v448, %v566
      %v568 = vpop.f32.mrf.mxu0
      %569 = vdwg.mxu0
      %vm570 = vcmask 261120
      %571 = vst.msk [vmem:[#allocation2] sm:$0xff] %vm570, %v532
      %572 = vst.msk [vmem:[#allocation2 + $0x8] sm:$0xff] %vm570, %v535
      %573 = vst.msk [vmem:[#allocation2 + $0x10] sm:$0xff] %vm570, %v540
      %574 = vst.msk [vmem:[#allocation2 + $0x18] sm:$0xff] %vm570, %v543
      %575 = vst.msk [vmem:[#allocation2 + $0x20] sm:$0xff] %vm570, %v548
      %576 = vst.msk [vmem:[#allocation2 + $0x28] sm:$0xff] %vm570, %v551
      %577 = vst.msk [vmem:[#allocation2 + $0x30] sm:$0xff] %vm570, %v556
      %578 = vst.msk [vmem:[#allocation2 + $0x38] sm:$0xff] %vm570, %v559
      %579 = vst.msk [vmem:[#allocation2 + $0x40] sm:$0xff] %vm570, %v564
      %580 = vst.msk [vmem:[#allocation2 + $0x48] sm:$0xff] %vm570, %v567
      %s581 = scalar_lea.vmem %s1, 8
      %v582 = vld [vmem:[%s581] sm:$0xf]
      %v583 = vld [vmem:[%s581 + $0x4] sm:$0xf]
      %s584 = scalar_lea.vmem %s3, 1
      %v585 = vld [vmem:[%s584] sm:$0x1]
      %v587 = vlaneseq
      %v588 = vshrl.u32 %v587, 7
      %v589 = vsub.s32 0, %v588
      %v590 = vrot.slane %v585, %v589
      %v594 = vunpack.c.l.b16 %v582
      %v595 = vunpack.c.l.b16 %v583
      %v596 = vpack.c.b16 %v595, %v594
      %598 = vmatprep.subr.bf16.mxu0 0
      %599 = vmatpush1.bf16.msra.mxu0 0
      %600 = vmatprep.subr.bf16.mxu0 0
      %601 = vmatpush1.bf16.msra.mxu0 0
      %602 = vmatprep.subr.bf16.mxu0 0
      %603 = vmatpush1.bf16.msra.mxu0 0
      %604 = vmatprep.subr.bf16.mxu0 0
      %605 = vmatpush1.bf16.msra.mxu0 0
      %606 = vmatprep.subr.bf16.mxu0 0
      %607 = vmatpush1.bf16.msra.mxu0 0
      %608 = vmatprep.subr.bf16.mxu0 0
      %609 = vmatpush1.bf16.msra.mxu0 0
      %610 = vmatprep.subr.bf16.mxu0 0
      %611 = vmatpush1.bf16.msra.mxu0 0
      %612 = vmatprep.subr.bf16.mxu0 0
      %613 = vmatpush1.bf16.msra.mxu0 %v596
      %614 = vmatprep.subr.bf16.mxu0 0
      %615 = vmatpush2.bf16.msra.mxu0 0
      %616 = vmatprep.subr.bf16.mxu0 0
      %617 = vmatpush2.bf16.msra.mxu0 0
      %618 = vmatprep.subr.bf16.mxu0 0
      %619 = vmatpush2.bf16.msra.mxu0 0
      %620 = vmatprep.subr.bf16.mxu0 0
      %621 = vmatpush2.bf16.msra.mxu0 0
      %622 = vmatprep.subr.bf16.mxu0 0
      %623 = vmatpush2.bf16.msra.mxu0 0
      %624 = vmatprep.subr.bf16.mxu0 0
      %625 = vmatpush2.bf16.msra.mxu0 0
      %626 = vmatprep.subr.bf16.mxu0 0
      %627 = vmatpush2.bf16.msra.mxu0 0
      %628 = vmatprep.subr.bf16.mxu0 0
      %629 = vmatpush2.bf16.msra.mxu0 0
      %630 = vmatprep.mubr.bf16.mxu0 0
      %631 = vmatmul.mubr.bf16.gmra.mxu0 %v483
      %v632 = vpop.f32.mrf.mxu0
      %v633 = vadd.f32 %v590, %v632
      %v634 = vpop.f32.mrf.mxu0
      %v635 = vpop.f32.mrf.mxu0
      %v636 = vadd.f32 %v590, %v635
      %v637 = vpop.f32.mrf.mxu0
      %638 = vmatprep.mubr.bf16.mxu0 0
      %639 = vmatmul.mubr.bf16.gmra.mxu0 %v486
      %v640 = vpop.f32.mrf.mxu0
      %v641 = vadd.f32 %v590, %v640
      %v642 = vpop.f32.mrf.mxu0
      %v643 = vpop.f32.mrf.mxu0
      %v644 = vadd.f32 %v590, %v643
      %v645 = vpop.f32.mrf.mxu0
      %646 = vmatprep.mubr.bf16.mxu0 0
      %647 = vmatmul.mubr.bf16.gmra.mxu0 %v489
      %v648 = vpop.f32.mrf.mxu0
      %v649 = vadd.f32 %v590, %v648
      %v650 = vpop.f32.mrf.mxu0
      %v651 = vpop.f32.mrf.mxu0
      %v652 = vadd.f32 %v590, %v651
      %v653 = vpop.f32.mrf.mxu0
      %654 = vmatprep.mubr.bf16.mxu0 0
      %655 = vmatmul.mubr.bf16.gmra.mxu0 %v492
      %v656 = vpop.f32.mrf.mxu0
      %v657 = vadd.f32 %v590, %v656
      %v658 = vpop.f32.mrf.mxu0
      %v659 = vpop.f32.mrf.mxu0
      %v660 = vadd.f32 %v590, %v659
      %v661 = vpop.f32.mrf.mxu0
      %662 = vmatprep.mubr.bf16.mxu0 0
      %663 = vmatmul.mubr.bf16.gmra.mxu0 %v495
      %v664 = vpop.f32.mrf.mxu0
      %v665 = vadd.f32 %v590, %v664
      %v666 = vpop.f32.mrf.mxu0
      %v667 = vpop.f32.mrf.mxu0
      %v668 = vadd.f32 %v590, %v667
      %v669 = vpop.f32.mrf.mxu0
      %670 = vdwg.mxu0
      %671 = vst.msk [vmem:[#allocation3] sm:$0xff] %vm570, %v633
      %672 = vst.msk [vmem:[#allocation3 + $0x8] sm:$0xff] %vm570, %v636
      %673 = vst.msk [vmem:[#allocation3 + $0x10] sm:$0xff] %vm570, %v641
      %674 = vst.msk [vmem:[#allocation3 + $0x18] sm:$0xff] %vm570, %v644
      %675 = vst.msk [vmem:[#allocation3 + $0x20] sm:$0xff] %vm570, %v649
      %676 = vst.msk [vmem:[#allocation3 + $0x28] sm:$0xff] %vm570, %v652
      %677 = vst.msk [vmem:[#allocation3 + $0x30] sm:$0xff] %vm570, %v657
      %678 = vst.msk [vmem:[#allocation3 + $0x38] sm:$0xff] %vm570, %v660
      %679 = vst.msk [vmem:[#allocation3 + $0x40] sm:$0xff] %vm570, %v665
      %680 = vst.msk [vmem:[#allocation3 + $0x48] sm:$0xff] %vm570, %v668
      %s681 = scalar_lea.vmem %s1, 16
      %v682 = vld [vmem:[%s681] sm:$0xf]
      %v683 = vld [vmem:[%s681 + $0x4] sm:$0xf]
      %s684 = scalar_lea.vmem %s3, 2
      %v685 = vld [vmem:[%s684] sm:$0x1]
      %v687 = vlaneseq
      %v688 = vshrl.u32 %v687, 7
      %v689 = vsub.s32 0, %v688
      %v690 = vrot.slane %v685, %v689
      %v694 = vunpack.c.l.b16 %v682
      %v695 = vunpack.c.l.b16 %v683
      %v696 = vpack.c.b16 %v695, %v694
      %698 = vmatprep.subr.bf16.mxu0 0
      %699 = vmatpush1.bf16.msra.mxu0 0
      %700 = vmatprep.subr.bf16.mxu0 0
      %701 = vmatpush1.bf16.msra.mxu0 0
      %702 = vmatprep.subr.bf16.mxu0 0
      %703 = vmatpush1.bf16.msra.mxu0 0
      %704 = vmatprep.subr.bf16.mxu0 0
      %705 = vmatpush1.bf16.msra.mxu0 0
      %706 = vmatprep.subr.bf16.mxu0 0
      %707 = vmatpush1.bf16.msra.mxu0 0
      %708 = vmatprep.subr.bf16.mxu0 0
      %709 = vmatpush1.bf16.msra.mxu0 0
      %710 = vmatprep.subr.bf16.mxu0 0
      %711 = vmatpush1.bf16.msra.mxu0 0
      %712 = vmatprep.subr.bf16.mxu0 0
      %713 = vmatpush1.bf16.msra.mxu0 %v696
      %714 = vmatprep.subr.bf16.mxu0 0
      %715 = vmatpush2.bf16.msra.mxu0 0
      %716 = vmatprep.subr.bf16.mxu0 0
      %717 = vmatpush2.bf16.msra.mxu0 0
      %718 = vmatprep.subr.bf16.mxu0 0
      %719 = vmatpush2.bf16.msra.mxu0 0
      %720 = vmatprep.subr.bf16.mxu0 0
      %721 = vmatpush2.bf16.msra.mxu0 0
      %722 = vmatprep.subr.bf16.mxu0 0
      %723 = vmatpush2.bf16.msra.mxu0 0
      %724 = vmatprep.subr.bf16.mxu0 0
      %725 = vmatpush2.bf16.msra.mxu0 0
      %726 = vmatprep.subr.bf16.mxu0 0
      %727 = vmatpush2.bf16.msra.mxu0 0
      %728 = vmatprep.subr.bf16.mxu0 0
      %729 = vmatpush2.bf16.msra.mxu0 0
      %730 = vmatprep.mubr.bf16.mxu0 0
      %731 = vmatmul.mubr.bf16.gmra.mxu0 %v483
      %v732 = vpop.f32.mrf.mxu0
      %v733 = vadd.f32 %v690, %v732
      %v734 = vpop.f32.mrf.mxu0
      %v735 = vpop.f32.mrf.mxu0
      %v736 = vadd.f32 %v690, %v735
      %v737 = vpop.f32.mrf.mxu0
      %738 = vmatprep.mubr.bf16.mxu0 0
      %739 = vmatmul.mubr.bf16.gmra.mxu0 %v486
      %v740 = vpop.f32.mrf.mxu0
      %v741 = vadd.f32 %v690, %v740
      %v742 = vpop.f32.mrf.mxu0
      %v743 = vpop.f32.mrf.mxu0
      %v744 = vadd.f32 %v690, %v743
      %v745 = vpop.f32.mrf.mxu0
      %746 = vmatprep.mubr.bf16.mxu0 0
      %747 = vmatmul.mubr.bf16.gmra.mxu0 %v489
      %v748 = vpop.f32.mrf.mxu0
      %v749 = vadd.f32 %v690, %v748
      %v750 = vpop.f32.mrf.mxu0
      %v751 = vpop.f32.mrf.mxu0
      %v752 = vadd.f32 %v690, %v751
      %v753 = vpop.f32.mrf.mxu0
      %754 = vmatprep.mubr.bf16.mxu0 0
      %755 = vmatmul.mubr.bf16.gmra.mxu0 %v492
      %v756 = vpop.f32.mrf.mxu0
      %v757 = vadd.f32 %v690, %v756
      %v758 = vpop.f32.mrf.mxu0
      %v759 = vpop.f32.mrf.mxu0
      %v760 = vadd.f32 %v690, %v759
      %v761 = vpop.f32.mrf.mxu0
      %762 = vmatprep.mubr.bf16.mxu0 0
      %763 = vmatmul.mubr.bf16.gmra.mxu0 %v495
      %v764 = vpop.f32.mrf.mxu0
      %v765 = vadd.f32 %v690, %v764
      %v766 = vpop.f32.mrf.mxu0
      %v767 = vpop.f32.mrf.mxu0
      %v768 = vadd.f32 %v690, %v767
      %v769 = vpop.f32.mrf.mxu0
      %770 = vdwg.mxu0
      %771 = vst.msk [vmem:[#allocation4] sm:$0xff] %vm570, %v733
      %772 = vst.msk [vmem:[#allocation4 + $0x8] sm:$0xff] %vm570, %v736
      %773 = vst.msk [vmem:[#allocation4 + $0x10] sm:$0xff] %vm570, %v741
      %774 = vst.msk [vmem:[#allocation4 + $0x18] sm:$0xff] %vm570, %v744
      %775 = vst.msk [vmem:[#allocation4 + $0x20] sm:$0xff] %vm570, %v749
      %776 = vst.msk [vmem:[#allocation4 + $0x28] sm:$0xff] %vm570, %v752
      %777 = vst.msk [vmem:[#allocation4 + $0x30] sm:$0xff] %vm570, %v757
      %778 = vst.msk [vmem:[#allocation4 + $0x38] sm:$0xff] %vm570, %v760
      %779 = vst.msk [vmem:[#allocation4 + $0x40] sm:$0xff] %vm570, %v765
      %780 = vst.msk [vmem:[#allocation4 + $0x48] sm:$0xff] %vm570, %v768
      %v781 = vld [vmem:[%s2] sm:$0xf]
      %v782 = vld [vmem:[%s2 + $0x4] sm:$0xf]
      %v783 = vld [vmem:[%s2 + $0x8] sm:$0xf]
      %v784 = vld [vmem:[%s2 + $0xc] sm:$0xf]
      %s785 = scalar_lea.vmem %s2, 16
      %v786 = vld [vmem:[%s785] sm:$0xf]
      %v787 = vld [vmem:[%s785 + $0x4] sm:$0xf]
      %v788 = vld [vmem:[%s785 + $0x8] sm:$0xf]
      %v789 = vld [vmem:[%s785 + $0xc] sm:$0xf]
      %s790 = scalar_lea.vmem %s2, 32
      %v791 = vld [vmem:[%s790] sm:$0xf]
      %v792 = vld [vmem:[%s790 + $0x4] sm:$0xf]
      %v793 = vld [vmem:[%s790 + $0x8] sm:$0xf]
      %v794 = vld [vmem:[%s790 + $0xc] sm:$0xf]
      %v795 = vld [vmem:[%s4] sm:$0x1]
      %s796 = scalar_lea.vmem %s4, 1
      %v797 = vld [vmem:[%s796] sm:$0x1]
      %s798 = scalar_lea.vmem %s4, 2
      %v799 = vld [vmem:[%s798] sm:$0x1]
      %v800 = vld [vmem:[%s417] sm:$0xff]
      %v802 = vlaneseq
      %v803 = vshrl.u32 %v802, 7
      %v804 = vsub.s32 0, %v803
      %v805 = vrot.slane %v795, %v804
      %v811 = vunpack.c.l.b16 %v781
      %v812 = vunpack.c.l.b16 %v782
      %v813 = vunpack.c.l.b16 %v783
      %v814 = vunpack.c.l.b16 %v784
      %v815 = vpack.c.b16 %v812, %v811
      %v816 = vpack.c.b16 %v814, %v813
      %v820 = vsel %vm570, 0, 0
      %822 = vmatprep.subr.bf16.mxu0 0
      %823 = vmatpush1.bf16.msra.mxu0 0
      %824 = vmatprep.subr.bf16.mxu0 0
      %825 = vmatpush1.bf16.msra.mxu0 0
      %826 = vmatprep.subr.bf16.mxu0 0
      %827 = vmatpush1.bf16.msra.mxu0 0
      %828 = vmatprep.subr.bf16.mxu0 0
      %829 = vmatpush1.bf16.msra.mxu0 0
      %830 = vmatprep.subr.bf16.mxu0 0
      %831 = vmatpush1.bf16.msra.mxu0 0
      %832 = vmatprep.subr.bf16.mxu0 0
      %833 = vmatpush1.bf16.msra.mxu0 0
      %834 = vmatprep.subr.bf16.mxu0 0
      %835 = vmatpush1.bf16.msra.mxu0 %v816
      %836 = vmatprep.subr.bf16.mxu0 0
      %837 = vmatpush1.bf16.msra.mxu0 %v815
      %838 = vmatprep.subr.bf16.mxu0 0
      %839 = vmatpush2.bf16.msra.mxu0 0
      %840 = vmatprep.subr.bf16.mxu0 0
      %841 = vmatpush2.bf16.msra.mxu0 0
      %842 = vmatprep.subr.bf16.mxu0 0
      %843 = vmatpush2.bf16.msra.mxu0 0
      %844 = vmatprep.subr.bf16.mxu0 0
      %845 = vmatpush2.bf16.msra.mxu0 0
      %846 = vmatprep.subr.bf16.mxu0 0
      %847 = vmatpush2.bf16.msra.mxu0 0
      %848 = vmatprep.subr.bf16.mxu0 0
      %849 = vmatpush2.bf16.msra.mxu0 0
      %850 = vmatprep.subr.bf16.mxu0 0
      %851 = vmatpush2.bf16.msra.mxu0 0
      %852 = vmatprep.subr.bf16.mxu0 0
      %853 = vmatpush2.bf16.msra.mxu0 0
      %854 = vmatprep.mubr.bf16.mxu0 0
      %855 = vmatmul.mubr.bf16.gmra.mxu0 %v820
      %v856 = vpop.f32.mrf.mxu0
      %v857 = vadd.f32 %v805, %v856
      %v858 = vpop.f32.mrf.mxu0
      %v859 = vpop.f32.mrf.mxu0
      %v860 = vpop.f32.mrf.mxu0
      %861 = vdwg.mxu0
      %v863 = vlaneseq
      %v864 = vshrl.u32 %v863, 7
      %v865 = vsub.s32 0, %v864
      %v866 = vrot.slane %v797, %v865
      %v872 = vunpack.c.l.b16 %v786
      %v873 = vunpack.c.l.b16 %v787
      %v874 = vunpack.c.l.b16 %v788
      %v875 = vunpack.c.l.b16 %v789
      %v876 = vpack.c.b16 %v873, %v872
      %v877 = vpack.c.b16 %v875, %v874
      %880 = vmatprep.subr.bf16.mxu0 0
      %881 = vmatpush1.bf16.msra.mxu0 0
      %882 = vmatprep.subr.bf16.mxu0 0
      %883 = vmatpush1.bf16.msra.mxu0 0
      %884 = vmatprep.subr.bf16.mxu0 0
      %885 = vmatpush1.bf16.msra.mxu0 0
      %886 = vmatprep.subr.bf16.mxu0 0
      %887 = vmatpush1.bf16.msra.mxu0 0
      %888 = vmatprep.subr.bf16.mxu0 0
      %889 = vmatpush1.bf16.msra.mxu0 0
      %890 = vmatprep.subr.bf16.mxu0 0
      %891 = vmatpush1.bf16.msra.mxu0 0
      %892 = vmatprep.subr.bf16.mxu0 0
      %893 = vmatpush1.bf16.msra.mxu0 %v877
      %894 = vmatprep.subr.bf16.mxu0 0
      %895 = vmatpush1.bf16.msra.mxu0 %v876
      %896 = vmatprep.subr.bf16.mxu0 0
      %897 = vmatpush2.bf16.msra.mxu0 0
      %898 = vmatprep.subr.bf16.mxu0 0
      %899 = vmatpush2.bf16.msra.mxu0 0
      %900 = vmatprep.subr.bf16.mxu0 0
      %901 = vmatpush2.bf16.msra.mxu0 0
      %902 = vmatprep.subr.bf16.mxu0 0
      %903 = vmatpush2.bf16.msra.mxu0 0
      %904 = vmatprep.subr.bf16.mxu0 0
      %905 = vmatpush2.bf16.msra.mxu0 0
      %906 = vmatprep.subr.bf16.mxu0 0
      %907 = vmatpush2.bf16.msra.mxu0 0
      %908 = vmatprep.subr.bf16.mxu0 0
      %909 = vmatpush2.bf16.msra.mxu0 0
      %910 = vmatprep.subr.bf16.mxu0 0
      %911 = vmatpush2.bf16.msra.mxu0 0
      %912 = vmatprep.mubr.bf16.mxu0 0
      %913 = vmatmul.mubr.bf16.gmra.mxu0 %v820
      %v914 = vpop.f32.mrf.mxu0
      %v915 = vadd.f32 %v866, %v914
      %v916 = vpop.f32.mrf.mxu0
      %v917 = vpop.f32.mrf.mxu0
      %v918 = vpop.f32.mrf.mxu0
      %919 = vdwg.mxu0
      %v921 = vlaneseq
      %v922 = vshrl.u32 %v921, 7
      %v923 = vsub.s32 0, %v922
      %v924 = vrot.slane %v799, %v923
      %v930 = vunpack.c.l.b16 %v791
      %v931 = vunpack.c.l.b16 %v792
      %v932 = vunpack.c.l.b16 %v793
      %v933 = vunpack.c.l.b16 %v794
      %v934 = vpack.c.b16 %v931, %v930
      %v935 = vpack.c.b16 %v933, %v932
      %938 = vmatprep.subr.bf16.mxu0 0
      %939 = vmatpush1.bf16.msra.mxu0 0
      %940 = vmatprep.subr.bf16.mxu0 0
      %941 = vmatpush1.bf16.msra.mxu0 0
      %942 = vmatprep.subr.bf16.mxu0 0
      %943 = vmatpush1.bf16.msra.mxu0 0
      %944 = vmatprep.subr.bf16.mxu0 0
      %945 = vmatpush1.bf16.msra.mxu0 0
      %946 = vmatprep.subr.bf16.mxu0 0
      %947 = vmatpush1.bf16.msra.mxu0 0
      %948 = vmatprep.subr.bf16.mxu0 0
      %949 = vmatpush1.bf16.msra.mxu0 0
      %950 = vmatprep.subr.bf16.mxu0 0
      %951 = vmatpush1.bf16.msra.mxu0 %v935
      %952 = vmatprep.subr.bf16.mxu0 0
      %953 = vmatpush1.bf16.msra.mxu0 %v934
      %954 = vmatprep.subr.bf16.mxu0 0
      %955 = vmatpush2.bf16.msra.mxu0 0
      %956 = vmatprep.subr.bf16.mxu0 0
      %957 = vmatpush2.bf16.msra.mxu0 0
      %958 = vmatprep.subr.bf16.mxu0 0
      %959 = vmatpush2.bf16.msra.mxu0 0
      %960 = vmatprep.subr.bf16.mxu0 0
      %961 = vmatpush2.bf16.msra.mxu0 0
      %962 = vmatprep.subr.bf16.mxu0 0
      %963 = vmatpush2.bf16.msra.mxu0 0
      %964 = vmatprep.subr.bf16.mxu0 0
      %965 = vmatpush2.bf16.msra.mxu0 0
      %966 = vmatprep.subr.bf16.mxu0 0
      %967 = vmatpush2.bf16.msra.mxu0 0
      %968 = vmatprep.subr.bf16.mxu0 0
      %969 = vmatpush2.bf16.msra.mxu0 0
      %970 = vmatprep.mubr.bf16.mxu0 0
      %971 = vmatmul.mubr.bf16.gmra.mxu0 %v820
      %v972 = vpop.f32.mrf.mxu0
      %v973 = vadd.f32 %v924, %v972
      %v974 = vpop.f32.mrf.mxu0
      %v975 = vpop.f32.mrf.mxu0
      %v976 = vpop.f32.mrf.mxu0
      %977 = vdwg.mxu0
      %v978 = vld [vmem:[#allocation2] sm:$0xff]
      %v979 = vadd.f32 %v978, %v857
      %v980 = vxor.u32 %v979, 2147483648
      %v981 = vmul.f32 %v980, 1.442695
      %v982 = vpow.pop %v981
      %v983 = vadd.f32 %v982, 1.0
      %v984 = vrcp.pop %v983
      %v985 = vmul.f32 1.0, %v984
      %v986 = vld [vmem:[#allocation3] sm:$0xff]
      %v987 = vadd.f32 %v986, %v915
      %v988 = vxor.u32 %v987, 2147483648
      %v989 = vmul.f32 %v988, 1.442695
      %v990 = vpow.pop %v989
      %v991 = vadd.f32 %v990, 1.0
      %v992 = vrcp.pop %v991
      %v993 = vmul.f32 1.0, %v992
      %v994 = vld [vmem:[#allocation4] sm:$0xff]
      %v995 = vmul.f32 %v985, %v973
      %v996 = vadd.f32 %v994, %v995
      %v997 = vtanh.pop %v996
      %v998 = vsub.f32 1.0, %v993
      %v999 = vmul.f32 %v998, %v997
      %v1000 = vmul.f32 %v993, 0.0
      %v1001 = vadd.f32 %v999, %v1000
      %vm1002 = vcmp.gt.s32.totalorder %v800, 0
      %v1003 = vsel %vm1002, 1, 0
      %1004 = vset.pattern.permute.xlu0 0
      %1005 = vperm.xlu0 %1004, %v1003
      %v1006 = vpop.permute.xlu0 %1005
      %vm1007 = vcmp.eq.s32.totalorder %v1006, 1
      %v1008 = vsel %vm1007, %v1001, 0.0
      %v1009 = vpack.c.bf16 %v1008, %v1008
      %v1011 = vsel %vm570, %v1009, 0
      %1013 = vmatprep.subr.bf16.mxu0 0
      %1014 = vmatpush1.bf16.msra.mxu0 0
      %1015 = vmatprep.subr.bf16.mxu0 0
      %1016 = vmatpush1.bf16.msra.mxu0 0
      %1017 = vmatprep.subr.bf16.mxu0 0
      %1018 = vmatpush1.bf16.msra.mxu0 0
      %1019 = vmatprep.subr.bf16.mxu0 0
      %1020 = vmatpush1.bf16.msra.mxu0 0
      %1021 = vmatprep.subr.bf16.mxu0 0
      %1022 = vmatpush1.bf16.msra.mxu0 0
      %1023 = vmatprep.subr.bf16.mxu0 0
      %1024 = vmatpush1.bf16.msra.mxu0 0
      %1025 = vmatprep.subr.bf16.mxu0 0
      %1026 = vmatpush1.bf16.msra.mxu0 %v816
      %1027 = vmatprep.subr.bf16.mxu0 0
      %1028 = vmatpush1.bf16.msra.mxu0 %v815
      %1029 = vmatprep.subr.bf16.mxu0 0
      %1030 = vmatpush2.bf16.msra.mxu0 0
      %1031 = vmatprep.subr.bf16.mxu0 0
      %1032 = vmatpush2.bf16.msra.mxu0 0
      %1033 = vmatprep.subr.bf16.mxu0 0
      %1034 = vmatpush2.bf16.msra.mxu0 0
      %1035 = vmatprep.subr.bf16.mxu0 0
      %1036 = vmatpush2.bf16.msra.mxu0 0
      %1037 = vmatprep.subr.bf16.mxu0 0
      %1038 = vmatpush2.bf16.msra.mxu0 0
      %1039 = vmatprep.subr.bf16.mxu0 0
      %1040 = vmatpush2.bf16.msra.mxu0 0
      %1041 = vmatprep.subr.bf16.mxu0 0
      %1042 = vmatpush2.bf16.msra.mxu0 0
      %1043 = vmatprep.subr.bf16.mxu0 0
      %1044 = vmatpush2.bf16.msra.mxu0 0
      %1045 = vmatprep.mubr.bf16.mxu0 0
      %1046 = vmatmul.mubr.bf16.gmra.mxu0 %v1011
      %v1047 = vpop.f32.mrf.mxu0
      %v1048 = vadd.f32 %v805, %v1047
      %v1049 = vpop.f32.mrf.mxu0
      %v1050 = vpop.f32.mrf.mxu0
      %v1051 = vpop.f32.mrf.mxu0
      %1052 = vdwg.mxu0
      %1053 = vmatprep.subr.bf16.mxu0 0
      %1054 = vmatpush1.bf16.msra.mxu0 0
      %1055 = vmatprep.subr.bf16.mxu0 0
      %1056 = vmatpush1.bf16.msra.mxu0 0
      %1057 = vmatprep.subr.bf16.mxu0 0
      %1058 = vmatpush1.bf16.msra.mxu0 0
      %1059 = vmatprep.subr.bf16.mxu0 0
      %1060 = vmatpush1.bf16.msra.mxu0 0
      %1061 = vmatprep.subr.bf16.mxu0 0
      %1062 = vmatpush1.bf16.msra.mxu0 0
      %1063 = vmatprep.subr.bf16.mxu0 0
      %1064 = vmatpush1.bf16.msra.mxu0 0
      %1065 = vmatprep.subr.bf16.mxu0 0
      %1066 = vmatpush1.bf16.msra.mxu0 %v877
      %1067 = vmatprep.subr.bf16.mxu0 0
      %1068 = vmatpush1.bf16.msra.mxu0 %v876
      %1069 = vmatprep.subr.bf16.mxu0 0
      %1070 = vmatpush2.bf16.msra.mxu0 0
      %1071 = vmatprep.subr.bf16.mxu0 0
      %1072 = vmatpush2.bf16.msra.mxu0 0
      %1073 = vmatprep.subr.bf16.mxu0 0
      %1074 = vmatpush2.bf16.msra.mxu0 0
      %1075 = vmatprep.subr.bf16.mxu0 0
      %1076 = vmatpush2.bf16.msra.mxu0 0
      %1077 = vmatprep.subr.bf16.mxu0 0
      %1078 = vmatpush2.bf16.msra.mxu0 0
      %1079 = vmatprep.subr.bf16.mxu0 0
      %1080 = vmatpush2.bf16.msra.mxu0 0
      %1081 = vmatprep.subr.bf16.mxu0 0
      %1082 = vmatpush2.bf16.msra.mxu0 0
      %1083 = vmatprep.subr.bf16.mxu0 0
      %1084 = vmatpush2.bf16.msra.mxu0 0
      %1085 = vmatprep.mubr.bf16.mxu0 0
      %1086 = vmatmul.mubr.bf16.gmra.mxu0 %v1011
      %v1087 = vpop.f32.mrf.mxu0
      %v1088 = vadd.f32 %v866, %v1087
      %v1089 = vpop.f32.mrf.mxu0
      %v1090 = vpop.f32.mrf.mxu0
      %v1091 = vpop.f32.mrf.mxu0
      %1092 = vdwg.mxu0
      %1093 = vmatprep.subr.bf16.mxu0 0
      %1094 = vmatpush1.bf16.msra.mxu0 0
      %1095 = vmatprep.subr.bf16.mxu0 0
      %1096 = vmatpush1.bf16.msra.mxu0 0
      %1097 = vmatprep.subr.bf16.mxu0 0
      %1098 = vmatpush1.bf16.msra.mxu0 0
      %1099 = vmatprep.subr.bf16.mxu0 0
      %1100 = vmatpush1.bf16.msra.mxu0 0
      %1101 = vmatprep.subr.bf16.mxu0 0
      %1102 = vmatpush1.bf16.msra.mxu0 0
      %1103 = vmatprep.subr.bf16.mxu0 0
      %1104 = vmatpush1.bf16.msra.mxu0 0
      %1105 = vmatprep.subr.bf16.mxu0 0
      %1106 = vmatpush1.bf16.msra.mxu0 %v935
      %1107 = vmatprep.subr.bf16.mxu0 0
      %1108 = vmatpush1.bf16.msra.mxu0 %v934
      %1109 = vmatprep.subr.bf16.mxu0 0
      %1110 = vmatpush2.bf16.msra.mxu0 0
      %1111 = vmatprep.subr.bf16.mxu0 0
      %1112 = vmatpush2.bf16.msra.mxu0 0
      %1113 = vmatprep.subr.bf16.mxu0 0
      %1114 = vmatpush2.bf16.msra.mxu0 0
      %1115 = vmatprep.subr.bf16.mxu0 0
      %1116 = vmatpush2.bf16.msra.mxu0 0
      %1117 = vmatprep.subr.bf16.mxu0 0
      %1118 = vmatpush2.bf16.msra.mxu0 0
      %1119 = vmatprep.subr.bf16.mxu0 0
      %1120 = vmatpush2.bf16.msra.mxu0 0
      %1121 = vmatprep.subr.bf16.mxu0 0
      %1122 = vmatpush2.bf16.msra.mxu0 0
      %1123 = vmatprep.subr.bf16.mxu0 0
      %1124 = vmatpush2.bf16.msra.mxu0 0
      %1125 = vmatprep.mubr.bf16.mxu0 0
      %1126 = vmatmul.mubr.bf16.gmra.mxu0 %v1011
      %v1127 = vpop.f32.mrf.mxu0
      %v1128 = vadd.f32 %v924, %v1127
      %v1129 = vpop.f32.mrf.mxu0
      %v1130 = vpop.f32.mrf.mxu0
      %v1131 = vpop.f32.mrf.mxu0
      %1132 = vdwg.mxu0
      %s1133 = scalar_lea.vmem [#allocation2], 8
      %v1134 = vld [vmem:[%s1133] sm:$0xff]
      %v1135 = vadd.f32 %v1134, %v1048
      %v1136 = vxor.u32 %v1135, 2147483648
      %v1137 = vmul.f32 %v1136, 1.442695
      %v1138 = vpow.pop %v1137
      %v1139 = vadd.f32 %v1138, 1.0
      %v1140 = vrcp.pop %v1139
      %v1141 = vmul.f32 1.0, %v1140
      %s1142 = scalar_lea.vmem [#allocation3], 8
      %v1143 = vld [vmem:[%s1142] sm:$0xff]
      %v1144 = vadd.f32 %v1143, %v1088
      %v1145 = vxor.u32 %v1144, 2147483648
      %v1146 = vmul.f32 %v1145, 1.442695
      %v1147 = vpow.pop %v1146
      %v1148 = vadd.f32 %v1147, 1.0
      %v1149 = vrcp.pop %v1148
      %v1150 = vmul.f32 1.0, %v1149
      %s1151 = scalar_lea.vmem [#allocation4], 8
      %v1152 = vld [vmem:[%s1151] sm:$0xff]
      %v1153 = vmul.f32 %v1141, %v1128
      %v1154 = vadd.f32 %v1152, %v1153
      %v1155 = vtanh.pop %v1154
      %v1156 = vsub.f32 1.0, %v1150
      %v1157 = vmul.f32 %v1156, %v1155
      %v1158 = vmul.f32 %v1150, %v1008
      %v1159 = vadd.f32 %v1157, %v1158
      %vm1160 = vcmp.gt.s32.totalorder %v800, 1
      %v1161 = vsel %vm1160, 1, 0
      %1162 = vset.pattern.permute.xlu0 0
      %1163 = vperm.xlu0 %1162, %v1161
      %v1164 = vpop.permute.xlu0 %1163
      %vm1165 = vcmp.eq.s32.totalorder %v1164, 1
      %v1166 = vsel %vm1165, %v1159, %v1008
      %v1167 = vpack.c.bf16 %v1166, %v1166
      %v1169 = vsel %vm570, %v1167, 0
      %1171 = vmatprep.subr.bf16.mxu0 0
      %1172 = vmatpush1.bf16.msra.mxu0 0
      %1173 = vmatprep.subr.bf16.mxu0 0
      %1174 = vmatpush1.bf16.msra.mxu0 0
      %1175 = vmatprep.subr.bf16.mxu0 0
      %1176 = vmatpush1.bf16.msra.mxu0 0
      %1177 = vmatprep.subr.bf16.mxu0 0
      %1178 = vmatpush1.bf16.msra.mxu0 0
      %1179 = vmatprep.subr.bf16.mxu0 0
      %1180 = vmatpush1.bf16.msra.mxu0 0
      %1181 = vmatprep.subr.bf16.mxu0 0
      %1182 = vmatpush1.bf16.msra.mxu0 0
      %1183 = vmatprep.subr.bf16.mxu0 0
      %1184 = vmatpush1.bf16.msra.mxu0 %v816
      %1185 = vmatprep.subr.bf16.mxu0 0
      %1186 = vmatpush1.bf16.msra.mxu0 %v815
      %1187 = vmatprep.subr.bf16.mxu0 0
      %1188 = vmatpush2.bf16.msra.mxu0 0
      %1189 = vmatprep.subr.bf16.mxu0 0
      %1190 = vmatpush2.bf16.msra.mxu0 0
      %1191 = vmatprep.subr.bf16.mxu0 0
      %1192 = vmatpush2.bf16.msra.mxu0 0
      %1193 = vmatprep.subr.bf16.mxu0 0
      %1194 = vmatpush2.bf16.msra.mxu0 0
      %1195 = vmatprep.subr.bf16.mxu0 0
      %1196 = vmatpush2.bf16.msra.mxu0 0
      %1197 = vmatprep.subr.bf16.mxu0 0
      %1198 = vmatpush2.bf16.msra.mxu0 0
      %1199 = vmatprep.subr.bf16.mxu0 0
      %1200 = vmatpush2.bf16.msra.mxu0 0
      %1201 = vmatprep.subr.bf16.mxu0 0
      %1202 = vmatpush2.bf16.msra.mxu0 0
      %1203 = vmatprep.mubr.bf16.mxu0 0
      %1204 = vmatmul.mubr.bf16.gmra.mxu0 %v1169
      %v1205 = vpop.f32.mrf.mxu0
      %v1206 = vadd.f32 %v805, %v1205
      %v1207 = vpop.f32.mrf.mxu0
      %v1208 = vpop.f32.mrf.mxu0
      %v1209 = vpop.f32.mrf.mxu0
      %1210 = vdwg.mxu0
      %1211 = vmatprep.subr.bf16.mxu0 0
      %1212 = vmatpush1.bf16.msra.mxu0 0
      %1213 = vmatprep.subr.bf16.mxu0 0
      %1214 = vmatpush1.bf16.msra.mxu0 0
      %1215 = vmatprep.subr.bf16.mxu0 0
      %1216 = vmatpush1.bf16.msra.mxu0 0
      %1217 = vmatprep.subr.bf16.mxu0 0
      %1218 = vmatpush1.bf16.msra.mxu0 0
      %1219 = vmatprep.subr.bf16.mxu0 0
      %1220 = vmatpush1.bf16.msra.mxu0 0
      %1221 = vmatprep.subr.bf16.mxu0 0
      %1222 = vmatpush1.bf16.msra.mxu0 0
      %1223 = vmatprep.subr.bf16.mxu0 0
      %1224 = vmatpush1.bf16.msra.mxu0 %v877
      %1225 = vmatprep.subr.bf16.mxu0 0
      %1226 = vmatpush1.bf16.msra.mxu0 %v876
      %1227 = vmatprep.subr.bf16.mxu0 0
      %1228 = vmatpush2.bf16.msra.mxu0 0
      %1229 = vmatprep.subr.bf16.mxu0 0
      %1230 = vmatpush2.bf16.msra.mxu0 0
      %1231 = vmatprep.subr.bf16.mxu0 0
      %1232 = vmatpush2.bf16.msra.mxu0 0
      %1233 = vmatprep.subr.bf16.mxu0 0
      %1234 = vmatpush2.bf16.msra.mxu0 0
      %1235 = vmatprep.subr.bf16.mxu0 0
      %1236 = vmatpush2.bf16.msra.mxu0 0
      %1237 = vmatprep.subr.bf16.mxu0 0
      %1238 = vmatpush2.bf16.msra.mxu0 0
      %1239 = vmatprep.subr.bf16.mxu0 0
      %1240 = vmatpush2.bf16.msra.mxu0 0
      %1241 = vmatprep.subr.bf16.mxu0 0
      %1242 = vmatpush2.bf16.msra.mxu0 0
      %1243 = vmatprep.mubr.bf16.mxu0 0
      %1244 = vmatmul.mubr.bf16.gmra.mxu0 %v1169
      %v1245 = vpop.f32.mrf.mxu0
      %v1246 = vadd.f32 %v866, %v1245
      %v1247 = vpop.f32.mrf.mxu0
      %v1248 = vpop.f32.mrf.mxu0
      %v1249 = vpop.f32.mrf.mxu0
      %1250 = vdwg.mxu0
      %1251 = vmatprep.subr.bf16.mxu0 0
      %1252 = vmatpush1.bf16.msra.mxu0 0
      %1253 = vmatprep.subr.bf16.mxu0 0
      %1254 = vmatpush1.bf16.msra.mxu0 0
      %1255 = vmatprep.subr.bf16.mxu0 0
      %1256 = vmatpush1.bf16.msra.mxu0 0
      %1257 = vmatprep.subr.bf16.mxu0 0
      %1258 = vmatpush1.bf16.msra.mxu0 0
      %1259 = vmatprep.subr.bf16.mxu0 0
      %1260 = vmatpush1.bf16.msra.mxu0 0
      %1261 = vmatprep.subr.bf16.mxu0 0
      %1262 = vmatpush1.bf16.msra.mxu0 0
      %1263 = vmatprep.subr.bf16.mxu0 0
      %1264 = vmatpush1.bf16.msra.mxu0 %v935
      %1265 = vmatprep.subr.bf16.mxu0 0
      %1266 = vmatpush1.bf16.msra.mxu0 %v934
      %1267 = vmatprep.subr.bf16.mxu0 0
      %1268 = vmatpush2.bf16.msra.mxu0 0
      %1269 = vmatprep.subr.bf16.mxu0 0
      %1270 = vmatpush2.bf16.msra.mxu0 0
      %1271 = vmatprep.subr.bf16.mxu0 0
      %1272 = vmatpush2.bf16.msra.mxu0 0
      %1273 = vmatprep.subr.bf16.mxu0 0
      %1274 = vmatpush2.bf16.msra.mxu0 0
      %1275 = vmatprep.subr.bf16.mxu0 0
      %1276 = vmatpush2.bf16.msra.mxu0 0
      %1277 = vmatprep.subr.bf16.mxu0 0
      %1278 = vmatpush2.bf16.msra.mxu0 0
      %1279 = vmatprep.subr.bf16.mxu0 0
      %1280 = vmatpush2.bf16.msra.mxu0 0
      %1281 = vmatprep.subr.bf16.mxu0 0
      %1282 = vmatpush2.bf16.msra.mxu0 0
      %1283 = vmatprep.mubr.bf16.mxu0 0
      %1284 = vmatmul.mubr.bf16.gmra.mxu0 %v1169
      %v1285 = vpop.f32.mrf.mxu0
      %v1286 = vadd.f32 %v924, %v1285
      %v1287 = vpop.f32.mrf.mxu0
      %v1288 = vpop.f32.mrf.mxu0
      %v1289 = vpop.f32.mrf.mxu0
      %1290 = vdwg.mxu0
      %s1291 = scalar_lea.vmem [#allocation2], 16
      %v1292 = vld [vmem:[%s1291] sm:$0xff]
      %v1293 = vadd.f32 %v1292, %v1206
      %v1294 = vxor.u32 %v1293, 2147483648
      %v1295 = vmul.f32 %v1294, 1.442695
      %v1296 = vpow.pop %v1295
      %v1297 = vadd.f32 %v1296, 1.0
      %v1298 = vrcp.pop %v1297
      %v1299 = vmul.f32 1.0, %v1298
      %s1300 = scalar_lea.vmem [#allocation3], 16
      %v1301 = vld [vmem:[%s1300] sm:$0xff]
      %v1302 = vadd.f32 %v1301, %v1246
      %v1303 = vxor.u32 %v1302, 2147483648
      %v1304 = vmul.f32 %v1303, 1.442695
      %v1305 = vpow.pop %v1304
      %v1306 = vadd.f32 %v1305, 1.0
      %v1307 = vrcp.pop %v1306
      %v1308 = vmul.f32 1.0, %v1307
      %s1309 = scalar_lea.vmem [#allocation4], 16
      %v1310 = vld [vmem:[%s1309] sm:$0xff]
      %v1311 = vmul.f32 %v1299, %v1286
      %v1312 = vadd.f32 %v1310, %v1311
      %v1313 = vtanh.pop %v1312
      %v1314 = vsub.f32 1.0, %v1308
      %v1315 = vmul.f32 %v1314, %v1313
      %v1316 = vmul.f32 %v1308, %v1166
      %v1317 = vadd.f32 %v1315, %v1316
      %vm1318 = vcmp.gt.s32.totalorder %v800, 2
      %v1319 = vsel %vm1318, 1, 0
      %1320 = vset.pattern.permute.xlu0 0
      %1321 = vperm.xlu0 %1320, %v1319
      %v1322 = vpop.permute.xlu0 %1321
      %vm1323 = vcmp.eq.s32.totalorder %v1322, 1
      %v1324 = vsel %vm1323, %v1317, %v1166
      %v1325 = vpack.c.bf16 %v1324, %v1324
      %v1327 = vsel %vm570, %v1325, 0
      %1329 = vmatprep.subr.bf16.mxu0 0
      %1330 = vmatpush1.bf16.msra.mxu0 0
      %1331 = vmatprep.subr.bf16.mxu0 0
      %1332 = vmatpush1.bf16.msra.mxu0 0
      %1333 = vmatprep.subr.bf16.mxu0 0
      %1334 = vmatpush1.bf16.msra.mxu0 0
      %1335 = vmatprep.subr.bf16.mxu0 0
      %1336 = vmatpush1.bf16.msra.mxu0 0
      %1337 = vmatprep.subr.bf16.mxu0 0
      %1338 = vmatpush1.bf16.msra.mxu0 0
      %1339 = vmatprep.subr.bf16.mxu0 0
      %1340 = vmatpush1.bf16.msra.mxu0 0
      %1341 = vmatprep.subr.bf16.mxu0 0
      %1342 = vmatpush1.bf16.msra.mxu0 %v816
      %1343 = vmatprep.subr.bf16.mxu0 0
      %1344 = vmatpush1.bf16.msra.mxu0 %v815
      %1345 = vmatprep.subr.bf16.mxu0 0
      %1346 = vmatpush2.bf16.msra.mxu0 0
      %1347 = vmatprep.subr.bf16.mxu0 0
      %1348 = vmatpush2.bf16.msra.mxu0 0
      %1349 = vmatprep.subr.bf16.mxu0 0
      %1350 = vmatpush2.bf16.msra.mxu0 0
      %1351 = vmatprep.subr.bf16.mxu0 0
      %1352 = vmatpush2.bf16.msra.mxu0 0
      %1353 = vmatprep.subr.bf16.mxu0 0
      %1354 = vmatpush2.bf16.msra.mxu0 0
      %1355 = vmatprep.subr.bf16.mxu0 0
      %1356 = vmatpush2.bf16.msra.mxu0 0
      %1357 = vmatprep.subr.bf16.mxu0 0
      %1358 = vmatpush2.bf16.msra.mxu0 0
      %1359 = vmatprep.subr.bf16.mxu0 0
      %1360 = vmatpush2.bf16.msra.mxu0 0
      %1361 = vmatprep.mubr.bf16.mxu0 0
      %1362 = vmatmul.mubr.bf16.gmra.mxu0 %v1327
      %v1363 = vpop.f32.mrf.mxu0
      %v1364 = vadd.f32 %v805, %v1363
      %v1365 = vpop.f32.mrf.mxu0
      %v1366 = vpop.f32.mrf.mxu0
      %v1367 = vpop.f32.mrf.mxu0
      %1368 = vdwg.mxu0
      %1369 = vmatprep.subr.bf16.mxu0 0
      %1370 = vmatpush1.bf16.msra.mxu0 0
      %1371 = vmatprep.subr.bf16.mxu0 0
      %1372 = vmatpush1.bf16.msra.mxu0 0
      %1373 = vmatprep.subr.bf16.mxu0 0
      %1374 = vmatpush1.bf16.msra.mxu0 0
      %1375 = vmatprep.subr.bf16.mxu0 0
      %1376 = vmatpush1.bf16.msra.mxu0 0
      %1377 = vmatprep.subr.bf16.mxu0 0
      %1378 = vmatpush1.bf16.msra.mxu0 0
      %1379 = vmatprep.subr.bf16.mxu0 0
      %1380 = vmatpush1.bf16.msra.mxu0 0
      %1381 = vmatprep.subr.bf16.mxu0 0
      %1382 = vmatpush1.bf16.msra.mxu0 %v877
      %1383 = vmatprep.subr.bf16.mxu0 0
      %1384 = vmatpush1.bf16.msra.mxu0 %v876
      %1385 = vmatprep.subr.bf16.mxu0 0
      %1386 = vmatpush2.bf16.msra.mxu0 0
      %1387 = vmatprep.subr.bf16.mxu0 0
      %1388 = vmatpush2.bf16.msra.mxu0 0
      %1389 = vmatprep.subr.bf16.mxu0 0
      %1390 = vmatpush2.bf16.msra.mxu0 0
      %1391 = vmatprep.subr.bf16.mxu0 0
      %1392 = vmatpush2.bf16.msra.mxu0 0
      %1393 = vmatprep.subr.bf16.mxu0 0
      %1394 = vmatpush2.bf16.msra.mxu0 0
      %1395 = vmatprep.subr.bf16.mxu0 0
      %1396 = vmatpush2.bf16.msra.mxu0 0
      %1397 = vmatprep.subr.bf16.mxu0 0
      %1398 = vmatpush2.bf16.msra.mxu0 0
      %1399 = vmatprep.subr.bf16.mxu0 0
      %1400 = vmatpush2.bf16.msra.mxu0 0
      %1401 = vmatprep.mubr.bf16.mxu0 0
      %1402 = vmatmul.mubr.bf16.gmra.mxu0 %v1327
      %v1403 = vpop.f32.mrf.mxu0
      %v1404 = vadd.f32 %v866, %v1403
      %v1405 = vpop.f32.mrf.mxu0
      %v1406 = vpop.f32.mrf.mxu0
      %v1407 = vpop.f32.mrf.mxu0
      %1408 = vdwg.mxu0
      %1409 = vmatprep.subr.bf16.mxu0 0
      %1410 = vmatpush1.bf16.msra.mxu0 0
      %1411 = vmatprep.subr.bf16.mxu0 0
      %1412 = vmatpush1.bf16.msra.mxu0 0
      %1413 = vmatprep.subr.bf16.mxu0 0
      %1414 = vmatpush1.bf16.msra.mxu0 0
      %1415 = vmatprep.subr.bf16.mxu0 0
      %1416 = vmatpush1.bf16.msra.mxu0 0
      %1417 = vmatprep.subr.bf16.mxu0 0
      %1418 = vmatpush1.bf16.msra.mxu0 0
      %1419 = vmatprep.subr.bf16.mxu0 0
      %1420 = vmatpush1.bf16.msra.mxu0 0
      %1421 = vmatprep.subr.bf16.mxu0 0
      %1422 = vmatpush1.bf16.msra.mxu0 %v935
      %1423 = vmatprep.subr.bf16.mxu0 0
      %1424 = vmatpush1.bf16.msra.mxu0 %v934
      %1425 = vmatprep.subr.bf16.mxu0 0
      %1426 = vmatpush2.bf16.msra.mxu0 0
      %1427 = vmatprep.subr.bf16.mxu0 0
      %1428 = vmatpush2.bf16.msra.mxu0 0
      %1429 = vmatprep.subr.bf16.mxu0 0
      %1430 = vmatpush2.bf16.msra.mxu0 0
      %1431 = vmatprep.subr.bf16.mxu0 0
      %1432 = vmatpush2.bf16.msra.mxu0 0
      %1433 = vmatprep.subr.bf16.mxu0 0
      %1434 = vmatpush2.bf16.msra.mxu0 0
      %1435 = vmatprep.subr.bf16.mxu0 0
      %1436 = vmatpush2.bf16.msra.mxu0 0
      %1437 = vmatprep.subr.bf16.mxu0 0
      %1438 = vmatpush2.bf16.msra.mxu0 0
      %1439 = vmatprep.subr.bf16.mxu0 0
      %1440 = vmatpush2.bf16.msra.mxu0 0
      %1441 = vmatprep.mubr.bf16.mxu0 0
      %1442 = vmatmul.mubr.bf16.gmra.mxu0 %v1327
      %v1443 = vpop.f32.mrf.mxu0
      %v1444 = vadd.f32 %v924, %v1443
      %v1445 = vpop.f32.mrf.mxu0
      %v1446 = vpop.f32.mrf.mxu0
      %v1447 = vpop.f32.mrf.mxu0
      %1448 = vdwg.mxu0
      %s1449 = scalar_lea.vmem [#allocation2], 24
      %v1450 = vld [vmem:[%s1449] sm:$0xff]
      %v1451 = vadd.f32 %v1450, %v1364
      %v1452 = vxor.u32 %v1451, 2147483648
      %v1453 = vmul.f32 %v1452, 1.442695
      %v1454 = vpow.pop %v1453
      %v1455 = vadd.f32 %v1454, 1.0
      %v1456 = vrcp.pop %v1455
      %v1457 = vmul.f32 1.0, %v1456
      %s1458 = scalar_lea.vmem [#allocation3], 24
      %v1459 = vld [vmem:[%s1458] sm:$0xff]
      %v1460 = vadd.f32 %v1459, %v1404
      %v1461 = vxor.u32 %v1460, 2147483648
      %v1462 = vmul.f32 %v1461, 1.442695
      %v1463 = vpow.pop %v1462
      %v1464 = vadd.f32 %v1463, 1.0
      %v1465 = vrcp.pop %v1464
      %v1466 = vmul.f32 1.0, %v1465
      %s1467 = scalar_lea.vmem [#allocation4], 24
      %v1468 = vld [vmem:[%s1467] sm:$0xff]
      %v1469 = vmul.f32 %v1457, %v1444
      %v1470 = vadd.f32 %v1468, %v1469
      %v1471 = vtanh.pop %v1470
      %v1472 = vsub.f32 1.0, %v1466
      %v1473 = vmul.f32 %v1472, %v1471
      %v1474 = vmul.f32 %v1466, %v1324
      %v1475 = vadd.f32 %v1473, %v1474
      %vm1476 = vcmp.gt.s32.totalorder %v800, 3
      %v1477 = vsel %vm1476, 1, 0
      %1478 = vset.pattern.permute.xlu0 0
      %1479 = vperm.xlu0 %1478, %v1477
      %v1480 = vpop.permute.xlu0 %1479
      %vm1481 = vcmp.eq.s32.totalorder %v1480, 1
      %v1482 = vsel %vm1481, %v1475, %v1324
      %v1483 = vpack.c.bf16 %v1482, %v1482
      %v1485 = vsel %vm570, %v1483, 0
      %1487 = vmatprep.subr.bf16.mxu0 0
      %1488 = vmatpush1.bf16.msra.mxu0 0
      %1489 = vmatprep.subr.bf16.mxu0 0
      %1490 = vmatpush1.bf16.msra.mxu0 0
      %1491 = vmatprep.subr.bf16.mxu0 0
      %1492 = vmatpush1.bf16.msra.mxu0 0
      %1493 = vmatprep.subr.bf16.mxu0 0
      %1494 = vmatpush1.bf16.msra.mxu0 0
      %1495 = vmatprep.subr.bf16.mxu0 0
      %1496 = vmatpush1.bf16.msra.mxu0 0
      %1497 = vmatprep.subr.bf16.mxu0 0
      %1498 = vmatpush1.bf16.msra.mxu0 0
      %1499 = vmatprep.subr.bf16.mxu0 0
      %1500 = vmatpush1.bf16.msra.mxu0 %v816
      %1501 = vmatprep.subr.bf16.mxu0 0
      %1502 = vmatpush1.bf16.msra.mxu0 %v815
      %1503 = vmatprep.subr.bf16.mxu0 0
      %1504 = vmatpush2.bf16.msra.mxu0 0
      %1505 = vmatprep.subr.bf16.mxu0 0
      %1506 = vmatpush2.bf16.msra.mxu0 0
      %1507 = vmatprep.subr.bf16.mxu0 0
      %1508 = vmatpush2.bf16.msra.mxu0 0
      %1509 = vmatprep.subr.bf16.mxu0 0
      %1510 = vmatpush2.bf16.msra.mxu0 0
      %1511 = vmatprep.subr.bf16.mxu0 0
      %1512 = vmatpush2.bf16.msra.mxu0 0
      %1513 = vmatprep.subr.bf16.mxu0 0
      %1514 = vmatpush2.bf16.msra.mxu0 0
      %1515 = vmatprep.subr.bf16.mxu0 0
      %1516 = vmatpush2.bf16.msra.mxu0 0
      %1517 = vmatprep.subr.bf16.mxu0 0
      %1518 = vmatpush2.bf16.msra.mxu0 0
      %1519 = vmatprep.mubr.bf16.mxu0 0
      %1520 = vmatmul.mubr.bf16.gmra.mxu0 %v1485
      %v1521 = vpop.f32.mrf.mxu0
      %v1522 = vadd.f32 %v805, %v1521
      %v1523 = vpop.f32.mrf.mxu0
      %v1524 = vpop.f32.mrf.mxu0
      %v1525 = vpop.f32.mrf.mxu0
      %1526 = vdwg.mxu0
      %1527 = vmatprep.subr.bf16.mxu0 0
      %1528 = vmatpush1.bf16.msra.mxu0 0
      %1529 = vmatprep.subr.bf16.mxu0 0
      %1530 = vmatpush1.bf16.msra.mxu0 0
      %1531 = vmatprep.subr.bf16.mxu0 0
      %1532 = vmatpush1.bf16.msra.mxu0 0
      %1533 = vmatprep.subr.bf16.mxu0 0
      %1534 = vmatpush1.bf16.msra.mxu0 0
      %1535 = vmatprep.subr.bf16.mxu0 0
      %1536 = vmatpush1.bf16.msra.mxu0 0
      %1537 = vmatprep.subr.bf16.mxu0 0
      %1538 = vmatpush1.bf16.msra.mxu0 0
      %1539 = vmatprep.subr.bf16.mxu0 0
      %1540 = vmatpush1.bf16.msra.mxu0 %v877
      %1541 = vmatprep.subr.bf16.mxu0 0
      %1542 = vmatpush1.bf16.msra.mxu0 %v876
      %1543 = vmatprep.subr.bf16.mxu0 0
      %1544 = vmatpush2.bf16.msra.mxu0 0
      %1545 = vmatprep.subr.bf16.mxu0 0
      %1546 = vmatpush2.bf16.msra.mxu0 0
      %1547 = vmatprep.subr.bf16.mxu0 0
      %1548 = vmatpush2.bf16.msra.mxu0 0
      %1549 = vmatprep.subr.bf16.mxu0 0
      %1550 = vmatpush2.bf16.msra.mxu0 0
      %1551 = vmatprep.subr.bf16.mxu0 0
      %1552 = vmatpush2.bf16.msra.mxu0 0
      %1553 = vmatprep.subr.bf16.mxu0 0
      %1554 = vmatpush2.bf16.msra.mxu0 0
      %1555 = vmatprep.subr.bf16.mxu0 0
      %1556 = vmatpush2.bf16.msra.mxu0 0
      %1557 = vmatprep.subr.bf16.mxu0 0
      %1558 = vmatpush2.bf16.msra.mxu0 0
      %1559 = vmatprep.mubr.bf16.mxu0 0
      %1560 = vmatmul.mubr.bf16.gmra.mxu0 %v1485
      %v1561 = vpop.f32.mrf.mxu0
      %v1562 = vadd.f32 %v866, %v1561
      %v1563 = vpop.f32.mrf.mxu0
      %v1564 = vpop.f32.mrf.mxu0
      %v1565 = vpop.f32.mrf.mxu0
      %1566 = vdwg.mxu0
      %1567 = vmatprep.subr.bf16.mxu0 0
      %1568 = vmatpush1.bf16.msra.mxu0 0
      %1569 = vmatprep.subr.bf16.mxu0 0
      %1570 = vmatpush1.bf16.msra.mxu0 0
      %1571 = vmatprep.subr.bf16.mxu0 0
      %1572 = vmatpush1.bf16.msra.mxu0 0
      %1573 = vmatprep.subr.bf16.mxu0 0
      %1574 = vmatpush1.bf16.msra.mxu0 0
      %1575 = vmatprep.subr.bf16.mxu0 0
      %1576 = vmatpush1.bf16.msra.mxu0 0
      %1577 = vmatprep.subr.bf16.mxu0 0
      %1578 = vmatpush1.bf16.msra.mxu0 0
      %1579 = vmatprep.subr.bf16.mxu0 0
      %1580 = vmatpush1.bf16.msra.mxu0 %v935
      %1581 = vmatprep.subr.bf16.mxu0 0
      %1582 = vmatpush1.bf16.msra.mxu0 %v934
      %1583 = vmatprep.subr.bf16.mxu0 0
      %1584 = vmatpush2.bf16.msra.mxu0 0
      %1585 = vmatprep.subr.bf16.mxu0 0
      %1586 = vmatpush2.bf16.msra.mxu0 0
      %1587 = vmatprep.subr.bf16.mxu0 0
      %1588 = vmatpush2.bf16.msra.mxu0 0
      %1589 = vmatprep.subr.bf16.mxu0 0
      %1590 = vmatpush2.bf16.msra.mxu0 0
      %1591 = vmatprep.subr.bf16.mxu0 0
      %1592 = vmatpush2.bf16.msra.mxu0 0
      %1593 = vmatprep.subr.bf16.mxu0 0
      %1594 = vmatpush2.bf16.msra.mxu0 0
      %1595 = vmatprep.subr.bf16.mxu0 0
      %1596 = vmatpush2.bf16.msra.mxu0 0
      %1597 = vmatprep.subr.bf16.mxu0 0
      %1598 = vmatpush2.bf16.msra.mxu0 0
      %1599 = vmatprep.mubr.bf16.mxu0 0
      %1600 = vmatmul.mubr.bf16.gmra.mxu0 %v1485
      %v1601 = vpop.f32.mrf.mxu0
      %v1602 = vadd.f32 %v924, %v1601
      %v1603 = vpop.f32.mrf.mxu0
      %v1604 = vpop.f32.mrf.mxu0
      %v1605 = vpop.f32.mrf.mxu0
      %1606 = vdwg.mxu0
      %s1607 = scalar_lea.vmem [#allocation2], 32
      %v1608 = vld [vmem:[%s1607] sm:$0xff]
      %v1609 = vadd.f32 %v1608, %v1522
      %v1610 = vxor.u32 %v1609, 2147483648
      %v1611 = vmul.f32 %v1610, 1.442695
      %v1612 = vpow.pop %v1611
      %v1613 = vadd.f32 %v1612, 1.0
      %v1614 = vrcp.pop %v1613
      %v1615 = vmul.f32 1.0, %v1614
      %s1616 = scalar_lea.vmem [#allocation3], 32
      %v1617 = vld [vmem:[%s1616] sm:$0xff]
      %v1618 = vadd.f32 %v1617, %v1562
      %v1619 = vxor.u32 %v1618, 2147483648
      %v1620 = vmul.f32 %v1619, 1.442695
      %v1621 = vpow.pop %v1620
      %v1622 = vadd.f32 %v1621, 1.0
      %v1623 = vrcp.pop %v1622
      %v1624 = vmul.f32 1.0, %v1623
      %s1625 = scalar_lea.vmem [#allocation4], 32
      %v1626 = vld [vmem:[%s1625] sm:$0xff]
      %v1627 = vmul.f32 %v1615, %v1602
      %v1628 = vadd.f32 %v1626, %v1627
      %v1629 = vtanh.pop %v1628
      %v1630 = vsub.f32 1.0, %v1624
      %v1631 = vmul.f32 %v1630, %v1629
      %v1632 = vmul.f32 %v1624, %v1482
      %v1633 = vadd.f32 %v1631, %v1632
      %vm1634 = vcmp.gt.s32.totalorder %v800, 4
      %v1635 = vsel %vm1634, 1, 0
      %1636 = vset.pattern.permute.xlu0 0
      %1637 = vperm.xlu0 %1636, %v1635
      %v1638 = vpop.permute.xlu0 %1637
      %vm1639 = vcmp.eq.s32.totalorder %v1638, 1
      %v1640 = vsel %vm1639, %v1633, %v1482
      %v1641 = vpack.c.bf16 %v1640, %v1640
      %v1643 = vsel %vm570, %v1641, 0
      %1645 = vmatprep.subr.bf16.mxu0 0
      %1646 = vmatpush1.bf16.msra.mxu0 0
      %1647 = vmatprep.subr.bf16.mxu0 0
      %1648 = vmatpush1.bf16.msra.mxu0 0
      %1649 = vmatprep.subr.bf16.mxu0 0
      %1650 = vmatpush1.bf16.msra.mxu0 0
      %1651 = vmatprep.subr.bf16.mxu0 0
      %1652 = vmatpush1.bf16.msra.mxu0 0
      %1653 = vmatprep.subr.bf16.mxu0 0
      %1654 = vmatpush1.bf16.msra.mxu0 0
      %1655 = vmatprep.subr.bf16.mxu0 0
      %1656 = vmatpush1.bf16.msra.mxu0 0
      %1657 = vmatprep.subr.bf16.mxu0 0
      %1658 = vmatpush1.bf16.msra.mxu0 %v816
      %1659 = vmatprep.subr.bf16.mxu0 0
      %1660 = vmatpush1.bf16.msra.mxu0 %v815
      %1661 = vmatprep.subr.bf16.mxu0 0
      %1662 = vmatpush2.bf16.msra.mxu0 0
      %1663 = vmatprep.subr.bf16.mxu0 0
      %1664 = vmatpush2.bf16.msra.mxu0 0
      %1665 = vmatprep.subr.bf16.mxu0 0
      %1666 = vmatpush2.bf16.msra.mxu0 0
      %1667 = vmatprep.subr.bf16.mxu0 0
      %1668 = vmatpush2.bf16.msra.mxu0 0
      %1669 = vmatprep.subr.bf16.mxu0 0
      %1670 = vmatpush2.bf16.msra.mxu0 0
      %1671 = vmatprep.subr.bf16.mxu0 0
      %1672 = vmatpush2.bf16.msra.mxu0 0
      %1673 = vmatprep.subr.bf16.mxu0 0
      %1674 = vmatpush2.bf16.msra.mxu0 0
      %1675 = vmatprep.subr.bf16.mxu0 0
      %1676 = vmatpush2.bf16.msra.mxu0 0
      %1677 = vmatprep.mubr.bf16.mxu0 0
      %1678 = vmatmul.mubr.bf16.gmra.mxu0 %v1643
      %v1679 = vpop.f32.mrf.mxu0
      %v1680 = vadd.f32 %v805, %v1679
      %v1681 = vpop.f32.mrf.mxu0
      %v1682 = vpop.f32.mrf.mxu0
      %v1683 = vpop.f32.mrf.mxu0
      %1684 = vdwg.mxu0
      %1685 = vmatprep.subr.bf16.mxu0 0
      %1686 = vmatpush1.bf16.msra.mxu0 0
      %1687 = vmatprep.subr.bf16.mxu0 0
      %1688 = vmatpush1.bf16.msra.mxu0 0
      %1689 = vmatprep.subr.bf16.mxu0 0
      %1690 = vmatpush1.bf16.msra.mxu0 0
      %1691 = vmatprep.subr.bf16.mxu0 0
      %1692 = vmatpush1.bf16.msra.mxu0 0
      %1693 = vmatprep.subr.bf16.mxu0 0
      %1694 = vmatpush1.bf16.msra.mxu0 0
      %1695 = vmatprep.subr.bf16.mxu0 0
      %1696 = vmatpush1.bf16.msra.mxu0 0
      %1697 = vmatprep.subr.bf16.mxu0 0
      %1698 = vmatpush1.bf16.msra.mxu0 %v877
      %1699 = vmatprep.subr.bf16.mxu0 0
      %1700 = vmatpush1.bf16.msra.mxu0 %v876
      %1701 = vmatprep.subr.bf16.mxu0 0
      %1702 = vmatpush2.bf16.msra.mxu0 0
      %1703 = vmatprep.subr.bf16.mxu0 0
      %1704 = vmatpush2.bf16.msra.mxu0 0
      %1705 = vmatprep.subr.bf16.mxu0 0
      %1706 = vmatpush2.bf16.msra.mxu0 0
      %1707 = vmatprep.subr.bf16.mxu0 0
      %1708 = vmatpush2.bf16.msra.mxu0 0
      %1709 = vmatprep.subr.bf16.mxu0 0
      %1710 = vmatpush2.bf16.msra.mxu0 0
      %1711 = vmatprep.subr.bf16.mxu0 0
      %1712 = vmatpush2.bf16.msra.mxu0 0
      %1713 = vmatprep.subr.bf16.mxu0 0
      %1714 = vmatpush2.bf16.msra.mxu0 0
      %1715 = vmatprep.subr.bf16.mxu0 0
      %1716 = vmatpush2.bf16.msra.mxu0 0
      %1717 = vmatprep.mubr.bf16.mxu0 0
      %1718 = vmatmul.mubr.bf16.gmra.mxu0 %v1643
      %v1719 = vpop.f32.mrf.mxu0
      %v1720 = vadd.f32 %v866, %v1719
      %v1721 = vpop.f32.mrf.mxu0
      %v1722 = vpop.f32.mrf.mxu0
      %v1723 = vpop.f32.mrf.mxu0
      %1724 = vdwg.mxu0
      %1725 = vmatprep.subr.bf16.mxu0 0
      %1726 = vmatpush1.bf16.msra.mxu0 0
      %1727 = vmatprep.subr.bf16.mxu0 0
      %1728 = vmatpush1.bf16.msra.mxu0 0
      %1729 = vmatprep.subr.bf16.mxu0 0
      %1730 = vmatpush1.bf16.msra.mxu0 0
      %1731 = vmatprep.subr.bf16.mxu0 0
      %1732 = vmatpush1.bf16.msra.mxu0 0
      %1733 = vmatprep.subr.bf16.mxu0 0
      %1734 = vmatpush1.bf16.msra.mxu0 0
      %1735 = vmatprep.subr.bf16.mxu0 0
      %1736 = vmatpush1.bf16.msra.mxu0 0
      %1737 = vmatprep.subr.bf16.mxu0 0
      %1738 = vmatpush1.bf16.msra.mxu0 %v935
      %1739 = vmatprep.subr.bf16.mxu0 0
      %1740 = vmatpush1.bf16.msra.mxu0 %v934
      %1741 = vmatprep.subr.bf16.mxu0 0
      %1742 = vmatpush2.bf16.msra.mxu0 0
      %1743 = vmatprep.subr.bf16.mxu0 0
      %1744 = vmatpush2.bf16.msra.mxu0 0
      %1745 = vmatprep.subr.bf16.mxu0 0
      %1746 = vmatpush2.bf16.msra.mxu0 0
      %1747 = vmatprep.subr.bf16.mxu0 0
      %1748 = vmatpush2.bf16.msra.mxu0 0
      %1749 = vmatprep.subr.bf16.mxu0 0
      %1750 = vmatpush2.bf16.msra.mxu0 0
      %1751 = vmatprep.subr.bf16.mxu0 0
      %1752 = vmatpush2.bf16.msra.mxu0 0
      %1753 = vmatprep.subr.bf16.mxu0 0
      %1754 = vmatpush2.bf16.msra.mxu0 0
      %1755 = vmatprep.subr.bf16.mxu0 0
      %1756 = vmatpush2.bf16.msra.mxu0 0
      %1757 = vmatprep.mubr.bf16.mxu0 0
      %1758 = vmatmul.mubr.bf16.gmra.mxu0 %v1643
      %v1759 = vpop.f32.mrf.mxu0
      %v1760 = vadd.f32 %v924, %v1759
      %v1761 = vpop.f32.mrf.mxu0
      %v1762 = vpop.f32.mrf.mxu0
      %v1763 = vpop.f32.mrf.mxu0
      %1764 = vdwg.mxu0
      %s1765 = scalar_lea.vmem [#allocation2], 40
      %v1766 = vld [vmem:[%s1765] sm:$0xff]
      %v1767 = vadd.f32 %v1766, %v1680
      %v1768 = vxor.u32 %v1767, 2147483648
      %v1769 = vmul.f32 %v1768, 1.442695
      %v1770 = vpow.pop %v1769
      %v1771 = vadd.f32 %v1770, 1.0
      %v1772 = vrcp.pop %v1771
      %v1773 = vmul.f32 1.0, %v1772
      %s1774 = scalar_lea.vmem [#allocation3], 40
      %v1775 = vld [vmem:[%s1774] sm:$0xff]
      %v1776 = vadd.f32 %v1775, %v1720
      %v1777 = vxor.u32 %v1776, 2147483648
      %v1778 = vmul.f32 %v1777, 1.442695
      %v1779 = vpow.pop %v1778
      %v1780 = vadd.f32 %v1779, 1.0
      %v1781 = vrcp.pop %v1780
      %v1782 = vmul.f32 1.0, %v1781
      %s1783 = scalar_lea.vmem [#allocation4], 40
      %v1784 = vld [vmem:[%s1783] sm:$0xff]
      %v1785 = vmul.f32 %v1773, %v1760
      %v1786 = vadd.f32 %v1784, %v1785
      %v1787 = vtanh.pop %v1786
      %v1788 = vsub.f32 1.0, %v1782
      %v1789 = vmul.f32 %v1788, %v1787
      %v1790 = vmul.f32 %v1782, %v1640
      %v1791 = vadd.f32 %v1789, %v1790
      %vm1792 = vcmp.gt.s32.totalorder %v800, 5
      %v1793 = vsel %vm1792, 1, 0
      %1794 = vset.pattern.permute.xlu0 0
      %1795 = vperm.xlu0 %1794, %v1793
      %v1796 = vpop.permute.xlu0 %1795
      %vm1797 = vcmp.eq.s32.totalorder %v1796, 1
      %v1798 = vsel %vm1797, %v1791, %v1640
      %v1799 = vpack.c.bf16 %v1798, %v1798
      %v1801 = vsel %vm570, %v1799, 0
      %1803 = vmatprep.subr.bf16.mxu0 0
      %1804 = vmatpush1.bf16.msra.mxu0 0
      %1805 = vmatprep.subr.bf16.mxu0 0
      %1806 = vmatpush1.bf16.msra.mxu0 0
      %1807 = vmatprep.subr.bf16.mxu0 0
      %1808 = vmatpush1.bf16.msra.mxu0 0
      %1809 = vmatprep.subr.bf16.mxu0 0
      %1810 = vmatpush1.bf16.msra.mxu0 0
      %1811 = vmatprep.subr.bf16.mxu0 0
      %1812 = vmatpush1.bf16.msra.mxu0 0
      %1813 = vmatprep.subr.bf16.mxu0 0
      %1814 = vmatpush1.bf16.msra.mxu0 0
      %1815 = vmatprep.subr.bf16.mxu0 0
      %1816 = vmatpush1.bf16.msra.mxu0 %v816
      %1817 = vmatprep.subr.bf16.mxu0 0
      %1818 = vmatpush1.bf16.msra.mxu0 %v815
      %1819 = vmatprep.subr.bf16.mxu0 0
      %1820 = vmatpush2.bf16.msra.mxu0 0
      %1821 = vmatprep.subr.bf16.mxu0 0
      %1822 = vmatpush2.bf16.msra.mxu0 0
      %1823 = vmatprep.subr.bf16.mxu0 0
      %1824 = vmatpush2.bf16.msra.mxu0 0
      %1825 = vmatprep.subr.bf16.mxu0 0
      %1826 = vmatpush2.bf16.msra.mxu0 0
      %1827 = vmatprep.subr.bf16.mxu0 0
      %1828 = vmatpush2.bf16.msra.mxu0 0
      %1829 = vmatprep.subr.bf16.mxu0 0
      %1830 = vmatpush2.bf16.msra.mxu0 0
      %1831 = vmatprep.subr.bf16.mxu0 0
      %1832 = vmatpush2.bf16.msra.mxu0 0
      %1833 = vmatprep.subr.bf16.mxu0 0
      %1834 = vmatpush2.bf16.msra.mxu0 0
      %1835 = vmatprep.mubr.bf16.mxu0 0
      %1836 = vmatmul.mubr.bf16.gmra.mxu0 %v1801
      %v1837 = vpop.f32.mrf.mxu0
      %v1838 = vadd.f32 %v805, %v1837
      %v1839 = vpop.f32.mrf.mxu0
      %v1840 = vpop.f32.mrf.mxu0
      %v1841 = vpop.f32.mrf.mxu0
      %1842 = vdwg.mxu0
      %1843 = vmatprep.subr.bf16.mxu0 0
      %1844 = vmatpush1.bf16.msra.mxu0 0
      %1845 = vmatprep.subr.bf16.mxu0 0
      %1846 = vmatpush1.bf16.msra.mxu0 0
      %1847 = vmatprep.subr.bf16.mxu0 0
      %1848 = vmatpush1.bf16.msra.mxu0 0
      %1849 = vmatprep.subr.bf16.mxu0 0
      %1850 = vmatpush1.bf16.msra.mxu0 0
      %1851 = vmatprep.subr.bf16.mxu0 0
      %1852 = vmatpush1.bf16.msra.mxu0 0
      %1853 = vmatprep.subr.bf16.mxu0 0
      %1854 = vmatpush1.bf16.msra.mxu0 0
      %1855 = vmatprep.subr.bf16.mxu0 0
      %1856 = vmatpush1.bf16.msra.mxu0 %v877
      %1857 = vmatprep.subr.bf16.mxu0 0
      %1858 = vmatpush1.bf16.msra.mxu0 %v876
      %1859 = vmatprep.subr.bf16.mxu0 0
      %1860 = vmatpush2.bf16.msra.mxu0 0
      %1861 = vmatprep.subr.bf16.mxu0 0
      %1862 = vmatpush2.bf16.msra.mxu0 0
      %1863 = vmatprep.subr.bf16.mxu0 0
      %1864 = vmatpush2.bf16.msra.mxu0 0
      %1865 = vmatprep.subr.bf16.mxu0 0
      %1866 = vmatpush2.bf16.msra.mxu0 0
      %1867 = vmatprep.subr.bf16.mxu0 0
      %1868 = vmatpush2.bf16.msra.mxu0 0
      %1869 = vmatprep.subr.bf16.mxu0 0
      %1870 = vmatpush2.bf16.msra.mxu0 0
      %1871 = vmatprep.subr.bf16.mxu0 0
      %1872 = vmatpush2.bf16.msra.mxu0 0
      %1873 = vmatprep.subr.bf16.mxu0 0
      %1874 = vmatpush2.bf16.msra.mxu0 0
      %1875 = vmatprep.mubr.bf16.mxu0 0
      %1876 = vmatmul.mubr.bf16.gmra.mxu0 %v1801
      %v1877 = vpop.f32.mrf.mxu0
      %v1878 = vadd.f32 %v866, %v1877
      %v1879 = vpop.f32.mrf.mxu0
      %v1880 = vpop.f32.mrf.mxu0
      %v1881 = vpop.f32.mrf.mxu0
      %1882 = vdwg.mxu0
      %1883 = vmatprep.subr.bf16.mxu0 0
      %1884 = vmatpush1.bf16.msra.mxu0 0
      %1885 = vmatprep.subr.bf16.mxu0 0
      %1886 = vmatpush1.bf16.msra.mxu0 0
      %1887 = vmatprep.subr.bf16.mxu0 0
      %1888 = vmatpush1.bf16.msra.mxu0 0
      %1889 = vmatprep.subr.bf16.mxu0 0
      %1890 = vmatpush1.bf16.msra.mxu0 0
      %1891 = vmatprep.subr.bf16.mxu0 0
      %1892 = vmatpush1.bf16.msra.mxu0 0
      %1893 = vmatprep.subr.bf16.mxu0 0
      %1894 = vmatpush1.bf16.msra.mxu0 0
      %1895 = vmatprep.subr.bf16.mxu0 0
      %1896 = vmatpush1.bf16.msra.mxu0 %v935
      %1897 = vmatprep.subr.bf16.mxu0 0
      %1898 = vmatpush1.bf16.msra.mxu0 %v934
      %1899 = vmatprep.subr.bf16.mxu0 0
      %1900 = vmatpush2.bf16.msra.mxu0 0
      %1901 = vmatprep.subr.bf16.mxu0 0
      %1902 = vmatpush2.bf16.msra.mxu0 0
      %1903 = vmatprep.subr.bf16.mxu0 0
      %1904 = vmatpush2.bf16.msra.mxu0 0
      %1905 = vmatprep.subr.bf16.mxu0 0
      %1906 = vmatpush2.bf16.msra.mxu0 0
      %1907 = vmatprep.subr.bf16.mxu0 0
      %1908 = vmatpush2.bf16.msra.mxu0 0
      %1909 = vmatprep.subr.bf16.mxu0 0
      %1910 = vmatpush2.bf16.msra.mxu0 0
      %1911 = vmatprep.subr.bf16.mxu0 0
      %1912 = vmatpush2.bf16.msra.mxu0 0
      %1913 = vmatprep.subr.bf16.mxu0 0
      %1914 = vmatpush2.bf16.msra.mxu0 0
      %1915 = vmatprep.mubr.bf16.mxu0 0
      %1916 = vmatmul.mubr.bf16.gmra.mxu0 %v1801
      %v1917 = vpop.f32.mrf.mxu0
      %v1918 = vadd.f32 %v924, %v1917
      %v1919 = vpop.f32.mrf.mxu0
      %v1920 = vpop.f32.mrf.mxu0
      %v1921 = vpop.f32.mrf.mxu0
      %1922 = vdwg.mxu0
      %s1923 = scalar_lea.vmem [#allocation2], 48
      %v1924 = vld [vmem:[%s1923] sm:$0xff]
      %v1925 = vadd.f32 %v1924, %v1838
      %v1926 = vxor.u32 %v1925, 2147483648
      %v1927 = vmul.f32 %v1926, 1.442695
      %v1928 = vpow.pop %v1927
      %v1929 = vadd.f32 %v1928, 1.0
      %v1930 = vrcp.pop %v1929
      %v1931 = vmul.f32 1.0, %v1930
      %s1932 = scalar_lea.vmem [#allocation3], 48
      %v1933 = vld [vmem:[%s1932] sm:$0xff]
      %v1934 = vadd.f32 %v1933, %v1878
      %v1935 = vxor.u32 %v1934, 2147483648
      %v1936 = vmul.f32 %v1935, 1.442695
      %v1937 = vpow.pop %v1936
      %v1938 = vadd.f32 %v1937, 1.0
      %v1939 = vrcp.pop %v1938
      %v1940 = vmul.f32 1.0, %v1939
      %s1941 = scalar_lea.vmem [#allocation4], 48
      %v1942 = vld [vmem:[%s1941] sm:$0xff]
      %v1943 = vmul.f32 %v1931, %v1918
      %v1944 = vadd.f32 %v1942, %v1943
      %v1945 = vtanh.pop %v1944
      %v1946 = vsub.f32 1.0, %v1940
      %v1947 = vmul.f32 %v1946, %v1945
      %v1948 = vmul.f32 %v1940, %v1798
      %v1949 = vadd.f32 %v1947, %v1948
      %vm1950 = vcmp.gt.s32.totalorder %v800, 6
      %v1951 = vsel %vm1950, 1, 0
      %1952 = vset.pattern.permute.xlu0 0
      %1953 = vperm.xlu0 %1952, %v1951
      %v1954 = vpop.permute.xlu0 %1953
      %vm1955 = vcmp.eq.s32.totalorder %v1954, 1
      %v1956 = vsel %vm1955, %v1949, %v1798
      %v1957 = vpack.c.bf16 %v1956, %v1956
      %v1959 = vsel %vm570, %v1957, 0
      %1961 = vmatprep.subr.bf16.mxu0 0
      %1962 = vmatpush1.bf16.msra.mxu0 0
      %1963 = vmatprep.subr.bf16.mxu0 0
      %1964 = vmatpush1.bf16.msra.mxu0 0
      %1965 = vmatprep.subr.bf16.mxu0 0
      %1966 = vmatpush1.bf16.msra.mxu0 0
      %1967 = vmatprep.subr.bf16.mxu0 0
      %1968 = vmatpush1.bf16.msra.mxu0 0
      %1969 = vmatprep.subr.bf16.mxu0 0
      %1970 = vmatpush1.bf16.msra.mxu0 0
      %1971 = vmatprep.subr.bf16.mxu0 0
      %1972 = vmatpush1.bf16.msra.mxu0 0
      %1973 = vmatprep.subr.bf16.mxu0 0
      %1974 = vmatpush1.bf16.msra.mxu0 %v816
      %1975 = vmatprep.subr.bf16.mxu0 0
      %1976 = vmatpush1.bf16.msra.mxu0 %v815
      %1977 = vmatprep.subr.bf16.mxu0 0
      %1978 = vmatpush2.bf16.msra.mxu0 0
      %1979 = vmatprep.subr.bf16.mxu0 0
      %1980 = vmatpush2.bf16.msra.mxu0 0
      %1981 = vmatprep.subr.bf16.mxu0 0
      %1982 = vmatpush2.bf16.msra.mxu0 0
      %1983 = vmatprep.subr.bf16.mxu0 0
      %1984 = vmatpush2.bf16.msra.mxu0 0
      %1985 = vmatprep.subr.bf16.mxu0 0
      %1986 = vmatpush2.bf16.msra.mxu0 0
      %1987 = vmatprep.subr.bf16.mxu0 0
      %1988 = vmatpush2.bf16.msra.mxu0 0
      %1989 = vmatprep.subr.bf16.mxu0 0
      %1990 = vmatpush2.bf16.msra.mxu0 0
      %1991 = vmatprep.subr.bf16.mxu0 0
      %1992 = vmatpush2.bf16.msra.mxu0 0
      %1993 = vmatprep.mubr.bf16.mxu0 0
      %1994 = vmatmul.mubr.bf16.gmra.mxu0 %v1959
      %v1995 = vpop.f32.mrf.mxu0
      %v1996 = vadd.f32 %v805, %v1995
      %v1997 = vpop.f32.mrf.mxu0
      %v1998 = vpop.f32.mrf.mxu0
      %v1999 = vpop.f32.mrf.mxu0
      %2000 = vdwg.mxu0
      %2001 = vmatprep.subr.bf16.mxu0 0
      %2002 = vmatpush1.bf16.msra.mxu0 0
      %2003 = vmatprep.subr.bf16.mxu0 0
      %2004 = vmatpush1.bf16.msra.mxu0 0
      %2005 = vmatprep.subr.bf16.mxu0 0
      %2006 = vmatpush1.bf16.msra.mxu0 0
      %2007 = vmatprep.subr.bf16.mxu0 0
      %2008 = vmatpush1.bf16.msra.mxu0 0
      %2009 = vmatprep.subr.bf16.mxu0 0
      %2010 = vmatpush1.bf16.msra.mxu0 0
      %2011 = vmatprep.subr.bf16.mxu0 0
      %2012 = vmatpush1.bf16.msra.mxu0 0
      %2013 = vmatprep.subr.bf16.mxu0 0
      %2014 = vmatpush1.bf16.msra.mxu0 %v877
      %2015 = vmatprep.subr.bf16.mxu0 0
      %2016 = vmatpush1.bf16.msra.mxu0 %v876
      %2017 = vmatprep.subr.bf16.mxu0 0
      %2018 = vmatpush2.bf16.msra.mxu0 0
      %2019 = vmatprep.subr.bf16.mxu0 0
      %2020 = vmatpush2.bf16.msra.mxu0 0
      %2021 = vmatprep.subr.bf16.mxu0 0
      %2022 = vmatpush2.bf16.msra.mxu0 0
      %2023 = vmatprep.subr.bf16.mxu0 0
      %2024 = vmatpush2.bf16.msra.mxu0 0
      %2025 = vmatprep.subr.bf16.mxu0 0
      %2026 = vmatpush2.bf16.msra.mxu0 0
      %2027 = vmatprep.subr.bf16.mxu0 0
      %2028 = vmatpush2.bf16.msra.mxu0 0
      %2029 = vmatprep.subr.bf16.mxu0 0
      %2030 = vmatpush2.bf16.msra.mxu0 0
      %2031 = vmatprep.subr.bf16.mxu0 0
      %2032 = vmatpush2.bf16.msra.mxu0 0
      %2033 = vmatprep.mubr.bf16.mxu0 0
      %2034 = vmatmul.mubr.bf16.gmra.mxu0 %v1959
      %v2035 = vpop.f32.mrf.mxu0
      %v2036 = vadd.f32 %v866, %v2035
      %v2037 = vpop.f32.mrf.mxu0
      %v2038 = vpop.f32.mrf.mxu0
      %v2039 = vpop.f32.mrf.mxu0
      %2040 = vdwg.mxu0
      %2041 = vmatprep.subr.bf16.mxu0 0
      %2042 = vmatpush1.bf16.msra.mxu0 0
      %2043 = vmatprep.subr.bf16.mxu0 0
      %2044 = vmatpush1.bf16.msra.mxu0 0
      %2045 = vmatprep.subr.bf16.mxu0 0
      %2046 = vmatpush1.bf16.msra.mxu0 0
      %2047 = vmatprep.subr.bf16.mxu0 0
      %2048 = vmatpush1.bf16.msra.mxu0 0
      %2049 = vmatprep.subr.bf16.mxu0 0
      %2050 = vmatpush1.bf16.msra.mxu0 0
      %2051 = vmatprep.subr.bf16.mxu0 0
      %2052 = vmatpush1.bf16.msra.mxu0 0
      %2053 = vmatprep.subr.bf16.mxu0 0
      %2054 = vmatpush1.bf16.msra.mxu0 %v935
      %2055 = vmatprep.subr.bf16.mxu0 0
      %2056 = vmatpush1.bf16.msra.mxu0 %v934
      %2057 = vmatprep.subr.bf16.mxu0 0
      %2058 = vmatpush2.bf16.msra.mxu0 0
      %2059 = vmatprep.subr.bf16.mxu0 0
      %2060 = vmatpush2.bf16.msra.mxu0 0
      %2061 = vmatprep.subr.bf16.mxu0 0
      %2062 = vmatpush2.bf16.msra.mxu0 0
      %2063 = vmatprep.subr.bf16.mxu0 0
      %2064 = vmatpush2.bf16.msra.mxu0 0
      %2065 = vmatprep.subr.bf16.mxu0 0
      %2066 = vmatpush2.bf16.msra.mxu0 0
      %2067 = vmatprep.subr.bf16.mxu0 0
      %2068 = vmatpush2.bf16.msra.mxu0 0
      %2069 = vmatprep.subr.bf16.mxu0 0
      %2070 = vmatpush2.bf16.msra.mxu0 0
      %2071 = vmatprep.subr.bf16.mxu0 0
      %2072 = vmatpush2.bf16.msra.mxu0 0
      %2073 = vmatprep.mubr.bf16.mxu0 0
      %2074 = vmatmul.mubr.bf16.gmra.mxu0 %v1959
      %v2075 = vpop.f32.mrf.mxu0
      %v2076 = vadd.f32 %v924, %v2075
      %v2077 = vpop.f32.mrf.mxu0
      %v2078 = vpop.f32.mrf.mxu0
      %v2079 = vpop.f32.mrf.mxu0
      %2080 = vdwg.mxu0
      %s2081 = scalar_lea.vmem [#allocation2], 56
      %v2082 = vld [vmem:[%s2081] sm:$0xff]
      %v2083 = vadd.f32 %v2082, %v1996
      %v2084 = vxor.u32 %v2083, 2147483648
      %v2085 = vmul.f32 %v2084, 1.442695
      %v2086 = vpow.pop %v2085
      %v2087 = vadd.f32 %v2086, 1.0
      %v2088 = vrcp.pop %v2087
      %v2089 = vmul.f32 1.0, %v2088
      %s2090 = scalar_lea.vmem [#allocation3], 56
      %v2091 = vld [vmem:[%s2090] sm:$0xff]
      %v2092 = vadd.f32 %v2091, %v2036
      %v2093 = vxor.u32 %v2092, 2147483648
      %v2094 = vmul.f32 %v2093, 1.442695
      %v2095 = vpow.pop %v2094
      %v2096 = vadd.f32 %v2095, 1.0
      %v2097 = vrcp.pop %v2096
      %v2098 = vmul.f32 1.0, %v2097
      %s2099 = scalar_lea.vmem [#allocation4], 56
      %v2100 = vld [vmem:[%s2099] sm:$0xff]
      %v2101 = vmul.f32 %v2089, %v2076
      %v2102 = vadd.f32 %v2100, %v2101
      %v2103 = vtanh.pop %v2102
      %v2104 = vsub.f32 1.0, %v2098
      %v2105 = vmul.f32 %v2104, %v2103
      %v2106 = vmul.f32 %v2098, %v1956
      %v2107 = vadd.f32 %v2105, %v2106
      %vm2108 = vcmp.gt.s32.totalorder %v800, 7
      %v2109 = vsel %vm2108, 1, 0
      %2110 = vset.pattern.permute.xlu0 0
      %2111 = vperm.xlu0 %2110, %v2109
      %v2112 = vpop.permute.xlu0 %2111
      %vm2113 = vcmp.eq.s32.totalorder %v2112, 1
      %v2114 = vsel %vm2113, %v2107, %v1956
      %v2115 = vpack.c.bf16 %v2114, %v2114
      %v2117 = vsel %vm570, %v2115, 0
      %2119 = vmatprep.subr.bf16.mxu0 0
      %2120 = vmatpush1.bf16.msra.mxu0 0
      %2121 = vmatprep.subr.bf16.mxu0 0
      %2122 = vmatpush1.bf16.msra.mxu0 0
      %2123 = vmatprep.subr.bf16.mxu0 0
      %2124 = vmatpush1.bf16.msra.mxu0 0
      %2125 = vmatprep.subr.bf16.mxu0 0
      %2126 = vmatpush1.bf16.msra.mxu0 0
      %2127 = vmatprep.subr.bf16.mxu0 0
      %2128 = vmatpush1.bf16.msra.mxu0 0
      %2129 = vmatprep.subr.bf16.mxu0 0
      %2130 = vmatpush1.bf16.msra.mxu0 0
      %2131 = vmatprep.subr.bf16.mxu0 0
      %2132 = vmatpush1.bf16.msra.mxu0 %v816
      %2133 = vmatprep.subr.bf16.mxu0 0
      %2134 = vmatpush1.bf16.msra.mxu0 %v815
      %2135 = vmatprep.subr.bf16.mxu0 0
      %2136 = vmatpush2.bf16.msra.mxu0 0
      %2137 = vmatprep.subr.bf16.mxu0 0
      %2138 = vmatpush2.bf16.msra.mxu0 0
      %2139 = vmatprep.subr.bf16.mxu0 0
      %2140 = vmatpush2.bf16.msra.mxu0 0
      %2141 = vmatprep.subr.bf16.mxu0 0
      %2142 = vmatpush2.bf16.msra.mxu0 0
      %2143 = vmatprep.subr.bf16.mxu0 0
      %2144 = vmatpush2.bf16.msra.mxu0 0
      %2145 = vmatprep.subr.bf16.mxu0 0
      %2146 = vmatpush2.bf16.msra.mxu0 0
      %2147 = vmatprep.subr.bf16.mxu0 0
      %2148 = vmatpush2.bf16.msra.mxu0 0
      %2149 = vmatprep.subr.bf16.mxu0 0
      %2150 = vmatpush2.bf16.msra.mxu0 0
      %2151 = vmatprep.mubr.bf16.mxu0 0
      %2152 = vmatmul.mubr.bf16.gmra.mxu0 %v2117
      %v2153 = vpop.f32.mrf.mxu0
      %v2154 = vadd.f32 %v805, %v2153
      %v2155 = vpop.f32.mrf.mxu0
      %v2156 = vpop.f32.mrf.mxu0
      %v2157 = vpop.f32.mrf.mxu0
      %2158 = vdwg.mxu0
      %2159 = vmatprep.subr.bf16.mxu0 0
      %2160 = vmatpush1.bf16.msra.mxu0 0
      %2161 = vmatprep.subr.bf16.mxu0 0
      %2162 = vmatpush1.bf16.msra.mxu0 0
      %2163 = vmatprep.subr.bf16.mxu0 0
      %2164 = vmatpush1.bf16.msra.mxu0 0
      %2165 = vmatprep.subr.bf16.mxu0 0
      %2166 = vmatpush1.bf16.msra.mxu0 0
      %2167 = vmatprep.subr.bf16.mxu0 0
      %2168 = vmatpush1.bf16.msra.mxu0 0
      %2169 = vmatprep.subr.bf16.mxu0 0
      %2170 = vmatpush1.bf16.msra.mxu0 0
      %2171 = vmatprep.subr.bf16.mxu0 0
      %2172 = vmatpush1.bf16.msra.mxu0 %v877
      %2173 = vmatprep.subr.bf16.mxu0 0
      %2174 = vmatpush1.bf16.msra.mxu0 %v876
      %2175 = vmatprep.subr.bf16.mxu0 0
      %2176 = vmatpush2.bf16.msra.mxu0 0
      %2177 = vmatprep.subr.bf16.mxu0 0
      %2178 = vmatpush2.bf16.msra.mxu0 0
      %2179 = vmatprep.subr.bf16.mxu0 0
      %2180 = vmatpush2.bf16.msra.mxu0 0
      %2181 = vmatprep.subr.bf16.mxu0 0
      %2182 = vmatpush2.bf16.msra.mxu0 0
      %2183 = vmatprep.subr.bf16.mxu0 0
      %2184 = vmatpush2.bf16.msra.mxu0 0
      %2185 = vmatprep.subr.bf16.mxu0 0
      %2186 = vmatpush2.bf16.msra.mxu0 0
      %2187 = vmatprep.subr.bf16.mxu0 0
      %2188 = vmatpush2.bf16.msra.mxu0 0
      %2189 = vmatprep.subr.bf16.mxu0 0
      %2190 = vmatpush2.bf16.msra.mxu0 0
      %2191 = vmatprep.mubr.bf16.mxu0 0
      %2192 = vmatmul.mubr.bf16.gmra.mxu0 %v2117
      %v2193 = vpop.f32.mrf.mxu0
      %v2194 = vadd.f32 %v866, %v2193
      %v2195 = vpop.f32.mrf.mxu0
      %v2196 = vpop.f32.mrf.mxu0
      %v2197 = vpop.f32.mrf.mxu0
      %2198 = vdwg.mxu0
      %2199 = vmatprep.subr.bf16.mxu0 0
      %2200 = vmatpush1.bf16.msra.mxu0 0
      %2201 = vmatprep.subr.bf16.mxu0 0
      %2202 = vmatpush1.bf16.msra.mxu0 0
      %2203 = vmatprep.subr.bf16.mxu0 0
      %2204 = vmatpush1.bf16.msra.mxu0 0
      %2205 = vmatprep.subr.bf16.mxu0 0
      %2206 = vmatpush1.bf16.msra.mxu0 0
      %2207 = vmatprep.subr.bf16.mxu0 0
      %2208 = vmatpush1.bf16.msra.mxu0 0
      %2209 = vmatprep.subr.bf16.mxu0 0
      %2210 = vmatpush1.bf16.msra.mxu0 0
      %2211 = vmatprep.subr.bf16.mxu0 0
      %2212 = vmatpush1.bf16.msra.mxu0 %v935
      %2213 = vmatprep.subr.bf16.mxu0 0
      %2214 = vmatpush1.bf16.msra.mxu0 %v934
      %2215 = vmatprep.subr.bf16.mxu0 0
      %2216 = vmatpush2.bf16.msra.mxu0 0
      %2217 = vmatprep.subr.bf16.mxu0 0
      %2218 = vmatpush2.bf16.msra.mxu0 0
      %2219 = vmatprep.subr.bf16.mxu0 0
      %2220 = vmatpush2.bf16.msra.mxu0 0
      %2221 = vmatprep.subr.bf16.mxu0 0
      %2222 = vmatpush2.bf16.msra.mxu0 0
      %2223 = vmatprep.subr.bf16.mxu0 0
      %2224 = vmatpush2.bf16.msra.mxu0 0
      %2225 = vmatprep.subr.bf16.mxu0 0
      %2226 = vmatpush2.bf16.msra.mxu0 0
      %2227 = vmatprep.subr.bf16.mxu0 0
      %2228 = vmatpush2.bf16.msra.mxu0 0
      %2229 = vmatprep.subr.bf16.mxu0 0
      %2230 = vmatpush2.bf16.msra.mxu0 0
      %2231 = vmatprep.mubr.bf16.mxu0 0
      %2232 = vmatmul.mubr.bf16.gmra.mxu0 %v2117
      %v2233 = vpop.f32.mrf.mxu0
      %v2234 = vadd.f32 %v924, %v2233
      %v2235 = vpop.f32.mrf.mxu0
      %v2236 = vpop.f32.mrf.mxu0
      %v2237 = vpop.f32.mrf.mxu0
      %2238 = vdwg.mxu0
      %s2239 = scalar_lea.vmem [#allocation2], 64
      %v2240 = vld [vmem:[%s2239] sm:$0xff]
      %v2241 = vadd.f32 %v2240, %v2154
      %v2242 = vxor.u32 %v2241, 2147483648
      %v2243 = vmul.f32 %v2242, 1.442695
      %v2244 = vpow.pop %v2243
      %v2245 = vadd.f32 %v2244, 1.0
      %v2246 = vrcp.pop %v2245
      %v2247 = vmul.f32 1.0, %v2246
      %s2248 = scalar_lea.vmem [#allocation3], 64
      %v2249 = vld [vmem:[%s2248] sm:$0xff]
      %v2250 = vadd.f32 %v2249, %v2194
      %v2251 = vxor.u32 %v2250, 2147483648
      %v2252 = vmul.f32 %v2251, 1.442695
      %v2253 = vpow.pop %v2252
      %v2254 = vadd.f32 %v2253, 1.0
      %v2255 = vrcp.pop %v2254
      %v2256 = vmul.f32 1.0, %v2255
      %s2257 = scalar_lea.vmem [#allocation4], 64
      %v2258 = vld [vmem:[%s2257] sm:$0xff]
      %v2259 = vmul.f32 %v2247, %v2234
      %v2260 = vadd.f32 %v2258, %v2259
      %v2261 = vtanh.pop %v2260
      %v2262 = vsub.f32 1.0, %v2256
      %v2263 = vmul.f32 %v2262, %v2261
      %v2264 = vmul.f32 %v2256, %v2114
      %v2265 = vadd.f32 %v2263, %v2264
      %vm2266 = vcmp.gt.s32.totalorder %v800, 8
      %v2267 = vsel %vm2266, 1, 0
      %2268 = vset.pattern.permute.xlu0 0
      %2269 = vperm.xlu0 %2268, %v2267
      %v2270 = vpop.permute.xlu0 %2269
      %vm2271 = vcmp.eq.s32.totalorder %v2270, 1
      %v2272 = vsel %vm2271, %v2265, %v2114
      %v2273 = vpack.c.bf16 %v2272, %v2272
      %v2275 = vsel %vm570, %v2273, 0
      %2277 = vmatprep.subr.bf16.mxu0 0
      %2278 = vmatpush1.bf16.msra.mxu0 0
      %2279 = vmatprep.subr.bf16.mxu0 0
      %2280 = vmatpush1.bf16.msra.mxu0 0
      %2281 = vmatprep.subr.bf16.mxu0 0
      %2282 = vmatpush1.bf16.msra.mxu0 0
      %2283 = vmatprep.subr.bf16.mxu0 0
      %2284 = vmatpush1.bf16.msra.mxu0 0
      %2285 = vmatprep.subr.bf16.mxu0 0
      %2286 = vmatpush1.bf16.msra.mxu0 0
      %2287 = vmatprep.subr.bf16.mxu0 0
      %2288 = vmatpush1.bf16.msra.mxu0 0
      %2289 = vmatprep.subr.bf16.mxu0 0
      %2290 = vmatpush1.bf16.msra.mxu0 %v816
      %2291 = vmatprep.subr.bf16.mxu0 0
      %2292 = vmatpush1.bf16.msra.mxu0 %v815
      %2293 = vmatprep.subr.bf16.mxu0 0
      %2294 = vmatpush2.bf16.msra.mxu0 0
      %2295 = vmatprep.subr.bf16.mxu0 0
      %2296 = vmatpush2.bf16.msra.mxu0 0
      %2297 = vmatprep.subr.bf16.mxu0 0
      %2298 = vmatpush2.bf16.msra.mxu0 0
      %2299 = vmatprep.subr.bf16.mxu0 0
      %2300 = vmatpush2.bf16.msra.mxu0 0
      %2301 = vmatprep.subr.bf16.mxu0 0
      %2302 = vmatpush2.bf16.msra.mxu0 0
      %2303 = vmatprep.subr.bf16.mxu0 0
      %2304 = vmatpush2.bf16.msra.mxu0 0
      %2305 = vmatprep.subr.bf16.mxu0 0
      %2306 = vmatpush2.bf16.msra.mxu0 0
      %2307 = vmatprep.subr.bf16.mxu0 0
      %2308 = vmatpush2.bf16.msra.mxu0 0
      %2309 = vmatprep.mubr.bf16.mxu0 0
      %2310 = vmatmul.mubr.bf16.gmra.mxu0 %v2275
      %v2311 = vpop.f32.mrf.mxu0
      %v2312 = vadd.f32 %v805, %v2311
      %v2313 = vpop.f32.mrf.mxu0
      %v2314 = vpop.f32.mrf.mxu0
      %v2315 = vpop.f32.mrf.mxu0
      %2316 = vdwg.mxu0
      %2317 = vmatprep.subr.bf16.mxu0 0
      %2318 = vmatpush1.bf16.msra.mxu0 0
      %2319 = vmatprep.subr.bf16.mxu0 0
      %2320 = vmatpush1.bf16.msra.mxu0 0
      %2321 = vmatprep.subr.bf16.mxu0 0
      %2322 = vmatpush1.bf16.msra.mxu0 0
      %2323 = vmatprep.subr.bf16.mxu0 0
      %2324 = vmatpush1.bf16.msra.mxu0 0
      %2325 = vmatprep.subr.bf16.mxu0 0
      %2326 = vmatpush1.bf16.msra.mxu0 0
      %2327 = vmatprep.subr.bf16.mxu0 0
      %2328 = vmatpush1.bf16.msra.mxu0 0
      %2329 = vmatprep.subr.bf16.mxu0 0
      %2330 = vmatpush1.bf16.msra.mxu0 %v877
      %2331 = vmatprep.subr.bf16.mxu0 0
      %2332 = vmatpush1.bf16.msra.mxu0 %v876
      %2333 = vmatprep.subr.bf16.mxu0 0
      %2334 = vmatpush2.bf16.msra.mxu0 0
      %2335 = vmatprep.subr.bf16.mxu0 0
      %2336 = vmatpush2.bf16.msra.mxu0 0
      %2337 = vmatprep.subr.bf16.mxu0 0
      %2338 = vmatpush2.bf16.msra.mxu0 0
      %2339 = vmatprep.subr.bf16.mxu0 0
      %2340 = vmatpush2.bf16.msra.mxu0 0
      %2341 = vmatprep.subr.bf16.mxu0 0
      %2342 = vmatpush2.bf16.msra.mxu0 0
      %2343 = vmatprep.subr.bf16.mxu0 0
      %2344 = vmatpush2.bf16.msra.mxu0 0
      %2345 = vmatprep.subr.bf16.mxu0 0
      %2346 = vmatpush2.bf16.msra.mxu0 0
      %2347 = vmatprep.subr.bf16.mxu0 0
      %2348 = vmatpush2.bf16.msra.mxu0 0
      %2349 = vmatprep.mubr.bf16.mxu0 0
      %2350 = vmatmul.mubr.bf16.gmra.mxu0 %v2275
      %v2351 = vpop.f32.mrf.mxu0
      %v2352 = vadd.f32 %v866, %v2351
      %v2353 = vpop.f32.mrf.mxu0
      %v2354 = vpop.f32.mrf.mxu0
      %v2355 = vpop.f32.mrf.mxu0
      %2356 = vdwg.mxu0
      %2357 = vmatprep.subr.bf16.mxu0 0
      %2358 = vmatpush1.bf16.msra.mxu0 0
      %2359 = vmatprep.subr.bf16.mxu0 0
      %2360 = vmatpush1.bf16.msra.mxu0 0
      %2361 = vmatprep.subr.bf16.mxu0 0
      %2362 = vmatpush1.bf16.msra.mxu0 0
      %2363 = vmatprep.subr.bf16.mxu0 0
      %2364 = vmatpush1.bf16.msra.mxu0 0
      %2365 = vmatprep.subr.bf16.mxu0 0
      %2366 = vmatpush1.bf16.msra.mxu0 0
      %2367 = vmatprep.subr.bf16.mxu0 0
      %2368 = vmatpush1.bf16.msra.mxu0 0
      %2369 = vmatprep.subr.bf16.mxu0 0
      %2370 = vmatpush1.bf16.msra.mxu0 %v935
      %2371 = vmatprep.subr.bf16.mxu0 0
      %2372 = vmatpush1.bf16.msra.mxu0 %v934
      %2373 = vmatprep.subr.bf16.mxu0 0
      %2374 = vmatpush2.bf16.msra.mxu0 0
      %2375 = vmatprep.subr.bf16.mxu0 0
      %2376 = vmatpush2.bf16.msra.mxu0 0
      %2377 = vmatprep.subr.bf16.mxu0 0
      %2378 = vmatpush2.bf16.msra.mxu0 0
      %2379 = vmatprep.subr.bf16.mxu0 0
      %2380 = vmatpush2.bf16.msra.mxu0 0
      %2381 = vmatprep.subr.bf16.mxu0 0
      %2382 = vmatpush2.bf16.msra.mxu0 0
      %2383 = vmatprep.subr.bf16.mxu0 0
      %2384 = vmatpush2.bf16.msra.mxu0 0
      %2385 = vmatprep.subr.bf16.mxu0 0
      %2386 = vmatpush2.bf16.msra.mxu0 0
      %2387 = vmatprep.subr.bf16.mxu0 0
      %2388 = vmatpush2.bf16.msra.mxu0 0
      %2389 = vmatprep.mubr.bf16.mxu0 0
      %2390 = vmatmul.mubr.bf16.gmra.mxu0 %v2275
      %v2391 = vpop.f32.mrf.mxu0
      %v2392 = vadd.f32 %v924, %v2391
      %v2393 = vpop.f32.mrf.mxu0
      %v2394 = vpop.f32.mrf.mxu0
      %v2395 = vpop.f32.mrf.mxu0
      %2396 = vdwg.mxu0
      %s2397 = scalar_lea.vmem [#allocation2], 72
      %v2398 = vld [vmem:[%s2397] sm:$0xff]
      %v2399 = vadd.f32 %v2398, %v2312
      %v2400 = vxor.u32 %v2399, 2147483648
      %v2401 = vmul.f32 %v2400, 1.442695
      %v2402 = vpow.pop %v2401
      %v2403 = vadd.f32 %v2402, 1.0
      %v2404 = vrcp.pop %v2403
      %v2405 = vmul.f32 1.0, %v2404
      %s2406 = scalar_lea.vmem [#allocation3], 72
      %v2407 = vld [vmem:[%s2406] sm:$0xff]
      %v2408 = vadd.f32 %v2407, %v2352
      %v2409 = vxor.u32 %v2408, 2147483648
      %v2410 = vmul.f32 %v2409, 1.442695
      %v2411 = vpow.pop %v2410
      %v2412 = vadd.f32 %v2411, 1.0
      %v2413 = vrcp.pop %v2412
      %v2414 = vmul.f32 1.0, %v2413
      %s2415 = scalar_lea.vmem [#allocation4], 72
      %v2416 = vld [vmem:[%s2415] sm:$0xff]
      %v2417 = vmul.f32 %v2405, %v2392
      %v2418 = vadd.f32 %v2416, %v2417
      %v2419 = vtanh.pop %v2418
      %v2420 = vsub.f32 1.0, %v2414
      %v2421 = vmul.f32 %v2420, %v2419
      %v2422 = vmul.f32 %v2414, %v2272
      %v2423 = vadd.f32 %v2421, %v2422
      %vm2424 = vcmp.gt.s32.totalorder %v800, 9
      %v2425 = vsel %vm2424, 1, 0
      %2426 = vset.pattern.permute.xlu0 0
      %2427 = vperm.xlu0 %2426, %v2425
      %v2428 = vpop.permute.xlu0 %2427
      %vm2429 = vcmp.eq.s32.totalorder %v2428, 1
      %v2430 = vsel %vm2429, %v2423, %v2272
      %2431 = vst.msk [vmem:[%s425] sm:$0xff] %vm570, %v2430
      %v2432 = vpack.c.bf16 %v2430, %v2430
      %v2433 = vld [vmem:[%s6] sm:$0xff]
      %v2434 = vld [vmem:[%s6 + $0x8] sm:$0xff]
      %v2435 = vld [vmem:[%s6 + $0x10] sm:$0xff]
      %v2436 = vld [vmem:[%s6 + $0x18] sm:$0xff]
      %v2437 = vld [vmem:[%s6 + $0x20] sm:$0xff]
      %v2438 = vld [vmem:[%s6 + $0x28] sm:$0xff]
      %v2439 = vld [vmem:[%s6 + $0x30] sm:$0xff]
      %v2440 = vld [vmem:[%s6 + $0x38] sm:$0xff]
      %v2449 = vunpack.c.l.b16 %v2433
      %v2450 = vunpack.c.h.b16 %v2433
      %v2451 = vunpack.c.l.b16 %v2434
      %v2452 = vunpack.c.h.b16 %v2434
      %v2453 = vunpack.c.l.b16 %v2435
      %v2454 = vunpack.c.h.b16 %v2435
      %v2455 = vunpack.c.l.b16 %v2436
      %v2456 = vunpack.c.h.b16 %v2436
      %v2457 = vunpack.c.l.b16 %v2437
      %v2458 = vunpack.c.h.b16 %v2437
      %v2459 = vunpack.c.l.b16 %v2438
      %v2460 = vunpack.c.h.b16 %v2438
      %v2461 = vunpack.c.l.b16 %v2439
      %v2462 = vunpack.c.h.b16 %v2439
      %v2463 = vunpack.c.l.b16 %v2440
      %v2464 = vunpack.c.h.b16 %v2440
      %v2465 = vpack.c.b16 %v2453, %v2449
      %v2466 = vpack.c.b16 %v2454, %v2450
      %v2467 = vpack.c.b16 %v2455, %v2451
      %v2468 = vpack.c.b16 %v2456, %v2452
      %v2469 = vpack.c.b16 %v2461, %v2457
      %v2470 = vpack.c.b16 %v2462, %v2458
      %v2471 = vpack.c.b16 %v2463, %v2459
      %v2472 = vpack.c.b16 %v2464, %v2460
      %v2482 = vsel %vm570, %v2432, 0
      %2484 = vmatprep.subr.bf16.mxu0 0
      %2485 = vmatpush1.bf16.msra.mxu0 0
      %2486 = vmatprep.subr.bf16.mxu0 0
      %2487 = vmatpush1.bf16.msra.mxu0 0
      %2488 = vmatprep.subr.bf16.mxu0 0
      %2489 = vmatpush1.bf16.msra.mxu0 0
      %2490 = vmatprep.subr.bf16.mxu0 0
      %2491 = vmatpush1.bf16.msra.mxu0 0
      %2492 = vmatprep.subr.bf16.mxu0 0
      %2493 = vmatpush1.bf16.msra.mxu0 0
      %2494 = vmatprep.subr.bf16.mxu0 0
      %2495 = vmatpush1.bf16.msra.mxu0 0
      %2496 = vmatprep.subr.bf16.mxu0 %v2470
      %2497 = vmatpush1.bf16.msra.mxu0 %v2469
      %2498 = vmatprep.subr.bf16.mxu0 %v2466
      %2499 = vmatpush1.bf16.msra.mxu0 %v2465
      %2500 = vmatprep.subr.bf16.mxu0 0
      %2501 = vmatpush2.bf16.msra.mxu0 0
      %2502 = vmatprep.subr.bf16.mxu0 0
      %2503 = vmatpush2.bf16.msra.mxu0 0
      %2504 = vmatprep.subr.bf16.mxu0 0
      %2505 = vmatpush2.bf16.msra.mxu0 0
      %2506 = vmatprep.subr.bf16.mxu0 0
      %2507 = vmatpush2.bf16.msra.mxu0 0
      %2508 = vmatprep.subr.bf16.mxu0 0
      %2509 = vmatpush2.bf16.msra.mxu0 0
      %2510 = vmatprep.subr.bf16.mxu0 0
      %2511 = vmatpush2.bf16.msra.mxu0 0
      %2512 = vmatprep.subr.bf16.mxu0 0
      %2513 = vmatpush2.bf16.msra.mxu0 0
      %2514 = vmatprep.subr.bf16.mxu0 0
      %2515 = vmatpush2.bf16.msra.mxu0 0
      %2516 = vmatprep.mubr.bf16.mxu0 0
      %2517 = vmatmul.mubr.bf16.gmra.mxu0 %v2482
      %v2518 = vpop.f32.mrf.mxu0
      %v2519 = vadd.f32 0.0, %v2518
      %v2520 = vpop.f32.mrf.mxu0
      %v2521 = vadd.f32 0.0, %v2520
      %v2522 = vpop.f32.mrf.mxu0
      %v2523 = vpop.f32.mrf.mxu0
      %2524 = vdwg.mxu0
      %2525 = vmatprep.subr.bf16.mxu0 0
      %2526 = vmatpush1.bf16.msra.mxu0 0
      %2527 = vmatprep.subr.bf16.mxu0 0
      %2528 = vmatpush1.bf16.msra.mxu0 0
      %2529 = vmatprep.subr.bf16.mxu0 0
      %2530 = vmatpush1.bf16.msra.mxu0 0
      %2531 = vmatprep.subr.bf16.mxu0 0
      %2532 = vmatpush1.bf16.msra.mxu0 0
      %2533 = vmatprep.subr.bf16.mxu0 0
      %2534 = vmatpush1.bf16.msra.mxu0 0
      %2535 = vmatprep.subr.bf16.mxu0 0
      %2536 = vmatpush1.bf16.msra.mxu0 0
      %2537 = vmatprep.subr.bf16.mxu0 %v2472
      %2538 = vmatpush1.bf16.msra.mxu0 %v2471
      %2539 = vmatprep.subr.bf16.mxu0 %v2468
      %2540 = vmatpush1.bf16.msra.mxu0 %v2467
      %2541 = vmatprep.subr.bf16.mxu0 0
      %2542 = vmatpush2.bf16.msra.mxu0 0
      %2543 = vmatprep.subr.bf16.mxu0 0
      %2544 = vmatpush2.bf16.msra.mxu0 0
      %2545 = vmatprep.subr.bf16.mxu0 0
      %2546 = vmatpush2.bf16.msra.mxu0 0
      %2547 = vmatprep.subr.bf16.mxu0 0
      %2548 = vmatpush2.bf16.msra.mxu0 0
      %2549 = vmatprep.subr.bf16.mxu0 0
      %2550 = vmatpush2.bf16.msra.mxu0 0
      %2551 = vmatprep.subr.bf16.mxu0 0
      %2552 = vmatpush2.bf16.msra.mxu0 0
      %2553 = vmatprep.subr.bf16.mxu0 0
      %2554 = vmatpush2.bf16.msra.mxu0 0
      %2555 = vmatprep.subr.bf16.mxu0 0
      %2556 = vmatpush2.bf16.msra.mxu0 0
      %2557 = vmatprep.mubr.bf16.mxu0 0
      %2558 = vmatmul.mubr.bf16.gmra.mxu0 %v2482
      %v2559 = vpop.f32.mrf.mxu0
      %v2560 = vadd.f32 0.0, %v2559
      %v2561 = vpop.f32.mrf.mxu0
      %v2562 = vadd.f32 0.0, %v2561
      %v2563 = vpop.f32.mrf.mxu0
      %v2564 = vpop.f32.mrf.mxu0
      %2565 = vdwg.mxu0
      %v2568 = vcombine.low %v2519, %v2521
      %v2569 = vcombine.high %v2519, %v2521
      %v2571 = vunpack.c.l.s4 1966171168
      %v2572 = vunpack.c.0.s8 %v2571
      %v2573 = vlaneseq
      %v2574 = vshrl.u32 %v2573, 7
      %v2575 = vsub.s32 %v2572, %v2574
      %v2576 = vrot.slane %v2568, %v2575
      %v2578 = vunpack.c.l.s4 1966171168
      %v2579 = vunpack.c.0.s8 %v2578
      %v2580 = vlaneseq
      %v2581 = vshrl.u32 %v2580, 7
      %v2582 = vsub.s32 %v2579, %v2581
      %v2583 = vrot.slane %v2569, %v2582
      %v2584 = vcombine.high %v2576, %v2576
      %v2585 = vcombine.high %v2583, %v2583
      %v2587 = vunpack.c.l.s4 1966171168
      %v2588 = vunpack.c.0.s8 %v2587
      %v2589 = vlaneseq
      %v2590 = vshrl.u32 %v2589, 7
      %v2591 = vsub.s32 %v2588, %v2590
      %v2592 = vrot.slane %v2576, %v2591
      %v2594 = vunpack.c.l.s4 1966171168
      %v2595 = vunpack.c.0.s8 %v2594
      %v2596 = vlaneseq
      %v2597 = vshrl.u32 %v2596, 7
      %v2598 = vsub.s32 %v2595, %v2597
      %v2599 = vrot.slane %v2583, %v2598
      %v2601 = vunpack.c.l.s4 1966171168
      %v2602 = vunpack.c.0.s8 %v2601
      %v2603 = vlaneseq
      %v2604 = vshrl.u32 %v2603, 7
      %v2605 = vsub.s32 %v2602, %v2604
      %v2606 = vrot.slane %v2584, %v2605
      %v2608 = vunpack.c.l.s4 1966171168
      %v2609 = vunpack.c.0.s8 %v2608
      %v2610 = vlaneseq
      %v2611 = vshrl.u32 %v2610, 7
      %v2612 = vsub.s32 %v2609, %v2611
      %v2613 = vrot.slane %v2585, %v2612
      %v2614 = vcombine.high %v2592, %v2592
      %v2615 = vcombine.high %v2599, %v2599
      %v2616 = vcombine.high %v2606, %v2606
      %v2617 = vcombine.high %v2613, %v2613
      %v2618 = vlaneseq
      %v2619 = vshrl.u32 %v2618, 7
      %v2620 = vsub.s32 0, %v2619
      %v2621 = vrot.slane %v2592, %v2620
      %v2622 = vlaneseq
      %v2623 = vshrl.u32 %v2622, 7
      %v2624 = vsub.s32 1, %v2623
      %v2625 = vrot.slane %v2592, %v2624
      %v2626 = vlaneseq
      %v2627 = vshrl.u32 %v2626, 7
      %v2628 = vsub.s32 0, %v2627
      %v2629 = vrot.slane %v2606, %v2628
      %v2630 = vlaneseq
      %v2631 = vshrl.u32 %v2630, 7
      %v2632 = vsub.s32 1, %v2631
      %v2633 = vrot.slane %v2606, %v2632
      %v2634 = vlaneseq
      %v2635 = vshrl.u32 %v2634, 7
      %v2636 = vsub.s32 0, %v2635
      %v2637 = vrot.slane %v2614, %v2636
      %v2638 = vlaneseq
      %v2639 = vshrl.u32 %v2638, 7
      %v2640 = vsub.s32 1, %v2639
      %v2641 = vrot.slane %v2614, %v2640
      %v2642 = vlaneseq
      %v2643 = vshrl.u32 %v2642, 7
      %v2644 = vsub.s32 0, %v2643
      %v2645 = vrot.slane %v2616, %v2644
      %v2646 = vlaneseq
      %v2647 = vshrl.u32 %v2646, 7
      %v2648 = vsub.s32 1, %v2647
      %v2649 = vrot.slane %v2616, %v2648
      %v2650 = vlaneseq
      %v2651 = vshrl.u32 %v2650, 7
      %v2652 = vsub.s32 0, %v2651
      %v2653 = vrot.slane %v2599, %v2652
      %v2654 = vlaneseq
      %v2655 = vshrl.u32 %v2654, 7
      %v2656 = vsub.s32 1, %v2655
      %v2657 = vrot.slane %v2599, %v2656
      %v2658 = vlaneseq
      %v2659 = vshrl.u32 %v2658, 7
      %v2660 = vsub.s32 0, %v2659
      %v2661 = vrot.slane %v2613, %v2660
      %v2662 = vlaneseq
      %v2663 = vshrl.u32 %v2662, 7
      %v2664 = vsub.s32 1, %v2663
      %v2665 = vrot.slane %v2613, %v2664
      %v2666 = vlaneseq
      %v2667 = vshrl.u32 %v2666, 7
      %v2668 = vsub.s32 0, %v2667
      %v2669 = vrot.slane %v2615, %v2668
      %v2670 = vlaneseq
      %v2671 = vshrl.u32 %v2670, 7
      %v2672 = vsub.s32 1, %v2671
      %v2673 = vrot.slane %v2615, %v2672
      %v2674 = vlaneseq
      %v2675 = vshrl.u32 %v2674, 7
      %v2676 = vsub.s32 0, %v2675
      %v2677 = vrot.slane %v2617, %v2676
      %v2678 = vlaneseq
      %v2679 = vshrl.u32 %v2678, 7
      %v2680 = vsub.s32 1, %v2679
      %v2681 = vrot.slane %v2617, %v2680
      %v2698 = vadd.f32 %v2621, %v2560
      %v2699 = vadd.f32 %v2625, %v2562
      %v2700 = vadd.f32 %v2629, %v2560
      %v2701 = vadd.f32 %v2633, %v2562
      %v2702 = vadd.f32 %v2637, %v2560
      %v2703 = vadd.f32 %v2641, %v2562
      %v2704 = vadd.f32 %v2645, %v2560
      %v2705 = vadd.f32 %v2649, %v2562
      %v2706 = vadd.f32 %v2653, %v2560
      %v2707 = vadd.f32 %v2657, %v2562
      %v2708 = vadd.f32 %v2661, %v2560
      %v2709 = vadd.f32 %v2665, %v2562
      %v2710 = vadd.f32 %v2669, %v2560
      %v2711 = vadd.f32 %v2673, %v2562
      %v2712 = vadd.f32 %v2677, %v2560
      %v2713 = vadd.f32 %v2681, %v2562
      %v2714 = vld [vmem:[%s7] sm:$0x3]
      %v2716 = vlaneseq
      %v2717 = vshrl.u32 %v2716, 7
      %v2718 = vsub.s32 0, %v2717
      %v2719 = vrot.slane %v2714, %v2718
      %v2720 = vlaneseq
      %v2721 = vshrl.u32 %v2720, 7
      %v2722 = vsub.s32 1, %v2721
      %v2723 = vrot.slane %v2714, %v2722
      %v2726 = vadd.f32 %v2698, %v2719
      %v2727 = vadd.f32 %v2699, %v2723
      %v2728 = vadd.f32 %v2700, %v2719
      %v2729 = vadd.f32 %v2701, %v2723
      %v2730 = vadd.f32 %v2702, %v2719
      %v2731 = vadd.f32 %v2703, %v2723
      %v2732 = vadd.f32 %v2704, %v2719
      %v2733 = vadd.f32 %v2705, %v2723
      %v2734 = vadd.f32 %v2706, %v2719
      %v2735 = vadd.f32 %v2707, %v2723
      %v2736 = vadd.f32 %v2708, %v2719
      %v2737 = vadd.f32 %v2709, %v2723
      %v2738 = vadd.f32 %v2710, %v2719
      %v2739 = vadd.f32 %v2711, %v2723
      %v2740 = vadd.f32 %v2712, %v2719
      %v2741 = vadd.f32 %v2713, %v2723
      %v2742 = vtanh.pop %v2726
      %v2743 = vtanh.pop %v2727
      %v2744 = vtanh.pop %v2728
      %v2745 = vtanh.pop %v2729
      %v2746 = vtanh.pop %v2730
      %v2747 = vtanh.pop %v2731
      %v2748 = vtanh.pop %v2732
      %v2749 = vtanh.pop %v2733
      %v2750 = vtanh.pop %v2734
      %v2751 = vtanh.pop %v2735
      %v2752 = vtanh.pop %v2736
      %v2753 = vtanh.pop %v2737
      %v2754 = vtanh.pop %v2738
      %v2755 = vtanh.pop %v2739
      %v2756 = vtanh.pop %v2740
      %v2757 = vtanh.pop %v2741
      %v2758 = vld [vmem:[%s8] sm:$0x3]
      %v2760 = vlaneseq
      %v2761 = vshrl.u32 %v2760, 7
      %v2762 = vsub.s32 0, %v2761
      %v2763 = vrot.slane %v2758, %v2762
      %v2764 = vlaneseq
      %v2765 = vshrl.u32 %v2764, 7
      %v2766 = vsub.s32 1, %v2765
      %v2767 = vrot.slane %v2758, %v2766
      %v2770 = vmul.f32 %v2742, %v2763
      %v2771 = vmul.f32 %v2743, %v2767
      %v2772 = vmul.f32 %v2744, %v2763
      %v2773 = vmul.f32 %v2745, %v2767
      %v2774 = vmul.f32 %v2746, %v2763
      %v2775 = vmul.f32 %v2747, %v2767
      %v2776 = vmul.f32 %v2748, %v2763
      %v2777 = vmul.f32 %v2749, %v2767
      %v2778 = vmul.f32 %v2750, %v2763
      %v2779 = vmul.f32 %v2751, %v2767
      %v2780 = vmul.f32 %v2752, %v2763
      %v2781 = vmul.f32 %v2753, %v2767
      %v2782 = vmul.f32 %v2754, %v2763
      %v2783 = vmul.f32 %v2755, %v2767
      %v2784 = vmul.f32 %v2756, %v2763
      %v2785 = vmul.f32 %v2757, %v2767
      %v2786 = vadd.f32 %v2770, %v2771
      %2787 = vadd.xlane.f32.xlu0 %v2786
      %v2788 = vpop.xlane.xlu0 %2787
      %v2789 = vadd.f32 %v2772, %v2773
      %2790 = vadd.xlane.f32.xlu0 %v2789
      %v2791 = vpop.xlane.xlu0 %2790
      %v2792 = vadd.f32 %v2774, %v2775
      %2793 = vadd.xlane.f32.xlu0 %v2792
      %v2794 = vpop.xlane.xlu0 %2793
      %v2795 = vadd.f32 %v2776, %v2777
      %2796 = vadd.xlane.f32.xlu0 %v2795
      %v2797 = vpop.xlane.xlu0 %2796
      %v2798 = vadd.f32 %v2778, %v2779
      %2799 = vadd.xlane.f32.xlu0 %v2798
      %v2800 = vpop.xlane.xlu0 %2799
      %v2801 = vadd.f32 %v2780, %v2781
      %2802 = vadd.xlane.f32.xlu0 %v2801
      %v2803 = vpop.xlane.xlu0 %2802
      %v2804 = vadd.f32 %v2782, %v2783
      %2805 = vadd.xlane.f32.xlu0 %v2804
      %v2806 = vpop.xlane.xlu0 %2805
      %v2807 = vadd.f32 %v2784, %v2785
      %2808 = vadd.xlane.f32.xlu0 %v2807
      %v2809 = vpop.xlane.xlu0 %2808
      %v2810 = vtanh.pop %v2788
      %v2811 = vtanh.pop %v2791
      %v2812 = vtanh.pop %v2794
      %v2813 = vtanh.pop %v2797
      %v2814 = vtanh.pop %v2800
      %v2815 = vtanh.pop %v2803
      %v2816 = vtanh.pop %v2806
      %v2817 = vtanh.pop %v2809
      %v2818 = vld [vmem:[%s421] sm:$0xff]
      %v2820 = vlaneseq
      %v2821 = vshrl.u32 %v2820, 7
      %v2822 = vsub.s32 0, %v2821
      %v2823 = vrot.slane %v2818, %v2822
      %2825 = vbcast.lane.b32.xlu0 %v2823, 256
      %v2826 = vpop.permute.xlu0 %2825
      %v2827 = vlaneseq
      %v2828 = vshrl.u32 %v2827, 7
      %v2829 = vsub.s32 1, %v2828
      %v2830 = vrot.slane %v2818, %v2829
      %2832 = vbcast.lane.b32.xlu0 %v2830, 256
      %v2833 = vpop.permute.xlu0 %2832
      %v2834 = vlaneseq
      %v2835 = vshrl.u32 %v2834, 7
      %v2836 = vsub.s32 2, %v2835
      %v2837 = vrot.slane %v2818, %v2836
      %2839 = vbcast.lane.b32.xlu0 %v2837, 256
      %v2840 = vpop.permute.xlu0 %2839
      %v2841 = vlaneseq
      %v2842 = vshrl.u32 %v2841, 7
      %v2843 = vsub.s32 3, %v2842
      %v2844 = vrot.slane %v2818, %v2843
      %2846 = vbcast.lane.b32.xlu0 %v2844, 256
      %v2847 = vpop.permute.xlu0 %2846
      %v2848 = vlaneseq
      %v2849 = vshrl.u32 %v2848, 7
      %v2850 = vsub.s32 4, %v2849
      %v2851 = vrot.slane %v2818, %v2850
      %2853 = vbcast.lane.b32.xlu0 %v2851, 256
      %v2854 = vpop.permute.xlu0 %2853
      %v2855 = vlaneseq
      %v2856 = vshrl.u32 %v2855, 7
      %v2857 = vsub.s32 5, %v2856
      %v2858 = vrot.slane %v2818, %v2857
      %2860 = vbcast.lane.b32.xlu0 %v2858, 256
      %v2861 = vpop.permute.xlu0 %2860
      %v2862 = vlaneseq
      %v2863 = vshrl.u32 %v2862, 7
      %v2864 = vsub.s32 6, %v2863
      %v2865 = vrot.slane %v2818, %v2864
      %2867 = vbcast.lane.b32.xlu0 %v2865, 256
      %v2868 = vpop.permute.xlu0 %2867
      %v2869 = vlaneseq
      %v2870 = vshrl.u32 %v2869, 7
      %v2871 = vsub.s32 7, %v2870
      %v2872 = vrot.slane %v2818, %v2871
      %2874 = vbcast.lane.b32.xlu0 %v2872, 256
      %v2875 = vpop.permute.xlu0 %2874
      %v2884 = vmul.f32 %v2810, %v2826
      %v2885 = vmul.f32 %v2811, %v2833
      %v2886 = vmul.f32 %v2812, %v2840
      %v2887 = vmul.f32 %v2813, %v2847
      %v2888 = vmul.f32 %v2814, %v2854
      %v2889 = vmul.f32 %v2815, %v2861
      %v2890 = vmul.f32 %v2816, %v2868
      %v2891 = vmul.f32 %v2817, %v2875
      %2900 = vset.pattern.permute.xlu0 0
      %2901 = vperm.xlu0 %2900, %v2884
      %v2902 = vpop.permute.xlu0 %2901
      %2903 = vset.pattern.permute.xlu0 0
      %2904 = vperm.xlu0 %2903, %v2885
      %v2905 = vpop.permute.xlu0 %2904
      %2906 = vset.pattern.permute.xlu0 0
      %2907 = vperm.xlu0 %2906, %v2886
      %v2908 = vpop.permute.xlu0 %2907
      %2909 = vset.pattern.permute.xlu0 0
      %2910 = vperm.xlu0 %2909, %v2887
      %v2911 = vpop.permute.xlu0 %2910
      %2912 = vset.pattern.permute.xlu0 0
      %2913 = vperm.xlu0 %2912, %v2888
      %v2914 = vpop.permute.xlu0 %2913
      %2915 = vset.pattern.permute.xlu0 0
      %2916 = vperm.xlu0 %2915, %v2889
      %v2917 = vpop.permute.xlu0 %2916
      %2918 = vset.pattern.permute.xlu0 0
      %2919 = vperm.xlu0 %2918, %v2890
      %v2920 = vpop.permute.xlu0 %2919
      %2921 = vset.pattern.permute.xlu0 0
      %2922 = vperm.xlu0 %2921, %v2891
      %v2923 = vpop.permute.xlu0 %2922
      %v2924 = vlaneseq
      %v2925 = vand.u32 %v2924, 127
      %v2926 = vlaneseq
      %v2927 = vshrl.u32 %v2926, 7
      %v2928 = vsub.s32 %v2925, %v2927
      %v2929 = vrot.slane %v2902, %v2928
      %v2930 = vlaneseq
      %v2931 = vshrl.u32 %v2930, 7
      %v2932 = vsub.s32 %v2925, %v2931
      %v2933 = vrot.slane %v2905, %v2932
      %v2934 = vlaneseq
      %v2935 = vshrl.u32 %v2934, 7
      %v2936 = vsub.s32 %v2925, %v2935
      %v2937 = vrot.slane %v2908, %v2936
      %v2938 = vlaneseq
      %v2939 = vshrl.u32 %v2938, 7
      %v2940 = vsub.s32 %v2925, %v2939
      %v2941 = vrot.slane %v2911, %v2940
      %v2942 = vlaneseq
      %v2943 = vshrl.u32 %v2942, 7
      %v2944 = vsub.s32 %v2925, %v2943
      %v2945 = vrot.slane %v2914, %v2944
      %v2946 = vlaneseq
      %v2947 = vshrl.u32 %v2946, 7
      %v2948 = vsub.s32 %v2925, %v2947
      %v2949 = vrot.slane %v2917, %v2948
      %v2950 = vlaneseq
      %v2951 = vshrl.u32 %v2950, 7
      %v2952 = vsub.s32 %v2925, %v2951
      %v2953 = vrot.slane %v2920, %v2952
      %v2954 = vlaneseq
      %v2955 = vshrl.u32 %v2954, 7
      %v2956 = vsub.s32 %v2925, %v2955
      %v2957 = vrot.slane %v2923, %v2956
      %vm2958 = vcmask 1041409
      %v2959 = vsel %vm2958, %v2933, %v2929
      %vm2960 = vcmask 1042434
      %v2961 = vsel %vm2960, %v2937, %v2959
      %vm2962 = vcmask 1043459
      %v2963 = vsel %vm2962, %v2941, %v2961
      %vm2964 = vcmask 1044484
      %v2965 = vsel %vm2964, %v2945, %v2963
      %vm2966 = vcmask 1045509
      %v2967 = vsel %vm2966, %v2949, %v2965
      %vm2968 = vcmask 1046534
      %v2969 = vsel %vm2968, %v2953, %v2967
      %vm2970 = vcmask 1047559
      %v2971 = vsel %vm2970, %v2957, %v2969
      %vm2973 = vcmask 64512
      %2974 = vst.msk [vmem:[%s429] sm:$0xff] %vm2973, %v2971
      %p2975 = scmp.lt.s32.totalorder %s23, 1
      %s2976 = scalar_select %p2975, %s23, 1
      %s2977 = smul.addr %s2976, 8
      %s2978 = scalar_lea.vmem %s10, %s2977
      %p2979 = scmp.lt.s32.totalorder %s23, 1
      %s2980 = scalar_select %p2979, %s23, 1
      %s2981 = smul.addr %s2980, 8
      %s2982 = scalar_lea.vmem %s11, %s2981
      // Predicated region
      $region61: #{tree_vrnn_forward.1} parent=59 // pred_check
        %p2983 = pneg %p266
      $region62: #{tree_vrnn_forward.1} parent=59 // pred_check_branch
        %2985 = sbr.rel (%p2983) target = $region64
      $region63: #{tree_vrnn_forward.1} parent=59 // pred_region
        _
      $region64: #{tree_vrnn_forward.1} parent=59 // pred_fallthru
        _
      // Predicated region
      $region65: #{tree_vrnn_forward.1} parent=59 // pred_check
        %p2986 = pneg %p292
      $region66: #{tree_vrnn_forward.1} parent=59 // pred_check_branch
        %2988 = sbr.rel (%p2986) target = $region68
      $region67: #{tree_vrnn_forward.1} parent=59 // pred_region
        _
      $region68: #{tree_vrnn_forward.1} parent=59 // pred_fallthru
        _
    $region60: #{tree_vrnn_forward.1} parent=5 // pred_fallthru
      _
    %p2989 = scmp.le.s32.totalorder 2, %s18
    // Predicated region
    $region69: #{tree_vrnn_forward.1} parent=5 // pred_check
      %p2990 = pneg %p2989
    $region70: #{tree_vrnn_forward.1} parent=5 // pred_check_branch
      %2992 = sbr.rel (%p2990) target = $region72
    $region71: #{tree_vrnn_forward.1} parent=5 // pred_region
      %s2993 = ssub.s32 %s18, 2
      // Predicated region
      $region73: #{tree_vrnn_forward.1} parent=71 // pred_check
        %p2994 = pneg %p272
      $region74: #{tree_vrnn_forward.1} parent=71 // pred_check_branch
        %2996 = sbr.rel (%p2994) target = $region76
      $region75: #{tree_vrnn_forward.1} parent=71 // pred_region
        %p2997 = scmp.lt.s32.totalorder %s24, 1
        %s2998 = scalar_select %p2997, %s24, 1
        %s2999 = smul.addr %s2998, 8
        %s3000 = scalar_lea.vmem %s10, %s2999
      $region76: #{tree_vrnn_forward.1} parent=71 // pred_fallthru
        _
      // Predicated region
      $region77: #{tree_vrnn_forward.1} parent=71 // pred_check
        %p3001 = pneg %p298
      $region78: #{tree_vrnn_forward.1} parent=71 // pred_check_branch
        %3003 = sbr.rel (%p3001) target = $region80
      $region79: #{tree_vrnn_forward.1} parent=71 // pred_region
        %p3004 = scmp.lt.s32.totalorder %s24, 1
        %s3005 = scalar_select %p3004, %s24, 1
        %s3006 = smul.addr %s3005, 8
        %s3007 = scalar_lea.vmem %s11, %s3006
      $region80: #{tree_vrnn_forward.1} parent=71 // pred_fallthru
        _
    $region72: #{tree_vrnn_forward.1} parent=5 // pred_fallthru
      _
  $region6: #{tree_vrnn_forward.1} parent=0 // loop_footer
    %s22 = sadd.s32 1, %s18
  $region7: #{tree_vrnn_forward.1} parent=0 // loop_footer_branch
    %17 = sbr.rel target = $region3
  $region8: #{tree_vrnn_forward.1} parent=0 // loop_exit
    _

</llo_original>
